<compile_context>
chip_gen: v7x
topology: tpu7x:2x2x1
jax: 0.10.0
libtpu: 0.0.40
codegen_flags: <defaults>
</compile_context>

<pallas_src>
import functools

import jax
import jax.numpy as jnp
from jax.experimental import pallas as pl
from jax.experimental.pallas import tpu as pltpu


def autopad(k, p=None):
    if p is None:
        p = k // 2 if isinstance(k, int) else [x // 2 for x in k]
    return p


def _round_up(x, m):
    return (x + m - 1) // m * m


def _pick_row_tile(ho):
    # Prefer 8..32 output rows per grid step; require it to divide Ho and, when
    # possible, give >= 2 row tiles so the output write-back pipeline has depth.
    for cand in (32, 16, 8, 4, 2, 1):
        if ho % cand == 0 and ho // cand >= 2:
            return cand
    return ho


def _conv_bn_silu_kernel(x_ref, w_ref, scale_ref, shift_ref, o_ref,
                         *, TH, Wv, K, C1p, C2p):
    """One grid step = one (batch image, TH-row output tile).

    x_ref:     (1, Hp, Wp, C1p)  padded NHWC image (bf16, VMEM, resident per batch)
    w_ref:     (K, K*C1p, C2p)   weights, ky stacked on the contraction axis per
                                 kx tap (bf16, VMEM, single-buffered)
    scale_ref: (1, C2p)          BN scale  gamma / sqrt(var + eps)       (f32)
    shift_ref: (1, C2p)          BN shift  beta - mean * scale           (f32)
    o_ref:     (1, TH, Wv, C2p)  NHWC output row tile (bf16, VMEM)
    """
    h0 = pl.multiple_of(pl.program_id(1) * TH, TH)
    n = TH * Wv

    # Accumulate the K per-kx matmuls in values (vreg / MRB accumulation); the
    # accumulator never round-trips through VMEM scratch.
    acc = None
    for kx in range(K):
        # im2col over ky only: stack the K row-shifted slabs on the lane axis.
        # H slices live on a non-tiled dim; C1p % 128 == 0 keeps the flatten and
        # the lane concat layout-preserving.
        # TODO(synk): the kx=1..K-1 W starts are not sublane(8)-aligned; if the
        # bundle dump shows per-tap slab copies, load one aligned slab per ky
        # and derive the kx shifts with pltpu.roll (XLU slot) instead.
        slabs = [
            x_ref[0, pl.ds(h0 + ky, TH), kx:kx + Wv, :].reshape(n, C1p)
            for ky in range(K)
        ]
        patch = slabs[0] if K == 1 else jnp.concatenate(slabs, axis=1)  # (n, K*C1p)
        contrib = jnp.dot(patch, w_ref[kx],
                          preferred_element_type=jnp.float32)           # MXU, f32 acc
        acc = contrib if acc is None else acc + contrib

    # Epilogue: BN affine kept in f32 (not folded into bf16 weights) + SiLU with
    # an exact reciprocal (EUP has slack), then one lane-dense bf16 store.
    y = acc * scale_ref[...] + shift_ref[...]
    y = y * (1.0 / (1.0 + jnp.exp(-y)))                                  # SiLU
    o_ref[...] = y.reshape(1, TH, Wv, C2p).astype(o_ref.dtype)


def conv_bn_silu(x_nchw, weight_oihw, gamma, beta, running_mean, running_var,
                 *, stride=1, padding=None, eps=1e-5):
    """Equivalent of Conv(c1, c2, k, s=1).forward(x) with eval-mode BatchNorm."""
    B, C1, H, W = x_nchw.shape
    C2, C1w, K, Kw = weight_oihw.shape
    assert C1w == C1 and Kw == K
    assert stride == 1  # TODO(synk): stride > 1 not implemented
    p = autopad(K, padding)

    Ho, Wo = H, W                        # stride 1
    LANE = 128
    C1p = _round_up(C1, LANE)            # lane-dense input channels
    C2p = _round_up(C2, LANE)            # lane-dense output channels
    Wv = _round_up(Wo, 8)                # sublane-aligned output width per tile
    Wp = Wv + 2 * p                      # padded input width (>= W + 2p, covers all kx)
    Hp = H + 2 * p
    TH = _pick_row_tile(Ho)              # output rows per grid step

    # ---- JAX glue: layout, padding, BN parameters ---------------------------
    x = jnp.transpose(x_nchw, (0, 2, 3, 1))                        # NCHW -> NHWC
    x = jnp.pad(x, ((0, 0), (p, p), (p, Wp - W - p), (0, C1p - C1)))
    x = x.astype(jnp.bfloat16)

    w = jnp.transpose(weight_oihw, (2, 3, 1, 0)).astype(jnp.float32)  # OIHW -> HWIO
    w = jnp.pad(w, ((0, 0), (0, 0), (0, C1p - C1), (0, C2p - C2)))
    # (kh, kw, ci, co) -> (kw, kh*C1p + ci, co): ky stacked on contraction axis.
    w_cat = jnp.transpose(w, (1, 0, 2, 3)).reshape(K, K * C1p, C2p)
    w_cat = w_cat.astype(jnp.bfloat16)

    scale = gamma / jnp.sqrt(running_var + eps)                    # BN scale (f32)
    shift = beta - running_mean * scale                            # BN shift (f32)
    scale = jnp.pad(scale, (0, C2p - C2)).reshape(1, C2p).astype(jnp.float32)
    shift = jnp.pad(shift, (0, C2p - C2)).reshape(1, C2p).astype(jnp.float32)

    kernel = functools.partial(_conv_bn_silu_kernel,
                               TH=TH, Wv=Wv, K=K, C1p=C1p, C2p=C2p)

    # ---- VMEM budget: resident image (x2 pipeline buffers) + single-buffered
    # weights / BN params + double-buffered bf16 output tile. -----------------
    img_bytes = Hp * Wp * C1p * 2
    w_bytes = K * K * C1p * C2p * 2
    out_bytes = TH * Wv * C2p * 2
    need = 2 * img_bytes + w_bytes + 2 * 4 * C2p + 2 * out_bytes
    limit = max(int(need * 1.25) + (4 << 20), 16 << 20)
    try:
        cap = int(pltpu.get_tpu_info().vmem_capacity_bytes)
    except Exception:
        cap = 64 << 20                   # assume v7x-sized VMEM if query fails
    limit = max(min(limit, cap - (16 << 20)), 16 << 20)
    # TODO(synk): if 2*img_bytes no longer fits (large maps on v7x), stream
    # (TH+K-1)-row halo slabs with pl.ANY + make_async_copy instead.

    def build(single_buffer_constants):
        if single_buffer_constants:
            pm = dict(pipeline_mode=pl.Buffered(1))
        else:
            pm = {}
        grid_spec = pltpu.PrefetchScalarGridSpec(
            num_scalar_prefetch=0,
            grid=(B, Ho // TH),
            in_specs=[
                # Whole padded image: same block index for every row tile of a
                # batch element, so it stays resident (one DMA per image).
                pl.BlockSpec((1, Hp, Wp, C1p), lambda b, h: (b, 0, 0, 0)),
                # Constant blocks: never re-DMA'd; single buffer saves VMEM.
                pl.BlockSpec((K, K * C1p, C2p), lambda b, h: (0, 0, 0), **pm),
                pl.BlockSpec((1, C2p), lambda b, h: (0, 0), **pm),
                pl.BlockSpec((1, C2p), lambda b, h: (0, 0), **pm),
            ],
            out_specs=pl.BlockSpec((1, TH, Wv, C2p), lambda b, h: (b, h, 0, 0)),
        )
        return pl.pallas_call(
            kernel,
            out_shape=jax.ShapeDtypeStruct((B, Ho, Wv, C2p), jnp.bfloat16),
            grid_spec=grid_spec,
            compiler_params=pltpu.CompilerParams(
                dimension_semantics=("parallel", "parallel"),
                vmem_limit_bytes=limit,
            ),
        )

    try:
        out_nhwc = build(True)(x, w_cat, scale, shift)
    except Exception:
        # Fallback if this JAX build rejects pipeline_mode=pl.Buffered(1).
        out_nhwc = build(False)(x, w_cat, scale, shift)

    # TODO(synk): keep the network channel-padded NHWC end-to-end so this crop
    # and transpose (and the pads above) never hit HBM.
    out_nhwc = out_nhwc[:, :, :Wo, :C2].astype(jnp.float32)
    return jnp.transpose(out_nhwc, (0, 3, 1, 2))                   # NHWC -> NCHW


def _reference(x, w, gamma, beta, mean, var, *, padding, eps=1e-5):
    y = jax.lax.conv_general_dilated(
        x, w, window_strides=(1, 1), padding=[(padding, padding)] * 2,
        dimension_numbers=("NCHW", "OIHW", "NCHW"))
    y = (y - mean[None, :, None, None]) / jnp.sqrt(var[None, :, None, None] + eps)
    y = y * gamma[None, :, None, None] + beta[None, :, None, None]
    return y * jax.nn.sigmoid(y)


if __name__ == "__main__":
    # Small shapes consistent with Conv(c1=4, c2=8, k=3, s=1): x is NCHW.
    B, C1, C2, H, W, K = 2, 4, 8, 16, 16, 3

    key = jax.random.PRNGKey(0)
    kx, kw, kg, kb, km, kv = jax.random.split(key, 6)

    x = jax.random.normal(kx, (B, C1, H, W), dtype=jnp.float32)
    weight = jax.random.normal(kw, (C2, C1, K, K), dtype=jnp.float32) * 0.1
    gamma = 1.0 + 0.1 * jax.random.normal(kg, (C2,), dtype=jnp.float32)
    beta = 0.1 * jax.random.normal(kb, (C2,), dtype=jnp.float32)
    running_mean = 0.1 * jax.random.normal(km, (C2,), dtype=jnp.float32)
    running_var = 1.0 + 0.1 * jax.random.uniform(kv, (C2,), dtype=jnp.float32)

    out = conv_bn_silu(x, weight, gamma, beta, running_mean, running_var)
    out = jax.block_until_ready(out)

    ref = _reference(x, weight, gamma, beta, running_mean, running_var,
                     padding=autopad(K))
    ref = jax.block_until_ready(ref)

    assert out.shape == (B, C2, H, W), out.shape
    # bf16 MXU inputs (f32 accumulation) + bf16 output => looser tolerance than
    # a pure-f32 path.
    assert bool(jnp.allclose(out, ref, atol=3e-2, rtol=3e-2)), (
        float(jnp.max(jnp.abs(out - ref))))
    print("KERNEL_OK")
</pallas_src>

<mosaic_0001>
module attributes {stable_mosaic.version = 11 : i64} {
  func.func @_conv_bn_silu_kernel(%arg0: i32, %arg1: i32, %arg2: memref<1x18x18x128xbf16, #tpu.memory_space<vmem>>, %arg3: memref<3x384x128xbf16, #tpu.memory_space<vmem>>, %arg4: memref<1x128xf32, #tpu.memory_space<vmem>>, %arg5: memref<1x128xf32, #tpu.memory_space<vmem>>, %arg6: memref<1x8x16x128xbf16, #tpu.memory_space<vmem>>) attributes {dimension_semantics = [#tpu.dimension_semantics<parallel>, #tpu.dimension_semantics<parallel>], iteration_bounds = array<i64: 2, 2>, scalar_prefetch = 0 : i64, scratch_operands = 0 : i64, tpu.core_type = #tpu.core_type<tc>, window_params = [{transform_indices = @transform_0, window_bounds = array<i64: 1, 18, 18, 128>}, {pipeline_mode = #tpu.pipeline_mode<synchronous>, transform_indices = @transform_1, window_bounds = array<i64: 3, 384, 128>}, {pipeline_mode = #tpu.pipeline_mode<synchronous>, transform_indices = @transform_2, window_bounds = array<i64: 1, 128>}, {pipeline_mode = #tpu.pipeline_mode<synchronous>, transform_indices = @transform_3, window_bounds = array<i64: 1, 128>}, {transform_indices = @transform_4, window_bounds = array<i64: 1, 8, 16, 128>}]} {
    %c8_i32 = arith.constant 8 : i32
    %0 = arith.muli %arg1, %c8_i32 : i32
    %1 = tpu.assume_multiple %0, 8 : i32
    %c0_i32 = arith.constant 0 : i32
    %2 = arith.addi %1, %c0_i32 : i32
    %c0 = arith.constant 0 : index
    %3 = arith.index_cast %2 : i32 to index
    %c0_0 = arith.constant 0 : index
    %c0_1 = arith.constant 0 : index
    %4 = vector.load %arg2[%c0, %3, %c0_0, %c0_1] : memref<1x18x18x128xbf16, #tpu.memory_space<vmem>>, vector<1x8x16x128xbf16>
    %5 = vector.shape_cast %4 : vector<1x8x16x128xbf16> to vector<8x16x128xbf16>
    %6 = vector.shape_cast %5 : vector<8x16x128xbf16> to vector<128x128xbf16>
    %c1_i32 = arith.constant 1 : i32
    %7 = arith.addi %1, %c1_i32 : i32
    %c0_2 = arith.constant 0 : index
    %8 = arith.index_cast %7 : i32 to index
    %c0_3 = arith.constant 0 : index
    %c0_4 = arith.constant 0 : index
    %9 = vector.load %arg2[%c0_2, %8, %c0_3, %c0_4] : memref<1x18x18x128xbf16, #tpu.memory_space<vmem>>, vector<1x8x16x128xbf16>
    %10 = vector.shape_cast %9 : vector<1x8x16x128xbf16> to vector<8x16x128xbf16>
    %11 = vector.shape_cast %10 : vector<8x16x128xbf16> to vector<128x128xbf16>
    %c2_i32 = arith.constant 2 : i32
    %12 = arith.addi %1, %c2_i32 : i32
    %c0_5 = arith.constant 0 : index
    %13 = arith.index_cast %12 : i32 to index
    %c0_6 = arith.constant 0 : index
    %c0_7 = arith.constant 0 : index
    %14 = vector.load %arg2[%c0_5, %13, %c0_6, %c0_7] : memref<1x18x18x128xbf16, #tpu.memory_space<vmem>>, vector<1x8x16x128xbf16>
    %15 = vector.shape_cast %14 : vector<1x8x16x128xbf16> to vector<8x16x128xbf16>
    %16 = vector.shape_cast %15 : vector<8x16x128xbf16> to vector<128x128xbf16>
    %17 = tpu.concatenate %6, %11, %16 in 1 : vector<128x128xbf16>, vector<128x128xbf16>, vector<128x128xbf16> -> vector<128x384xbf16>
    %c0_8 = arith.constant 0 : index
    %c0_9 = arith.constant 0 : index
    %c0_10 = arith.constant 0 : index
    %18 = vector.load %arg3[%c0_8, %c0_9, %c0_10] : memref<3x384x128xbf16, #tpu.memory_space<vmem>>, vector<1x384x128xbf16>
    %19 = vector.shape_cast %18 : vector<1x384x128xbf16> to vector<384x128xbf16>
    %cst = arith.constant dense<0.000000e+00> : vector<128x128xf32>
    %20 = tpu.matmul %17, %19, %cst {dimension_numbers = #tpu.dot_dimension_numbers<[1], [0], [0], [1], [0, 0, 1, 1], [], []>} : vector<128x384xbf16>, vector<384x128xbf16>, vector<128x128xf32> -> vector<128x128xf32>
    %c0_i32_11 = arith.constant 0 : i32
    %21 = arith.addi %1, %c0_i32_11 : i32
    %c0_12 = arith.constant 0 : index
    %22 = arith.index_cast %21 : i32 to index
    %c1 = arith.constant 1 : index
    %c0_13 = arith.constant 0 : index
    %23 = vector.load %arg2[%c0_12, %22, %c1, %c0_13] : memref<1x18x18x128xbf16, #tpu.memory_space<vmem>>, vector<1x8x16x128xbf16>
    %24 = vector.shape_cast %23 : vector<1x8x16x128xbf16> to vector<8x16x128xbf16>
    %25 = vector.shape_cast %24 : vector<8x16x128xbf16> to vector<128x128xbf16>
    %c1_i32_14 = arith.constant 1 : i32
    %26 = arith.addi %1, %c1_i32_14 : i32
    %c0_15 = arith.constant 0 : index
    %27 = arith.index_cast %26 : i32 to index
    %c1_16 = arith.constant 1 : index
    %c0_17 = arith.constant 0 : index
    %28 = vector.load %arg2[%c0_15, %27, %c1_16, %c0_17] : memref<1x18x18x128xbf16, #tpu.memory_space<vmem>>, vector<1x8x16x128xbf16>
    %29 = vector.shape_cast %28 : vector<1x8x16x128xbf16> to vector<8x16x128xbf16>
    %30 = vector.shape_cast %29 : vector<8x16x128xbf16> to vector<128x128xbf16>
    %c2_i32_18 = arith.constant 2 : i32
    %31 = arith.addi %1, %c2_i32_18 : i32
    %c0_19 = arith.constant 0 : index
    %32 = arith.index_cast %31 : i32 to index
    %c1_20 = arith.constant 1 : index
    %c0_21 = arith.constant 0 : index
    %33 = vector.load %arg2[%c0_19, %32, %c1_20, %c0_21] : memref<1x18x18x128xbf16, #tpu.memory_space<vmem>>, vector<1x8x16x128xbf16>
    %34 = vector.shape_cast %33 : vector<1x8x16x128xbf16> to vector<8x16x128xbf16>
    %35 = vector.shape_cast %34 : vector<8x16x128xbf16> to vector<128x128xbf16>
    %36 = tpu.concatenate %25, %30, %35 in 1 : vector<128x128xbf16>, vector<128x128xbf16>, vector<128x128xbf16> -> vector<128x384xbf16>
    %c1_22 = arith.constant 1 : index
    %c0_23 = arith.constant 0 : index
    %c0_24 = arith.constant 0 : index
    %37 = vector.load %arg3[%c1_22, %c0_23, %c0_24] : memref<3x384x128xbf16, #tpu.memory_space<vmem>>, vector<1x384x128xbf16>
    %38 = vector.shape_cast %37 : vector<1x384x128xbf16> to vector<384x128xbf16>
    %cst_25 = arith.constant dense<0.000000e+00> : vector<128x128xf32>
    %39 = tpu.matmul %36, %38, %cst_25 {dimension_numbers = #tpu.dot_dimension_numbers<[1], [0], [0], [1], [0, 0, 1, 1], [], []>} : vector<128x384xbf16>, vector<384x128xbf16>, vector<128x128xf32> -> vector<128x128xf32>
    %40 = arith.addf %20, %39 : vector<128x128xf32>
    %c0_i32_26 = arith.constant 0 : i32
    %41 = arith.addi %1, %c0_i32_26 : i32
    %c0_27 = arith.constant 0 : index
    %42 = arith.index_cast %41 : i32 to index
    %c2 = arith.constant 2 : index
    %c0_28 = arith.constant 0 : index
    %43 = vector.load %arg2[%c0_27, %42, %c2, %c0_28] : memref<1x18x18x128xbf16, #tpu.memory_space<vmem>>, vector<1x8x16x128xbf16>
    %44 = vector.shape_cast %43 : vector<1x8x16x128xbf16> to vector<8x16x128xbf16>
    %45 = vector.shape_cast %44 : vector<8x16x128xbf16> to vector<128x128xbf16>
    %c1_i32_29 = arith.constant 1 : i32
    %46 = arith.addi %1, %c1_i32_29 : i32
    %c0_30 = arith.constant 0 : index
    %47 = arith.index_cast %46 : i32 to index
    %c2_31 = arith.constant 2 : index
    %c0_32 = arith.constant 0 : index
    %48 = vector.load %arg2[%c0_30, %47, %c2_31, %c0_32] : memref<1x18x18x128xbf16, #tpu.memory_space<vmem>>, vector<1x8x16x128xbf16>
    %49 = vector.shape_cast %48 : vector<1x8x16x128xbf16> to vector<8x16x128xbf16>
    %50 = vector.shape_cast %49 : vector<8x16x128xbf16> to vector<128x128xbf16>
    %c2_i32_33 = arith.constant 2 : i32
    %51 = arith.addi %1, %c2_i32_33 : i32
    %c0_34 = arith.constant 0 : index
    %52 = arith.index_cast %51 : i32 to index
    %c2_35 = arith.constant 2 : index
    %c0_36 = arith.constant 0 : index
    %53 = vector.load %arg2[%c0_34, %52, %c2_35, %c0_36] : memref<1x18x18x128xbf16, #tpu.memory_space<vmem>>, vector<1x8x16x128xbf16>
    %54 = vector.shape_cast %53 : vector<1x8x16x128xbf16> to vector<8x16x128xbf16>
    %55 = vector.shape_cast %54 : vector<8x16x128xbf16> to vector<128x128xbf16>
    %56 = tpu.concatenate %45, %50, %55 in 1 : vector<128x128xbf16>, vector<128x128xbf16>, vector<128x128xbf16> -> vector<128x384xbf16>
    %c2_37 = arith.constant 2 : index
    %c0_38 = arith.constant 0 : index
    %c0_39 = arith.constant 0 : index
    %57 = vector.load %arg3[%c2_37, %c0_38, %c0_39] : memref<3x384x128xbf16, #tpu.memory_space<vmem>>, vector<1x384x128xbf16>
    %58 = vector.shape_cast %57 : vector<1x384x128xbf16> to vector<384x128xbf16>
    %cst_40 = arith.constant dense<0.000000e+00> : vector<128x128xf32>
    %59 = tpu.matmul %56, %58, %cst_40 {dimension_numbers = #tpu.dot_dimension_numbers<[1], [0], [0], [1], [0, 0, 1, 1], [], []>} : vector<128x384xbf16>, vector<384x128xbf16>, vector<128x128xf32> -> vector<128x128xf32>
    %60 = arith.addf %40, %59 : vector<128x128xf32>
    %c0_41 = arith.constant 0 : index
    %c0_42 = arith.constant 0 : index
    %61 = vector.load %arg4[%c0_41, %c0_42] : memref<1x128xf32, #tpu.memory_space<vmem>>, vector<1x128xf32>
    %62 = vector.broadcast %61 : vector<1x128xf32> to vector<128x128xf32>
    %63 = arith.mulf %60, %62 : vector<128x128xf32>
    %c0_43 = arith.constant 0 : index
    %c0_44 = arith.constant 0 : index
    %64 = vector.load %arg5[%c0_43, %c0_44] : memref<1x128xf32, #tpu.memory_space<vmem>>, vector<1x128xf32>
    %65 = vector.broadcast %64 : vector<1x128xf32> to vector<128x128xf32>
    %66 = arith.addf %63, %65 : vector<128x128xf32>
    %cst_45 = arith.constant 0.000000e+00 : f32
    %67 = vector.broadcast %cst_45 : f32 to vector<128x128xf32>
    %68 = arith.subf %67, %66 : vector<128x128xf32>
    %69 = math.exp %68 : vector<128x128xf32>
    %cst_46 = arith.constant 1.000000e+00 : f32
    %70 = vector.broadcast %cst_46 : f32 to vector<128x128xf32>
    %71 = arith.addf %70, %69 : vector<128x128xf32>
    %cst_47 = arith.constant 1.000000e+00 : f32
    %72 = vector.broadcast %cst_47 : f32 to vector<128x128xf32>
    %73 = arith.divf %72, %71 : vector<128x128xf32>
    %74 = arith.mulf %66, %73 : vector<128x128xf32>
    %75 = vector.shape_cast %74 : vector<128x128xf32> to vector<1x8x16x128xf32>
    %76 = arith.truncf %75 : vector<1x8x16x128xf32> to vector<1x8x16x128xbf16>
    %c0_48 = arith.constant 0 : index
    %c0_49 = arith.constant 0 : index
    %c0_50 = arith.constant 0 : index
    %c0_51 = arith.constant 0 : index
    %77 = vector.load %arg6[%c0_48, %c0_49, %c0_50, %c0_51] : memref<1x8x16x128xbf16, #tpu.memory_space<vmem>>, vector<1x8x16x128xbf16>
    tpu.vector_store %arg6[%c0_48, %c0_49, %c0_50, %c0_51], %76 {strides = array<i32>} : memref<1x8x16x128xbf16, #tpu.memory_space<vmem>>, vector<1x8x16x128xbf16>,
    return
  }
  func.func @transform_0(%arg0: i32, %arg1: i32) -> (i32, i32, i32, i32) {
    %c0_i32 = arith.constant 0 : i32
    %c0_i32_0 = arith.constant 0 : i32
    %c0_i32_1 = arith.constant 0 : i32
    %c0_i32_2 = arith.constant 0 : i32
    return %arg0, %c0_i32, %c0_i32_0, %c0_i32_1 : i32, i32, i32, i32
  }
  func.func @transform_1(%arg0: i32, %arg1: i32) -> (i32, i32, i32) {
    %c0_i32 = arith.constant 0 : i32
    %c0_i32_0 = arith.constant 0 : i32
    %c0_i32_1 = arith.constant 0 : i32
    %c0_i32_2 = arith.constant 0 : i32
    return %c0_i32, %c0_i32_0, %c0_i32_1 : i32, i32, i32
  }
  func.func @transform_2(%arg0: i32, %arg1: i32) -> (i32, i32) {
    %c0_i32 = arith.constant 0 : i32
    %c0_i32_0 = arith.constant 0 : i32
    %c0_i32_1 = arith.constant 0 : i32
    return %c0_i32, %c0_i32_0 : i32, i32
  }
  func.func @transform_3(%arg0: i32, %arg1: i32) -> (i32, i32) {
    %c0_i32 = arith.constant 0 : i32
    %c0_i32_0 = arith.constant 0 : i32
    %c0_i32_1 = arith.constant 0 : i32
    return %c0_i32, %c0_i32_0 : i32, i32
  }
  func.func @transform_4(%arg0: i32, %arg1: i32) -> (i32, i32, i32, i32) {
    %c0_i32 = arith.constant 0 : i32
    %c0_i32_0 = arith.constant 0 : i32
    %c0_i32_1 = arith.constant 0 : i32
    return %arg0, %arg1, %c0_i32, %c0_i32_0 : i32, i32, i32, i32
  }
}

module attributes {stable_mosaic.version = 11 : i64} {
  func.func @_conv_bn_silu_kernel(%arg0: i32, %arg1: i32, %arg2: memref<1x18x18x128xbf16, #tpu.memory_space<vmem>>, %arg3: memref<3x384x128xbf16, #tpu.memory_space<vmem>>, %arg4: memref<1x128xf32, #tpu.memory_space<vmem>>, %arg5: memref<1x128xf32, #tpu.memory_space<vmem>>, %arg6: memref<1x8x16x128xbf16, #tpu.memory_space<vmem>>) attributes {dimension_semantics = [#tpu.dimension_semantics<parallel>, #tpu.dimension_semantics<parallel>], iteration_bounds = array<i64: 2, 2>, scalar_prefetch = 0 : i64, scratch_operands = 0 : i64, tpu.core_type = #tpu.core_type<tc>, window_params = [{transform_indices = @transform_0, window_bounds = array<i64: 1, 18, 18, 128>}, {pipeline_mode = #tpu.pipeline_mode<synchronous>, transform_indices = @transform_1, window_bounds = array<i64: 3, 384, 128>}, {pipeline_mode = #tpu.pipeline_mode<synchronous>, transform_indices = @transform_2, window_bounds = array<i64: 1, 128>}, {pipeline_mode = #tpu.pipeline_mode<synchronous>, transform_indices = @transform_3, window_bounds = array<i64: 1, 128>}, {transform_indices = @transform_4, window_bounds = array<i64: 1, 8, 16, 128>}]} {
    %c8_i32 = arith.constant 8 : i32
    %0 = arith.muli %arg1, %c8_i32 : i32
    %1 = tpu.assume_multiple %0, 8 : i32
    %c0_i32 = arith.constant 0 : i32
    %2 = arith.addi %1, %c0_i32 : i32
    %c0 = arith.constant 0 : index
    %3 = arith.index_cast %2 : i32 to index
    %c0_0 = arith.constant 0 : index
    %c0_1 = arith.constant 0 : index
    %4 = vector.load %arg2[%c0, %3, %c0_0, %c0_1] : memref<1x18x18x128xbf16, #tpu.memory_space<vmem>>, vector<1x8x16x128xbf16>
    %5 = vector.shape_cast %4 : vector<1x8x16x128xbf16> to vector<8x16x128xbf16>
    %6 = vector.shape_cast %5 : vector<8x16x128xbf16> to vector<128x128xbf16>
    %c1_i32 = arith.constant 1 : i32
    %7 = arith.addi %1, %c1_i32 : i32
    %c0_2 = arith.constant 0 : index
    %8 = arith.index_cast %7 : i32 to index
    %c0_3 = arith.constant 0 : index
    %c0_4 = arith.constant 0 : index
    %9 = vector.load %arg2[%c0_2, %8, %c0_3, %c0_4] : memref<1x18x18x128xbf16, #tpu.memory_space<vmem>>, vector<1x8x16x128xbf16>
    %10 = vector.shape_cast %9 : vector<1x8x16x128xbf16> to vector<8x16x128xbf16>
    %11 = vector.shape_cast %10 : vector<8x16x128xbf16> to vector<128x128xbf16>
    %c2_i32 = arith.constant 2 : i32
    %12 = arith.addi %1, %c2_i32 : i32
    %c0_5 = arith.constant 0 : index
    %13 = arith.index_cast %12 : i32 to index
    %c0_6 = arith.constant 0 : index
    %c0_7 = arith.constant 0 : index
    %14 = vector.load %arg2[%c0_5, %13, %c0_6, %c0_7] : memref<1x18x18x128xbf16, #tpu.memory_space<vmem>>, vector<1x8x16x128xbf16>
    %15 = vector.shape_cast %14 : vector<1x8x16x128xbf16> to vector<8x16x128xbf16>
    %16 = vector.shape_cast %15 : vector<8x16x128xbf16> to vector<128x128xbf16>
    %17 = tpu.concatenate %6, %11, %16 in 1 : vector<128x128xbf16>, vector<128x128xbf16>, vector<128x128xbf16> -> vector<128x384xbf16>
    %c0_8 = arith.constant 0 : index
    %c0_9 = arith.constant 0 : index
    %c0_10 = arith.constant 0 : index
    %18 = vector.load %arg3[%c0_8, %c0_9, %c0_10] : memref<3x384x128xbf16, #tpu.memory_space<vmem>>, vector<1x384x128xbf16>
    %19 = vector.shape_cast %18 : vector<1x384x128xbf16> to vector<384x128xbf16>
    %cst = arith.constant dense<0.000000e+00> : vector<128x128xf32>
    %20 = tpu.matmul %17, %19, %cst {dimension_numbers = #tpu.dot_dimension_numbers<[1], [0], [0], [1], [0, 0, 1, 1], [], []>} : vector<128x384xbf16>, vector<384x128xbf16>, vector<128x128xf32> -> vector<128x128xf32>
    %c0_i32_11 = arith.constant 0 : i32
    %21 = arith.addi %1, %c0_i32_11 : i32
    %c0_12 = arith.constant 0 : index
    %22 = arith.index_cast %21 : i32 to index
    %c1 = arith.constant 1 : index
    %c0_13 = arith.constant 0 : index
    %23 = vector.load %arg2[%c0_12, %22, %c1, %c0_13] : memref<1x18x18x128xbf16, #tpu.memory_space<vmem>>, vector<1x8x16x128xbf16>
    %24 = vector.shape_cast %23 : vector<1x8x16x128xbf16> to vector<8x16x128xbf16>
    %25 = vector.shape_cast %24 : vector<8x16x128xbf16> to vector<128x128xbf16>
    %c1_i32_14 = arith.constant 1 : i32
    %26 = arith.addi %1, %c1_i32_14 : i32
    %c0_15 = arith.constant 0 : index
    %27 = arith.index_cast %26 : i32 to index
    %c1_16 = arith.constant 1 : index
    %c0_17 = arith.constant 0 : index
    %28 = vector.load %arg2[%c0_15, %27, %c1_16, %c0_17] : memref<1x18x18x128xbf16, #tpu.memory_space<vmem>>, vector<1x8x16x128xbf16>
    %29 = vector.shape_cast %28 : vector<1x8x16x128xbf16> to vector<8x16x128xbf16>
    %30 = vector.shape_cast %29 : vector<8x16x128xbf16> to vector<128x128xbf16>
    %c2_i32_18 = arith.constant 2 : i32
    %31 = arith.addi %1, %c2_i32_18 : i32
    %c0_19 = arith.constant 0 : index
    %32 = arith.index_cast %31 : i32 to index
    %c1_20 = arith.constant 1 : index
    %c0_21 = arith.constant 0 : index
    %33 = vector.load %arg2[%c0_19, %32, %c1_20, %c0_21] : memref<1x18x18x128xbf16, #tpu.memory_space<vmem>>, vector<1x8x16x128xbf16>
    %34 = vector.shape_cast %33 : vector<1x8x16x128xbf16> to vector<8x16x128xbf16>
    %35 = vector.shape_cast %34 : vector<8x16x128xbf16> to vector<128x128xbf16>
    %36 = tpu.concatenate %25, %30, %35 in 1 : vector<128x128xbf16>, vector<128x128xbf16>, vector<128x128xbf16> -> vector<128x384xbf16>
    %c1_22 = arith.constant 1 : index
    %c0_23 = arith.constant 0 : index
    %c0_24 = arith.constant 0 : index
    %37 = vector.load %arg3[%c1_22, %c0_23, %c0_24] : memref<3x384x128xbf16, #tpu.memory_space<vmem>>, vector<1x384x128xbf16>
    %38 = vector.shape_cast %37 : vector<1x384x128xbf16> to vector<384x128xbf16>
    %cst_25 = arith.constant dense<0.000000e+00> : vector<128x128xf32>
    %39 = tpu.matmul %36, %38, %cst_25 {dimension_numbers = #tpu.dot_dimension_numbers<[1], [0], [0], [1], [0, 0, 1, 1], [], []>} : vector<128x384xbf16>, vector<384x128xbf16>, vector<128x128xf32> -> vector<128x128xf32>
    %40 = arith.addf %20, %39 : vector<128x128xf32>
    %c0_i32_26 = arith.constant 0 : i32
    %41 = arith.addi %1, %c0_i32_26 : i32
    %c0_27 = arith.constant 0 : index
    %42 = arith.index_cast %41 : i32 to index
    %c2 = arith.constant 2 : index
    %c0_28 = arith.constant 0 : index
    %43 = vector.load %arg2[%c0_27, %42, %c2, %c0_28] : memref<1x18x18x128xbf16, #tpu.memory_space<vmem>>, vector<1x8x16x128xbf16>
    %44 = vector.shape_cast %43 : vector<1x8x16x128xbf16> to vector<8x16x128xbf16>
    %45 = vector.shape_cast %44 : vector<8x16x128xbf16> to vector<128x128xbf16>
    %c1_i32_29 = arith.constant 1 : i32
    %46 = arith.addi %1, %c1_i32_29 : i32
    %c0_30 = arith.constant 0 : index
    %47 = arith.index_cast %46 : i32 to index
    %c2_31 = arith.constant 2 : index
    %c0_32 = arith.constant 0 : index
    %48 = vector.load %arg2[%c0_30, %47, %c2_31, %c0_32] : memref<1x18x18x128xbf16, #tpu.memory_space<vmem>>, vector<1x8x16x128xbf16>
    %49 = vector.shape_cast %48 : vector<1x8x16x128xbf16> to vector<8x16x128xbf16>
    %50 = vector.shape_cast %49 : vector<8x16x128xbf16> to vector<128x128xbf16>
    %c2_i32_33 = arith.constant 2 : i32
    %51 = arith.addi %1, %c2_i32_33 : i32
    %c0_34 = arith.constant 0 : index
    %52 = arith.index_cast %51 : i32 to index
    %c2_35 = arith.constant 2 : index
    %c0_36 = arith.constant 0 : index
    %53 = vector.load %arg2[%c0_34, %52, %c2_35, %c0_36] : memref<1x18x18x128xbf16, #tpu.memory_space<vmem>>, vector<1x8x16x128xbf16>
    %54 = vector.shape_cast %53 : vector<1x8x16x128xbf16> to vector<8x16x128xbf16>
    %55 = vector.shape_cast %54 : vector<8x16x128xbf16> to vector<128x128xbf16>
    %56 = tpu.concatenate %45, %50, %55 in 1 : vector<128x128xbf16>, vector<128x128xbf16>, vector<128x128xbf16> -> vector<128x384xbf16>
    %c2_37 = arith.constant 2 : index
    %c0_38 = arith.constant 0 : index
    %c0_39 = arith.constant 0 : index
    %57 = vector.load %arg3[%c2_37, %c0_38, %c0_39] : memref<3x384x128xbf16, #tpu.memory_space<vmem>>, vector<1x384x128xbf16>
    %58 = vector.shape_cast %57 : vector<1x384x128xbf16> to vector<384x128xbf16>
    %cst_40 = arith.constant dense<0.000000e+00> : vector<128x128xf32>
    %59 = tpu.matmul %56, %58, %cst_40 {dimension_numbers = #tpu.dot_dimension_numbers<[1], [0], [0], [1], [0, 0, 1, 1], [], []>} : vector<128x384xbf16>, vector<384x128xbf16>, vector<128x128xf32> -> vector<128x128xf32>
    %60 = arith.addf %40, %59 : vector<128x128xf32>
    %c0_41 = arith.constant 0 : index
    %c0_42 = arith.constant 0 : index
    %61 = vector.load %arg4[%c0_41, %c0_42] : memref<1x128xf32, #tpu.memory_space<vmem>>, vector<1x128xf32>
    %62 = vector.broadcast %61 : vector<1x128xf32> to vector<128x128xf32>
    %63 = arith.mulf %60, %62 : vector<128x128xf32>
    %c0_43 = arith.constant 0 : index
    %c0_44 = arith.constant 0 : index
    %64 = vector.load %arg5[%c0_43, %c0_44] : memref<1x128xf32, #tpu.memory_space<vmem>>, vector<1x128xf32>
    %65 = vector.broadcast %64 : vector<1x128xf32> to vector<128x128xf32>
    %66 = arith.addf %63, %65 : vector<128x128xf32>
    %cst_45 = arith.constant 0.000000e+00 : f32
    %67 = vector.broadcast %cst_45 : f32 to vector<128x128xf32>
    %68 = arith.subf %67, %66 : vector<128x128xf32>
    %69 = math.exp %68 : vector<128x128xf32>
    %cst_46 = arith.constant 1.000000e+00 : f32
    %70 = vector.broadcast %cst_46 : f32 to vector<128x128xf32>
    %71 = arith.addf %70, %69 : vector<128x128xf32>
    %cst_47 = arith.constant 1.000000e+00 : f32
    %72 = vector.broadcast %cst_47 : f32 to vector<128x128xf32>
    %73 = arith.divf %72, %71 : vector<128x128xf32>
    %74 = arith.mulf %66, %73 : vector<128x128xf32>
    %75 = vector.shape_cast %74 : vector<128x128xf32> to vector<1x8x16x128xf32>
    %76 = arith.truncf %75 : vector<1x8x16x128xf32> to vector<1x8x16x128xbf16>
    %c0_48 = arith.constant 0 : index
    %c0_49 = arith.constant 0 : index
    %c0_50 = arith.constant 0 : index
    %c0_51 = arith.constant 0 : index
    %77 = vector.load %arg6[%c0_48, %c0_49, %c0_50, %c0_51] : memref<1x8x16x128xbf16, #tpu.memory_space<vmem>>, vector<1x8x16x128xbf16>
    tpu.vector_store %arg6[%c0_48, %c0_49, %c0_50, %c0_51], %76 {strides = array<i32>} : memref<1x8x16x128xbf16, #tpu.memory_space<vmem>>, vector<1x8x16x128xbf16>,
    return
  }
  func.func @transform_0(%arg0: i32, %arg1: i32) -> (i32, i32, i32, i32) {
    %c0_i32 = arith.constant 0 : i32
    %c0_i32_0 = arith.constant 0 : i32
    %c0_i32_1 = arith.constant 0 : i32
    %c0_i32_2 = arith.constant 0 : i32
    return %arg0, %c0_i32, %c0_i32_0, %c0_i32_1 : i32, i32, i32, i32
  }
  func.func @transform_1(%arg0: i32, %arg1: i32) -> (i32, i32, i32) {
    %c0_i32 = arith.constant 0 : i32
    %c0_i32_0 = arith.constant 0 : i32
    %c0_i32_1 = arith.constant 0 : i32
    %c0_i32_2 = arith.constant 0 : i32
    return %c0_i32, %c0_i32_0, %c0_i32_1 : i32, i32, i32
  }
  func.func @transform_2(%arg0: i32, %arg1: i32) -> (i32, i32) {
    %c0_i32 = arith.constant 0 : i32
    %c0_i32_0 = arith.constant 0 : i32
    %c0_i32_1 = arith.constant 0 : i32
    return %c0_i32, %c0_i32_0 : i32, i32
  }
  func.func @transform_3(%arg0: i32, %arg1: i32) -> (i32, i32) {
    %c0_i32 = arith.constant 0 : i32
    %c0_i32_0 = arith.constant 0 : i32
    %c0_i32_1 = arith.constant 0 : i32
    return %c0_i32, %c0_i32_0 : i32, i32
  }
  func.func @transform_4(%arg0: i32, %arg1: i32) -> (i32, i32, i32, i32) {
    %c0_i32 = arith.constant 0 : i32
    %c0_i32_0 = arith.constant 0 : i32
    %c0_i32_1 = arith.constant 0 : i32
    return %arg0, %arg1, %c0_i32, %c0_i32_0 : i32, i32, i32, i32
  }
}

</mosaic_0001>

<llo_original>
// kernel: tpu_custom_call.1
$region0: #{tpu_custom_call.1}
  #allocation0 [shape = 'u32[]', space=smem, size = 0x4, offset = 0x4, fixed_abs, tag = 'smem constant byte address 0x4 - core index']
  #allocation1 [shape = 'u32[144,128]{1,0:T(1,128)}', space=vmem, size = 0x12000, scoped, tag = 'internal scratch']
  %s0 = inlined_call_operand.vmem [shape: bf16[2,18,18,128], index: 0, kind: input, shape index: {}]
  %s1 = inlined_call_operand.vmem [shape: bf16[3,384,128], index: 1, kind: input, shape index: {}]
  %s2 = inlined_call_operand.vmem [shape: f32[1,128], index: 2, kind: input, shape index: {}]
  %s3 = inlined_call_operand.vmem [shape: f32[1,128], index: 3, kind: input, shape index: {}]
  %s4 = inlined_call_operand.hbm [shape: bf16[2,16,16,128], index: 4, kind: output, shape index: {}]
  %s5 = sld [smem:[#allocation0]]
  $region49: #{tpu_custom_call.1} parent=0
    _
  %s7 = ssub.s32 1, %s5
  %s8 = scalar_select 0, %s7, %s5
  $region1: #{tpu_custom_call.1} parent=0
    #allocation2 [shape = 'u8[65536]{0}', space=vmem, size = 0x10000, scoped, tag = 'output window, operand 0']
    #allocation3 [shape = 's32[2]{0}', space=sflag, size = 0x8, scoped, tag = 'scoped memory for tpu_custom_call.1']
    %9 = vsyncpa [#allocation3], 0
    %s10 = scalar_lea.sflag [#allocation3], 1
    %11 = vsyncpa %s10, 0
    loop: start=0, step=1, limit=6
    $region2: #{tpu_custom_call.1} parent=1 // loop_pre_header
      _
    $region3: #{tpu_custom_call.1} parent=1 // loop_header
      %s13 = sphi 0, %s17
      %p14 = scmp.ge.s32.totalorder %s13, 6
      %s20 = sphi 0, %s32
      %s21 = sphi 0, %s28
      %s22 = sphi 0, %s20
      %s23 = sphi 0, %s21
      %s24 = sphi 0, %s22
      %s25 = sphi 0, %s23
      %s35 = sphi 0, %s37
      %s38 = sphi 0, %s35
      %s39 = sphi 0, %s38
      %s55 = sphi 0, %s39
      %s59 = sphi 0, %s59
      %s61 = sphi 0, %s59
      %s62 = sphi 0, %s61
      %s76 = sphi 0, %s62
      %s80 = sphi 0, %s80
      %s82 = sphi 0, %s80
      %s83 = sphi 0, %s82
      %s97 = sphi 0, %s83
      %s101 = sphi 0, %s101
      %s103 = sphi 0, %s101
      %s104 = sphi 0, %s103
      %s118 = sphi 0, %s104
      %s126 = sphi 0, %s128
      %s129 = sphi 0, %s126
      %s130 = sphi 0, %s129
      %s146 = sphi 0, %s130
    $region4: #{tpu_custom_call.1} parent=1 // loop_header_branch
      %16 = sbr.rel (%p14) target = $region8
    $region5: #{tpu_custom_call.1} parent=1 // loop_body
      %s18 = ssub.s32 %s13, 1
      %s19 = ssub.s32 %s13, 2
      %s26 = sadd.s32 1, %s21
      %p27 = scmp.ge.s32.totalorder %s26, 2
      %s28 = scalar_select %p27, 0, %s26
      %s29 = sadd.s32 1, %s20
      %s30 = scalar_select %p27, %s29, %s20
      %p31 = scmp.ge.s32.totalorder %s30, 2
      %s32 = scalar_select %p31, 0, %s30
      %s33 = ssub.s32 %s20, %s32
      %p34 = scmp.eq.s32.totalorder %s33, 0
      %s36 = sadd.s32 %s35, 1
      %s37 = scalar_select %p34, %s35, %s36
      %p40 = pneg %p34
      %p41 = scmp.eq.s32.totalorder %s13, 3
      %p42 = por %p40, %p41
      %p43 = scmp.ne.s32.totalorder %s35, %s38
      %p44 = scmp.eq.s32.totalorder %s13, 0
      %p45 = por %p43, %p44
      %p46 = scmp.ne.s32.totalorder %s35, %s38
      %p47 = scmp.eq.s32.totalorder %s18, 3
      %p48 = por %p46, %p47
      %p49 = scmp.ne.s32.totalorder %s38, %s39
      %p50 = scmp.eq.s32.totalorder %s18, 0
      %p51 = por %p49, %p50
      %p52 = scmp.ne.s32.totalorder %s38, %s39
      %p53 = scmp.eq.s32.totalorder %s19, 3
      %p54 = por %p52, %p53
      %p56 = scmp.ne.s32.totalorder %s39, %s55
      %p57 = scmp.eq.s32.totalorder %s19, 0
      %p58 = por %p56, %p57
      %s60 = sadd.s32 %s59, 1
      %p63 = scmp.eq.s32.totalorder %s13, 3
      %p64 = scmp.ne.s32.totalorder %s59, %s61
      %p65 = scmp.eq.s32.totalorder %s13, 0
      %p66 = por %p64, %p65
      %p67 = scmp.ne.s32.totalorder %s59, %s61
      %p68 = scmp.eq.s32.totalorder %s18, 3
      %p69 = por %p67, %p68
      %p70 = scmp.ne.s32.totalorder %s61, %s62
      %p71 = scmp.eq.s32.totalorder %s18, 0
      %p72 = por %p70, %p71
      %p73 = scmp.ne.s32.totalorder %s61, %s62
      %p74 = scmp.eq.s32.totalorder %s19, 3
      %p75 = por %p73, %p74
      %p77 = scmp.ne.s32.totalorder %s62, %s76
      %p78 = scmp.eq.s32.totalorder %s19, 0
      %p79 = por %p77, %p78
      %s81 = sadd.s32 %s80, 1
      %p84 = scmp.eq.s32.totalorder %s13, 3
      %p85 = scmp.ne.s32.totalorder %s80, %s82
      %p86 = scmp.eq.s32.totalorder %s13, 0
      %p87 = por %p85, %p86
      %p88 = scmp.ne.s32.totalorder %s80, %s82
      %p89 = scmp.eq.s32.totalorder %s18, 3
      %p90 = por %p88, %p89
      %p91 = scmp.ne.s32.totalorder %s82, %s83
      %p92 = scmp.eq.s32.totalorder %s18, 0
      %p93 = por %p91, %p92
      %p94 = scmp.ne.s32.totalorder %s82, %s83
      %p95 = scmp.eq.s32.totalorder %s19, 3
      %p96 = por %p94, %p95
      %p98 = scmp.ne.s32.totalorder %s83, %s97
      %p99 = scmp.eq.s32.totalorder %s19, 0
      %p100 = por %p98, %p99
      %s102 = sadd.s32 %s101, 1
      %p105 = scmp.eq.s32.totalorder %s13, 3
      %p106 = scmp.ne.s32.totalorder %s101, %s103
      %p107 = scmp.eq.s32.totalorder %s13, 0
      %p108 = por %p106, %p107
      %p109 = scmp.ne.s32.totalorder %s101, %s103
      %p110 = scmp.eq.s32.totalorder %s18, 3
      %p111 = por %p109, %p110
      %p112 = scmp.ne.s32.totalorder %s103, %s104
      %p113 = scmp.eq.s32.totalorder %s18, 0
      %p114 = por %p112, %p113
      %p115 = scmp.ne.s32.totalorder %s103, %s104
      %p116 = scmp.eq.s32.totalorder %s19, 3
      %p117 = por %p115, %p116
      %p119 = scmp.ne.s32.totalorder %s104, %s118
      %p120 = scmp.eq.s32.totalorder %s19, 0
      %p121 = por %p119, %p120
      %s122 = ssub.s32 %s20, %s32
      %s123 = ssub.s32 %s21, %s28
      %s124 = sor.u32 %s122, %s123
      %p125 = scmp.eq.s32.totalorder %s124, 0
      %s127 = sadd.s32 %s126, 1
      %s128 = scalar_select %p125, %s126, %s127
      %p131 = pneg %p125
      %p132 = scmp.eq.s32.totalorder %s13, 3
      %p133 = por %p131, %p132
      %p134 = scmp.ne.s32.totalorder %s126, %s129
      %p135 = scmp.eq.s32.totalorder %s13, 0
      %p136 = por %p134, %p135
      %p137 = scmp.ne.s32.totalorder %s126, %s129
      %p138 = scmp.eq.s32.totalorder %s18, 3
      %p139 = por %p137, %p138
      %p140 = scmp.ne.s32.totalorder %s129, %s130
      %p141 = scmp.eq.s32.totalorder %s18, 0
      %p142 = por %p140, %p141
      %p143 = scmp.ne.s32.totalorder %s129, %s130
      %p144 = scmp.eq.s32.totalorder %s19, 3
      %p145 = por %p143, %p144
      %p147 = scmp.ne.s32.totalorder %s130, %s146
      %p148 = scmp.eq.s32.totalorder %s19, 0
      %p149 = por %p147, %p148
      %p150 = scmp.le.s32.totalorder 1, %s13
      %p151 = scmp.lt.s32.totalorder %s13, 5
      %p152 = pnand %p150, %p151
      %p153 = pneg %p152
      // Predicated region
      $region9: #{tpu_custom_call.1} parent=5 // pred_check
        _
      $region10: #{tpu_custom_call.1} parent=5 // pred_check_branch
        %155 = sbr.rel (%p152) target = $region12
      $region11: #{tpu_custom_call.1} parent=5 // pred_region
        %s156 = ssub.s32 %s13, 1
        // Predicated region
        $region13: #{tpu_custom_call.1} parent=11 // pred_check
          %p157 = pneg %p72
        $region14: #{tpu_custom_call.1} parent=11 // pred_check_branch
          %159 = sbr.rel (%p157) target = $region16
        $region15: #{tpu_custom_call.1} parent=11 // pred_region
          _
        $region16: #{tpu_custom_call.1} parent=11 // pred_fallthru
          _
        // Predicated region
        $region17: #{tpu_custom_call.1} parent=11 // pred_check
          %p160 = pneg %p93
        $region18: #{tpu_custom_call.1} parent=11 // pred_check_branch
          %162 = sbr.rel (%p160) target = $region20
        $region19: #{tpu_custom_call.1} parent=11 // pred_region
          _
        $region20: #{tpu_custom_call.1} parent=11 // pred_fallthru
          _
        // Predicated region
        $region21: #{tpu_custom_call.1} parent=11 // pred_check
          %p163 = pneg %p114
        $region22: #{tpu_custom_call.1} parent=11 // pred_check_branch
          %165 = sbr.rel (%p163) target = $region24
        $region23: #{tpu_custom_call.1} parent=11 // pred_region
          _
        $region24: #{tpu_custom_call.1} parent=11 // pred_fallthru
          _
      $region12: #{tpu_custom_call.1} parent=5 // pred_fallthru
        _
      %p166 = scmp.lt.s32.totalorder %s13, 4
      // Predicated region
      $region25: #{tpu_custom_call.1} parent=5 // pred_check
        %p167 = pneg %p166
      $region26: #{tpu_custom_call.1} parent=5 // pred_check_branch
        %169 = sbr.rel (%p167) target = $region28
      $region27: #{tpu_custom_call.1} parent=5 // pred_region
        // Predicated region
        $region29: #{tpu_custom_call.1} parent=27 // pred_check
          %p170 = pneg %p45
        $region30: #{tpu_custom_call.1} parent=27 // pred_check_branch
          %172 = sbr.rel (%p170) target = $region32
        $region31: #{tpu_custom_call.1} parent=27 // pred_region
          %p173 = scmp.lt.s32.totalorder %s20, 1
          %s174 = scalar_select %p173, %s20, 1
          %s175 = smul.addr %s174, 54
          %s176 = smul.addr %s175, 4
          %s177 = scalar_lea.vmem %s0, %s176
        $region32: #{tpu_custom_call.1} parent=27 // pred_fallthru
          _
      $region28: #{tpu_custom_call.1} parent=5 // pred_fallthru
        _
      %p178 = scmp.le.s32.totalorder 1, %s13
      %p179 = scmp.lt.s32.totalorder %s13, 5
      %p180 = pnand %p178, %p179
      %p181 = pneg %p180
      // Predicated region
      $region33: #{tpu_custom_call.1} parent=5 // pred_check
        _
      $region34: #{tpu_custom_call.1} parent=5 // pred_check_branch
        %183 = sbr.rel (%p180) target = $region36
      $region35: #{tpu_custom_call.1} parent=5 // pred_region
        %s184 = ssub.s32 %s13, 1
        %p185 = scmp.lt.s32.totalorder %s22, 1
        %s186 = scalar_select %p185, %s22, 1
        %s187 = smul.addr %s186, 54
        %s188 = smul.addr %s187, 4
        %s189 = scalar_lea.vmem %s0, %s188
        %p190 = pneg %p51
        %p191 = pneg %p48
        %p192 = pneg %p72
        %p193 = pneg %p69
        %p194 = pneg %p93
        %p195 = pneg %p90
        %p196 = pneg %p114
        %p197 = pneg %p111
        %p198 = pneg %p142
        %p199 = pneg %p139
        %s200 = sand.u32 %s129, 1
        %s201 = scalar_lea.sflag [#allocation3], %s200
        %s202 = sand.u32 %s129, 1
        %s203 = smul.addr %s202, 64
        %s204 = scalar_lea.vmem [#allocation2], %s203
        %p205 = scmp.lt.s32.totalorder %s22, 1
        %s206 = scalar_select %p205, %s22, 1
        %s207 = smul.addr %s206, 54
        %s208 = smul.addr %s207, 4
        %s209 = scalar_lea.vmem %s0, %s208
        %s210 = smul.u32 8, %s23
        %s212 = smul.u32 %s23, 8
        %s213 = smul.u32 %s212, 3
        %s214 = smul.addr %s213, 4
        %s215 = scalar_lea.vmem %s209, %s214
        %v216 = vld [vmem:[%s215] sm:$0xf]
        %v217 = vld [vmem:[%s215 + $0x4] sm:$0xf]
        %v218 = vld [vmem:[%s215 + $0xc] sm:$0xf]
        %v219 = vld [vmem:[%s215 + $0x10] sm:$0xf]
        %v220 = vld [vmem:[%s215 + $0x18] sm:$0xf]
        %v221 = vld [vmem:[%s215 + $0x1c] sm:$0xf]
        %v222 = vld [vmem:[%s215 + $0x24] sm:$0xf]
        %v223 = vld [vmem:[%s215 + $0x28] sm:$0xf]
        %v224 = vld [vmem:[%s215 + $0x30] sm:$0xf]
        %v225 = vld [vmem:[%s215 + $0x34] sm:$0xf]
        %v226 = vld [vmem:[%s215 + $0x3c] sm:$0xf]
        %v227 = vld [vmem:[%s215 + $0x40] sm:$0xf]
        %v228 = vld [vmem:[%s215 + $0x48] sm:$0xf]
        %v229 = vld [vmem:[%s215 + $0x4c] sm:$0xf]
        %v230 = vld [vmem:[%s215 + $0x54] sm:$0xf]
        %v231 = vld [vmem:[%s215 + $0x58] sm:$0xf]
        %s232 = sadd.s32 %s212, 1
        %s233 = smul.u32 %s232, 3
        %s234 = smul.addr %s233, 4
        %s235 = scalar_lea.vmem %s209, %s234
        %v236 = vld [vmem:[%s235] sm:$0xf]
        %v237 = vld [vmem:[%s235 + $0x4] sm:$0xf]
        %v238 = vld [vmem:[%s235 + $0xc] sm:$0xf]
        %v239 = vld [vmem:[%s235 + $0x10] sm:$0xf]
        %v240 = vld [vmem:[%s235 + $0x18] sm:$0xf]
        %v241 = vld [vmem:[%s235 + $0x1c] sm:$0xf]
        %v242 = vld [vmem:[%s235 + $0x24] sm:$0xf]
        %v243 = vld [vmem:[%s235 + $0x28] sm:$0xf]
        %v244 = vld [vmem:[%s235 + $0x30] sm:$0xf]
        %v245 = vld [vmem:[%s235 + $0x34] sm:$0xf]
        %v246 = vld [vmem:[%s235 + $0x3c] sm:$0xf]
        %v247 = vld [vmem:[%s235 + $0x40] sm:$0xf]
        %v248 = vld [vmem:[%s235 + $0x48] sm:$0xf]
        %v249 = vld [vmem:[%s235 + $0x4c] sm:$0xf]
        %v250 = vld [vmem:[%s235 + $0x54] sm:$0xf]
        %v251 = vld [vmem:[%s235 + $0x58] sm:$0xf]
        %s252 = sadd.s32 %s212, 2
        %s253 = smul.u32 %s252, 3
        %s254 = smul.addr %s253, 4
        %s255 = scalar_lea.vmem %s209, %s254
        %v256 = vld [vmem:[%s255] sm:$0xf]
        %v257 = vld [vmem:[%s255 + $0x4] sm:$0xf]
        %v258 = vld [vmem:[%s255 + $0xc] sm:$0xf]
        %v259 = vld [vmem:[%s255 + $0x10] sm:$0xf]
        %v260 = vld [vmem:[%s255 + $0x18] sm:$0xf]
        %v261 = vld [vmem:[%s255 + $0x1c] sm:$0xf]
        %v262 = vld [vmem:[%s255 + $0x24] sm:$0xf]
        %v263 = vld [vmem:[%s255 + $0x28] sm:$0xf]
        %v264 = vld [vmem:[%s255 + $0x30] sm:$0xf]
        %v265 = vld [vmem:[%s255 + $0x34] sm:$0xf]
        %v266 = vld [vmem:[%s255 + $0x3c] sm:$0xf]
        %v267 = vld [vmem:[%s255 + $0x40] sm:$0xf]
        %v268 = vld [vmem:[%s255 + $0x48] sm:$0xf]
        %v269 = vld [vmem:[%s255 + $0x4c] sm:$0xf]
        %v270 = vld [vmem:[%s255 + $0x54] sm:$0xf]
        %v271 = vld [vmem:[%s255 + $0x58] sm:$0xf]
        %v288 = vunpack.c.l.b16 %v216
        %v289 = vunpack.c.l.b16 %v217
        %v290 = vunpack.c.l.b16 %v218
        %v291 = vunpack.c.l.b16 %v219
        %v292 = vunpack.c.l.b16 %v220
        %v293 = vunpack.c.l.b16 %v221
        %v294 = vunpack.c.l.b16 %v222
        %v295 = vunpack.c.l.b16 %v223
        %v296 = vunpack.c.l.b16 %v224
        %v297 = vunpack.c.l.b16 %v225
        %v298 = vunpack.c.l.b16 %v226
        %v299 = vunpack.c.l.b16 %v227
        %v300 = vunpack.c.l.b16 %v228
        %v301 = vunpack.c.l.b16 %v229
        %v302 = vunpack.c.l.b16 %v230
        %v303 = vunpack.c.l.b16 %v231
        %v304 = vpack.c.b16 %v289, %v288
        %v305 = vpack.c.b16 %v291, %v290
        %v306 = vpack.c.b16 %v293, %v292
        %v307 = vpack.c.b16 %v295, %v294
        %v308 = vpack.c.b16 %v297, %v296
        %v309 = vpack.c.b16 %v299, %v298
        %v310 = vpack.c.b16 %v301, %v300
        %v311 = vpack.c.b16 %v303, %v302
        %v336 = vunpack.c.l.b16 %v236
        %v337 = vunpack.c.l.b16 %v237
        %v338 = vunpack.c.l.b16 %v238
        %v339 = vunpack.c.l.b16 %v239
        %v340 = vunpack.c.l.b16 %v240
        %v341 = vunpack.c.l.b16 %v241
        %v342 = vunpack.c.l.b16 %v242
        %v343 = vunpack.c.l.b16 %v243
        %v344 = vunpack.c.l.b16 %v244
        %v345 = vunpack.c.l.b16 %v245
        %v346 = vunpack.c.l.b16 %v246
        %v347 = vunpack.c.l.b16 %v247
        %v348 = vunpack.c.l.b16 %v248
        %v349 = vunpack.c.l.b16 %v249
        %v350 = vunpack.c.l.b16 %v250
        %v351 = vunpack.c.l.b16 %v251
        %v352 = vpack.c.b16 %v337, %v336
        %v353 = vpack.c.b16 %v339, %v338
        %v354 = vpack.c.b16 %v341, %v340
        %v355 = vpack.c.b16 %v343, %v342
        %v356 = vpack.c.b16 %v345, %v344
        %v357 = vpack.c.b16 %v347, %v346
        %v358 = vpack.c.b16 %v349, %v348
        %v359 = vpack.c.b16 %v351, %v350
        %v384 = vunpack.c.l.b16 %v256
        %v385 = vunpack.c.l.b16 %v257
        %v386 = vunpack.c.l.b16 %v258
        %v387 = vunpack.c.l.b16 %v259
        %v388 = vunpack.c.l.b16 %v260
        %v389 = vunpack.c.l.b16 %v261
        %v390 = vunpack.c.l.b16 %v262
        %v391 = vunpack.c.l.b16 %v263
        %v392 = vunpack.c.l.b16 %v264
        %v393 = vunpack.c.l.b16 %v265
        %v394 = vunpack.c.l.b16 %v266
        %v395 = vunpack.c.l.b16 %v267
        %v396 = vunpack.c.l.b16 %v268
        %v397 = vunpack.c.l.b16 %v269
        %v398 = vunpack.c.l.b16 %v270
        %v399 = vunpack.c.l.b16 %v271
        %v400 = vpack.c.b16 %v385, %v384
        %v401 = vpack.c.b16 %v387, %v386
        %v402 = vpack.c.b16 %v389, %v388
        %v403 = vpack.c.b16 %v391, %v390
        %v404 = vpack.c.b16 %v393, %v392
        %v405 = vpack.c.b16 %v395, %v394
        %v406 = vpack.c.b16 %v397, %v396
        %v407 = vpack.c.b16 %v399, %v398
        %v416 = vld [vmem:[%s1] sm:$0xf]
        %v417 = vld [vmem:[%s1 + $0x4] sm:$0xf]
        %v418 = vld [vmem:[%s1 + $0x8] sm:$0xf]
        %v419 = vld [vmem:[%s1 + $0xc] sm:$0xf]
        %v420 = vld [vmem:[%s1 + $0x10] sm:$0xf]
        %v421 = vld [vmem:[%s1 + $0x14] sm:$0xf]
        %v422 = vld [vmem:[%s1 + $0x18] sm:$0xf]
        %v423 = vld [vmem:[%s1 + $0x1c] sm:$0xf]
        %v424 = vld [vmem:[%s1 + $0x20] sm:$0xf]
        %v425 = vld [vmem:[%s1 + $0x24] sm:$0xf]
        %v426 = vld [vmem:[%s1 + $0x28] sm:$0xf]
        %v427 = vld [vmem:[%s1 + $0x2c] sm:$0xf]
        %v428 = vld [vmem:[%s1 + $0x30] sm:$0xf]
        %v429 = vld [vmem:[%s1 + $0x34] sm:$0xf]
        %v430 = vld [vmem:[%s1 + $0x38] sm:$0xf]
        %v431 = vld [vmem:[%s1 + $0x3c] sm:$0xf]
        %v432 = vld [vmem:[%s1 + $0x40] sm:$0xf]
        %v433 = vld [vmem:[%s1 + $0x44] sm:$0xf]
        %v434 = vld [vmem:[%s1 + $0x48] sm:$0xf]
        %v435 = vld [vmem:[%s1 + $0x4c] sm:$0xf]
        %v436 = vld [vmem:[%s1 + $0x50] sm:$0xf]
        %v437 = vld [vmem:[%s1 + $0x54] sm:$0xf]
        %v438 = vld [vmem:[%s1 + $0x58] sm:$0xf]
        %v439 = vld [vmem:[%s1 + $0x5c] sm:$0xf]
        %v440 = vld [vmem:[%s1 + $0x60] sm:$0xf]
        %v441 = vld [vmem:[%s1 + $0x64] sm:$0xf]
        %v442 = vld [vmem:[%s1 + $0x68] sm:$0xf]
        %v443 = vld [vmem:[%s1 + $0x6c] sm:$0xf]
        %v444 = vld [vmem:[%s1 + $0x70] sm:$0xf]
        %v445 = vld [vmem:[%s1 + $0x74] sm:$0xf]
        %v446 = vld [vmem:[%s1 + $0x78] sm:$0xf]
        %v447 = vld [vmem:[%s1 + $0x7c] sm:$0xf]
        %v448 = vld [vmem:[%s1 + $0x80] sm:$0xf]
        %v449 = vld [vmem:[%s1 + $0x84] sm:$0xf]
        %v450 = vld [vmem:[%s1 + $0x88] sm:$0xf]
        %v451 = vld [vmem:[%s1 + $0x8c] sm:$0xf]
        %v452 = vld [vmem:[%s1 + $0x90] sm:$0xf]
        %v453 = vld [vmem:[%s1 + $0x94] sm:$0xf]
        %v454 = vld [vmem:[%s1 + $0x98] sm:$0xf]
        %v455 = vld [vmem:[%s1 + $0x9c] sm:$0xf]
        %v456 = vld [vmem:[%s1 + $0xa0] sm:$0xf]
        %v457 = vld [vmem:[%s1 + $0xa4] sm:$0xf]
        %v458 = vld [vmem:[%s1 + $0xa8] sm:$0xf]
        %v459 = vld [vmem:[%s1 + $0xac] sm:$0xf]
        %v460 = vld [vmem:[%s1 + $0xb0] sm:$0xf]
        %v461 = vld [vmem:[%s1 + $0xb4] sm:$0xf]
        %v462 = vld [vmem:[%s1 + $0xb8] sm:$0xf]
        %v463 = vld [vmem:[%s1 + $0xbc] sm:$0xf]
        %v464 = vld [vmem:[%s215 + $0x8] sm:$0x1]
        %v465 = vld [vmem:[%s215 + $0x14] sm:$0x1]
        %v466 = vld [vmem:[%s215 + $0x20] sm:$0x1]
        %v467 = vld [vmem:[%s215 + $0x2c] sm:$0x1]
        %v468 = vld [vmem:[%s215 + $0x38] sm:$0x1]
        %v469 = vld [vmem:[%s215 + $0x44] sm:$0x1]
        %v470 = vld [vmem:[%s215 + $0x50] sm:$0x1]
        %v471 = vld [vmem:[%s215 + $0x5c] sm:$0x1]
        %vm472 = vsmask.f32 3328
        %vm473 = vsmask.f32 7440
        %vm474 = vmor %vm472, %vm473
        %v476 = vshrl.u32 %v216, 16
        %v478 = vrot.slane %v476, 4
        %v479 = vshll.u32 %v216, 16
        %v481 = vrot.slane %v479, 5
        %v482 = vor.u32 %v478, %v481
        %v483 = vrot.slane %v482, 4
        %v485 = vshll.u32 %v217, 16
        %v487 = vrot.slane %v485, 5
        %v488 = vsel %vm474, %v483, %v487
        %v489 = vshrl.u32 %v217, 16
        %v491 = vrot.slane %v489, 4
        %v492 = vor.u32 %v491, %v487
        %v493 = vrot.slane %v492, 4
        %v495 = vshll.u32 %v464, 16
        %v497 = vrot.slane %v495, 5
        %v498 = vsel %vm474, %v493, %v497
        %v500 = vshrl.u32 %v218, 16
        %v502 = vrot.slane %v500, 4
        %v503 = vshll.u32 %v218, 16
        %v505 = vrot.slane %v503, 5
        %v506 = vor.u32 %v502, %v505
        %v507 = vrot.slane %v506, 4
        %v509 = vshll.u32 %v219, 16
        %v511 = vrot.slane %v509, 5
        %v512 = vsel %vm474, %v507, %v511
        %v513 = vshrl.u32 %v219, 16
        %v515 = vrot.slane %v513, 4
        %v516 = vor.u32 %v515, %v511
        %v517 = vrot.slane %v516, 4
        %v519 = vshll.u32 %v465, 16
        %v521 = vrot.slane %v519, 5
        %v522 = vsel %vm474, %v517, %v521
        %v524 = vshrl.u32 %v220, 16
        %v526 = vrot.slane %v524, 4
        %v527 = vshll.u32 %v220, 16
        %v529 = vrot.slane %v527, 5
        %v530 = vor.u32 %v526, %v529
        %v531 = vrot.slane %v530, 4
        %v533 = vshll.u32 %v221, 16
        %v535 = vrot.slane %v533, 5
        %v536 = vsel %vm474, %v531, %v535
        %v537 = vshrl.u32 %v221, 16
        %v539 = vrot.slane %v537, 4
        %v540 = vor.u32 %v539, %v535
        %v541 = vrot.slane %v540, 4
        %v543 = vshll.u32 %v466, 16
        %v545 = vrot.slane %v543, 5
        %v546 = vsel %vm474, %v541, %v545
        %v548 = vshrl.u32 %v222, 16
        %v550 = vrot.slane %v548, 4
        %v551 = vshll.u32 %v222, 16
        %v553 = vrot.slane %v551, 5
        %v554 = vor.u32 %v550, %v553
        %v555 = vrot.slane %v554, 4
        %v557 = vshll.u32 %v223, 16
        %v559 = vrot.slane %v557, 5
        %v560 = vsel %vm474, %v555, %v559
        %v561 = vshrl.u32 %v223, 16
        %v563 = vrot.slane %v561, 4
        %v564 = vor.u32 %v563, %v559
        %v565 = vrot.slane %v564, 4
        %v567 = vshll.u32 %v467, 16
        %v569 = vrot.slane %v567, 5
        %v570 = vsel %vm474, %v565, %v569
        %v572 = vshrl.u32 %v224, 16
        %v574 = vrot.slane %v572, 4
        %v575 = vshll.u32 %v224, 16
        %v577 = vrot.slane %v575, 5
        %v578 = vor.u32 %v574, %v577
        %v579 = vrot.slane %v578, 4
        %v581 = vshll.u32 %v225, 16
        %v583 = vrot.slane %v581, 5
        %v584 = vsel %vm474, %v579, %v583
        %v585 = vshrl.u32 %v225, 16
        %v587 = vrot.slane %v585, 4
        %v588 = vor.u32 %v587, %v583
        %v589 = vrot.slane %v588, 4
        %v591 = vshll.u32 %v468, 16
        %v593 = vrot.slane %v591, 5
        %v594 = vsel %vm474, %v589, %v593
        %v596 = vshrl.u32 %v226, 16
        %v598 = vrot.slane %v596, 4
        %v599 = vshll.u32 %v226, 16
        %v601 = vrot.slane %v599, 5
        %v602 = vor.u32 %v598, %v601
        %v603 = vrot.slane %v602, 4
        %v605 = vshll.u32 %v227, 16
        %v607 = vrot.slane %v605, 5
        %v608 = vsel %vm474, %v603, %v607
        %v609 = vshrl.u32 %v227, 16
        %v611 = vrot.slane %v609, 4
        %v612 = vor.u32 %v611, %v607
        %v613 = vrot.slane %v612, 4
        %v615 = vshll.u32 %v469, 16
        %v617 = vrot.slane %v615, 5
        %v618 = vsel %vm474, %v613, %v617
        %v620 = vshrl.u32 %v228, 16
        %v622 = vrot.slane %v620, 4
        %v623 = vshll.u32 %v228, 16
        %v625 = vrot.slane %v623, 5
        %v626 = vor.u32 %v622, %v625
        %v627 = vrot.slane %v626, 4
        %v629 = vshll.u32 %v229, 16
        %v631 = vrot.slane %v629, 5
        %v632 = vsel %vm474, %v627, %v631
        %v633 = vshrl.u32 %v229, 16
        %v635 = vrot.slane %v633, 4
        %v636 = vor.u32 %v635, %v631
        %v637 = vrot.slane %v636, 4
        %v639 = vshll.u32 %v470, 16
        %v641 = vrot.slane %v639, 5
        %v642 = vsel %vm474, %v637, %v641
        %v644 = vshrl.u32 %v230, 16
        %v646 = vrot.slane %v644, 4
        %v647 = vshll.u32 %v230, 16
        %v649 = vrot.slane %v647, 5
        %v650 = vor.u32 %v646, %v649
        %v651 = vrot.slane %v650, 4
        %v653 = vshll.u32 %v231, 16
        %v655 = vrot.slane %v653, 5
        %v656 = vsel %vm474, %v651, %v655
        %v657 = vshrl.u32 %v231, 16
        %v659 = vrot.slane %v657, 4
        %v660 = vor.u32 %v659, %v655
        %v661 = vrot.slane %v660, 4
        %v663 = vshll.u32 %v471, 16
        %v665 = vrot.slane %v663, 5
        %v666 = vsel %vm474, %v661, %v665
        %v667 = vld [vmem:[%s235 + $0x8] sm:$0x1]
        %v668 = vld [vmem:[%s235 + $0x14] sm:$0x1]
        %v669 = vld [vmem:[%s235 + $0x20] sm:$0x1]
        %v670 = vld [vmem:[%s235 + $0x2c] sm:$0x1]
        %v671 = vld [vmem:[%s235 + $0x38] sm:$0x1]
        %v672 = vld [vmem:[%s235 + $0x44] sm:$0x1]
        %v673 = vld [vmem:[%s235 + $0x50] sm:$0x1]
        %v674 = vld [vmem:[%s235 + $0x5c] sm:$0x1]
        %v676 = vshrl.u32 %v236, 16
        %v678 = vrot.slane %v676, 4
        %v679 = vshll.u32 %v236, 16
        %v681 = vrot.slane %v679, 5
        %v682 = vor.u32 %v678, %v681
        %v683 = vrot.slane %v682, 4
        %v685 = vshll.u32 %v237, 16
        %v687 = vrot.slane %v685, 5
        %v688 = vsel %vm474, %v683, %v687
        %v689 = vshrl.u32 %v237, 16
        %v691 = vrot.slane %v689, 4
        %v692 = vor.u32 %v691, %v687
        %v693 = vrot.slane %v692, 4
        %v695 = vshll.u32 %v667, 16
        %v697 = vrot.slane %v695, 5
        %v698 = vsel %vm474, %v693, %v697
        %v700 = vshrl.u32 %v238, 16
        %v702 = vrot.slane %v700, 4
        %v703 = vshll.u32 %v238, 16
        %v705 = vrot.slane %v703, 5
        %v706 = vor.u32 %v702, %v705
        %v707 = vrot.slane %v706, 4
        %v709 = vshll.u32 %v239, 16
        %v711 = vrot.slane %v709, 5
        %v712 = vsel %vm474, %v707, %v711
        %v713 = vshrl.u32 %v239, 16
        %v715 = vrot.slane %v713, 4
        %v716 = vor.u32 %v715, %v711
        %v717 = vrot.slane %v716, 4
        %v719 = vshll.u32 %v668, 16
        %v721 = vrot.slane %v719, 5
        %v722 = vsel %vm474, %v717, %v721
        %v724 = vshrl.u32 %v240, 16
        %v726 = vrot.slane %v724, 4
        %v727 = vshll.u32 %v240, 16
        %v729 = vrot.slane %v727, 5
        %v730 = vor.u32 %v726, %v729
        %v731 = vrot.slane %v730, 4
        %v733 = vshll.u32 %v241, 16
        %v735 = vrot.slane %v733, 5
        %v736 = vsel %vm474, %v731, %v735
        %v737 = vshrl.u32 %v241, 16
        %v739 = vrot.slane %v737, 4
        %v740 = vor.u32 %v739, %v735
        %v741 = vrot.slane %v740, 4
        %v743 = vshll.u32 %v669, 16
        %v745 = vrot.slane %v743, 5
        %v746 = vsel %vm474, %v741, %v745
        %v748 = vshrl.u32 %v242, 16
        %v750 = vrot.slane %v748, 4
        %v751 = vshll.u32 %v242, 16
        %v753 = vrot.slane %v751, 5
        %v754 = vor.u32 %v750, %v753
        %v755 = vrot.slane %v754, 4
        %v757 = vshll.u32 %v243, 16
        %v759 = vrot.slane %v757, 5
        %v760 = vsel %vm474, %v755, %v759
        %v761 = vshrl.u32 %v243, 16
        %v763 = vrot.slane %v761, 4
        %v764 = vor.u32 %v763, %v759
        %v765 = vrot.slane %v764, 4
        %v767 = vshll.u32 %v670, 16
        %v769 = vrot.slane %v767, 5
        %v770 = vsel %vm474, %v765, %v769
        %v772 = vshrl.u32 %v244, 16
        %v774 = vrot.slane %v772, 4
        %v775 = vshll.u32 %v244, 16
        %v777 = vrot.slane %v775, 5
        %v778 = vor.u32 %v774, %v777
        %v779 = vrot.slane %v778, 4
        %v781 = vshll.u32 %v245, 16
        %v783 = vrot.slane %v781, 5
        %v784 = vsel %vm474, %v779, %v783
        %v785 = vshrl.u32 %v245, 16
        %v787 = vrot.slane %v785, 4
        %v788 = vor.u32 %v787, %v783
        %v789 = vrot.slane %v788, 4
        %v791 = vshll.u32 %v671, 16
        %v793 = vrot.slane %v791, 5
        %v794 = vsel %vm474, %v789, %v793
        %v796 = vshrl.u32 %v246, 16
        %v798 = vrot.slane %v796, 4
        %v799 = vshll.u32 %v246, 16
        %v801 = vrot.slane %v799, 5
        %v802 = vor.u32 %v798, %v801
        %v803 = vrot.slane %v802, 4
        %v805 = vshll.u32 %v247, 16
        %v807 = vrot.slane %v805, 5
        %v808 = vsel %vm474, %v803, %v807
        %v809 = vshrl.u32 %v247, 16
        %v811 = vrot.slane %v809, 4
        %v812 = vor.u32 %v811, %v807
        %v813 = vrot.slane %v812, 4
        %v815 = vshll.u32 %v672, 16
        %v817 = vrot.slane %v815, 5
        %v818 = vsel %vm474, %v813, %v817
        %v820 = vshrl.u32 %v248, 16
        %v822 = vrot.slane %v820, 4
        %v823 = vshll.u32 %v248, 16
        %v825 = vrot.slane %v823, 5
        %v826 = vor.u32 %v822, %v825
        %v827 = vrot.slane %v826, 4
        %v829 = vshll.u32 %v249, 16
        %v831 = vrot.slane %v829, 5
        %v832 = vsel %vm474, %v827, %v831
        %v833 = vshrl.u32 %v249, 16
        %v835 = vrot.slane %v833, 4
        %v836 = vor.u32 %v835, %v831
        %v837 = vrot.slane %v836, 4
        %v839 = vshll.u32 %v673, 16
        %v841 = vrot.slane %v839, 5
        %v842 = vsel %vm474, %v837, %v841
        %v844 = vshrl.u32 %v250, 16
        %v846 = vrot.slane %v844, 4
        %v847 = vshll.u32 %v250, 16
        %v849 = vrot.slane %v847, 5
        %v850 = vor.u32 %v846, %v849
        %v851 = vrot.slane %v850, 4
        %v853 = vshll.u32 %v251, 16
        %v855 = vrot.slane %v853, 5
        %v856 = vsel %vm474, %v851, %v855
        %v857 = vshrl.u32 %v251, 16
        %v859 = vrot.slane %v857, 4
        %v860 = vor.u32 %v859, %v855
        %v861 = vrot.slane %v860, 4
        %v863 = vshll.u32 %v674, 16
        %v865 = vrot.slane %v863, 5
        %v866 = vsel %vm474, %v861, %v865
        %v867 = vld [vmem:[%s255 + $0x8] sm:$0x1]
        %v868 = vld [vmem:[%s255 + $0x14] sm:$0x1]
        %v869 = vld [vmem:[%s255 + $0x20] sm:$0x1]
        %v870 = vld [vmem:[%s255 + $0x2c] sm:$0x1]
        %v871 = vld [vmem:[%s255 + $0x38] sm:$0x1]
        %v872 = vld [vmem:[%s255 + $0x44] sm:$0x1]
        %v873 = vld [vmem:[%s255 + $0x50] sm:$0x1]
        %v874 = vld [vmem:[%s255 + $0x5c] sm:$0x1]
        %v876 = vshrl.u32 %v256, 16
        %v878 = vrot.slane %v876, 4
        %v879 = vshll.u32 %v256, 16
        %v881 = vrot.slane %v879, 5
        %v882 = vor.u32 %v878, %v881
        %v883 = vrot.slane %v882, 4
        %v885 = vshll.u32 %v257, 16
        %v887 = vrot.slane %v885, 5
        %v888 = vsel %vm474, %v883, %v887
        %v889 = vshrl.u32 %v257, 16
        %v891 = vrot.slane %v889, 4
        %v892 = vor.u32 %v891, %v887
        %v893 = vrot.slane %v892, 4
        %v895 = vshll.u32 %v867, 16
        %v897 = vrot.slane %v895, 5
        %v898 = vsel %vm474, %v893, %v897
        %v900 = vshrl.u32 %v258, 16
        %v902 = vrot.slane %v900, 4
        %v903 = vshll.u32 %v258, 16
        %v905 = vrot.slane %v903, 5
        %v906 = vor.u32 %v902, %v905
        %v907 = vrot.slane %v906, 4
        %v909 = vshll.u32 %v259, 16
        %v911 = vrot.slane %v909, 5
        %v912 = vsel %vm474, %v907, %v911
        %v913 = vshrl.u32 %v259, 16
        %v915 = vrot.slane %v913, 4
        %v916 = vor.u32 %v915, %v911
        %v917 = vrot.slane %v916, 4
        %v919 = vshll.u32 %v868, 16
        %v921 = vrot.slane %v919, 5
        %v922 = vsel %vm474, %v917, %v921
        %v924 = vshrl.u32 %v260, 16
        %v926 = vrot.slane %v924, 4
        %v927 = vshll.u32 %v260, 16
        %v929 = vrot.slane %v927, 5
        %v930 = vor.u32 %v926, %v929
        %v931 = vrot.slane %v930, 4
        %v933 = vshll.u32 %v261, 16
        %v935 = vrot.slane %v933, 5
        %v936 = vsel %vm474, %v931, %v935
        %v937 = vshrl.u32 %v261, 16
        %v939 = vrot.slane %v937, 4
        %v940 = vor.u32 %v939, %v935
        %v941 = vrot.slane %v940, 4
        %v943 = vshll.u32 %v869, 16
        %v945 = vrot.slane %v943, 5
        %v946 = vsel %vm474, %v941, %v945
        %v948 = vshrl.u32 %v262, 16
        %v950 = vrot.slane %v948, 4
        %v951 = vshll.u32 %v262, 16
        %v953 = vrot.slane %v951, 5
        %v954 = vor.u32 %v950, %v953
        %v955 = vrot.slane %v954, 4
        %v957 = vshll.u32 %v263, 16
        %v959 = vrot.slane %v957, 5
        %v960 = vsel %vm474, %v955, %v959
        %v961 = vshrl.u32 %v263, 16
        %v963 = vrot.slane %v961, 4
        %v964 = vor.u32 %v963, %v959
        %v965 = vrot.slane %v964, 4
        %v967 = vshll.u32 %v870, 16
        %v969 = vrot.slane %v967, 5
        %v970 = vsel %vm474, %v965, %v969
        %v972 = vshrl.u32 %v264, 16
        %v974 = vrot.slane %v972, 4
        %v975 = vshll.u32 %v264, 16
        %v977 = vrot.slane %v975, 5
        %v978 = vor.u32 %v974, %v977
        %v979 = vrot.slane %v978, 4
        %v981 = vshll.u32 %v265, 16
        %v983 = vrot.slane %v981, 5
        %v984 = vsel %vm474, %v979, %v983
        %v985 = vshrl.u32 %v265, 16
        %v987 = vrot.slane %v985, 4
        %v988 = vor.u32 %v987, %v983
        %v989 = vrot.slane %v988, 4
        %v991 = vshll.u32 %v871, 16
        %v993 = vrot.slane %v991, 5
        %v994 = vsel %vm474, %v989, %v993
        %v996 = vshrl.u32 %v266, 16
        %v998 = vrot.slane %v996, 4
        %v999 = vshll.u32 %v266, 16
        %v1001 = vrot.slane %v999, 5
        %v1002 = vor.u32 %v998, %v1001
        %v1003 = vrot.slane %v1002, 4
        %v1005 = vshll.u32 %v267, 16
        %v1007 = vrot.slane %v1005, 5
        %v1008 = vsel %vm474, %v1003, %v1007
        %v1009 = vshrl.u32 %v267, 16
        %v1011 = vrot.slane %v1009, 4
        %v1012 = vor.u32 %v1011, %v1007
        %v1013 = vrot.slane %v1012, 4
        %v1015 = vshll.u32 %v872, 16
        %v1017 = vrot.slane %v1015, 5
        %v1018 = vsel %vm474, %v1013, %v1017
        %v1020 = vshrl.u32 %v268, 16
        %v1022 = vrot.slane %v1020, 4
        %v1023 = vshll.u32 %v268, 16
        %v1025 = vrot.slane %v1023, 5
        %v1026 = vor.u32 %v1022, %v1025
        %v1027 = vrot.slane %v1026, 4
        %v1029 = vshll.u32 %v269, 16
        %v1031 = vrot.slane %v1029, 5
        %v1032 = vsel %vm474, %v1027, %v1031
        %v1033 = vshrl.u32 %v269, 16
        %v1035 = vrot.slane %v1033, 4
        %v1036 = vor.u32 %v1035, %v1031
        %v1037 = vrot.slane %v1036, 4
        %v1039 = vshll.u32 %v873, 16
        %v1041 = vrot.slane %v1039, 5
        %v1042 = vsel %vm474, %v1037, %v1041
        %v1044 = vshrl.u32 %v270, 16
        %v1046 = vrot.slane %v1044, 4
        %v1047 = vshll.u32 %v270, 16
        %v1049 = vrot.slane %v1047, 5
        %v1050 = vor.u32 %v1046, %v1049
        %v1051 = vrot.slane %v1050, 4
        %v1053 = vshll.u32 %v271, 16
        %v1055 = vrot.slane %v1053, 5
        %v1056 = vsel %vm474, %v1051, %v1055
        %v1057 = vshrl.u32 %v271, 16
        %v1059 = vrot.slane %v1057, 4
        %v1060 = vor.u32 %v1059, %v1055
        %v1061 = vrot.slane %v1060, 4
        %v1063 = vshll.u32 %v874, 16
        %v1065 = vrot.slane %v1063, 5
        %v1066 = vsel %vm474, %v1061, %v1065
        %v1067 = vunpack.c.l.b16 %v488
        %v1068 = vunpack.c.l.b16 %v498
        %v1069 = vunpack.c.l.b16 %v512
        %v1070 = vunpack.c.l.b16 %v522
        %v1071 = vunpack.c.l.b16 %v536
        %v1072 = vunpack.c.l.b16 %v546
        %v1073 = vunpack.c.l.b16 %v560
        %v1074 = vunpack.c.l.b16 %v570
        %v1075 = vunpack.c.l.b16 %v584
        %v1076 = vunpack.c.l.b16 %v594
        %v1077 = vunpack.c.l.b16 %v608
        %v1078 = vunpack.c.l.b16 %v618
        %v1079 = vunpack.c.l.b16 %v632
        %v1080 = vunpack.c.l.b16 %v642
        %v1081 = vunpack.c.l.b16 %v656
        %v1082 = vunpack.c.l.b16 %v666
        %v1083 = vpack.c.b16 %v1068, %v1067
        %v1084 = vpack.c.b16 %v1070, %v1069
        %v1085 = vpack.c.b16 %v1072, %v1071
        %v1086 = vpack.c.b16 %v1074, %v1073
        %v1087 = vpack.c.b16 %v1076, %v1075
        %v1088 = vpack.c.b16 %v1078, %v1077
        %v1089 = vpack.c.b16 %v1080, %v1079
        %v1090 = vpack.c.b16 %v1082, %v1081
        %v1099 = vunpack.c.l.b16 %v688
        %v1100 = vunpack.c.l.b16 %v698
        %v1101 = vunpack.c.l.b16 %v712
        %v1102 = vunpack.c.l.b16 %v722
        %v1103 = vunpack.c.l.b16 %v736
        %v1104 = vunpack.c.l.b16 %v746
        %v1105 = vunpack.c.l.b16 %v760
        %v1106 = vunpack.c.l.b16 %v770
        %v1107 = vunpack.c.l.b16 %v784
        %v1108 = vunpack.c.l.b16 %v794
        %v1109 = vunpack.c.l.b16 %v808
        %v1110 = vunpack.c.l.b16 %v818
        %v1111 = vunpack.c.l.b16 %v832
        %v1112 = vunpack.c.l.b16 %v842
        %v1113 = vunpack.c.l.b16 %v856
        %v1114 = vunpack.c.l.b16 %v866
        %v1115 = vpack.c.b16 %v1100, %v1099
        %v1116 = vpack.c.b16 %v1102, %v1101
        %v1117 = vpack.c.b16 %v1104, %v1103
        %v1118 = vpack.c.b16 %v1106, %v1105
        %v1119 = vpack.c.b16 %v1108, %v1107
        %v1120 = vpack.c.b16 %v1110, %v1109
        %v1121 = vpack.c.b16 %v1112, %v1111
        %v1122 = vpack.c.b16 %v1114, %v1113
        %v1131 = vunpack.c.l.b16 %v888
        %v1132 = vunpack.c.l.b16 %v898
        %v1133 = vunpack.c.l.b16 %v912
        %v1134 = vunpack.c.l.b16 %v922
        %v1135 = vunpack.c.l.b16 %v936
        %v1136 = vunpack.c.l.b16 %v946
        %v1137 = vunpack.c.l.b16 %v960
        %v1138 = vunpack.c.l.b16 %v970
        %v1139 = vunpack.c.l.b16 %v984
        %v1140 = vunpack.c.l.b16 %v994
        %v1141 = vunpack.c.l.b16 %v1008
        %v1142 = vunpack.c.l.b16 %v1018
        %v1143 = vunpack.c.l.b16 %v1032
        %v1144 = vunpack.c.l.b16 %v1042
        %v1145 = vunpack.c.l.b16 %v1056
        %v1146 = vunpack.c.l.b16 %v1066
        %v1147 = vpack.c.b16 %v1132, %v1131
        %v1148 = vpack.c.b16 %v1134, %v1133
        %v1149 = vpack.c.b16 %v1136, %v1135
        %v1150 = vpack.c.b16 %v1138, %v1137
        %v1151 = vpack.c.b16 %v1140, %v1139
        %v1152 = vpack.c.b16 %v1142, %v1141
        %v1153 = vpack.c.b16 %v1144, %v1143
        %v1154 = vpack.c.b16 %v1146, %v1145
        %s1163 = scalar_lea.vmem %s1, 192
        %v1164 = vld [vmem:[%s1163] sm:$0xf]
        %v1165 = vld [vmem:[%s1163 + $0x4] sm:$0xf]
        %v1166 = vld [vmem:[%s1163 + $0x8] sm:$0xf]
        %v1167 = vld [vmem:[%s1163 + $0xc] sm:$0xf]
        %v1168 = vld [vmem:[%s1163 + $0x10] sm:$0xf]
        %v1169 = vld [vmem:[%s1163 + $0x14] sm:$0xf]
        %v1170 = vld [vmem:[%s1163 + $0x18] sm:$0xf]
        %v1171 = vld [vmem:[%s1163 + $0x1c] sm:$0xf]
        %v1172 = vld [vmem:[%s1163 + $0x20] sm:$0xf]
        %v1173 = vld [vmem:[%s1163 + $0x24] sm:$0xf]
        %v1174 = vld [vmem:[%s1163 + $0x28] sm:$0xf]
        %v1175 = vld [vmem:[%s1163 + $0x2c] sm:$0xf]
        %v1176 = vld [vmem:[%s1163 + $0x30] sm:$0xf]
        %v1177 = vld [vmem:[%s1163 + $0x34] sm:$0xf]
        %v1178 = vld [vmem:[%s1163 + $0x38] sm:$0xf]
        %v1179 = vld [vmem:[%s1163 + $0x3c] sm:$0xf]
        %v1180 = vld [vmem:[%s1163 + $0x40] sm:$0xf]
        %v1181 = vld [vmem:[%s1163 + $0x44] sm:$0xf]
        %v1182 = vld [vmem:[%s1163 + $0x48] sm:$0xf]
        %v1183 = vld [vmem:[%s1163 + $0x4c] sm:$0xf]
        %v1184 = vld [vmem:[%s1163 + $0x50] sm:$0xf]
        %v1185 = vld [vmem:[%s1163 + $0x54] sm:$0xf]
        %v1186 = vld [vmem:[%s1163 + $0x58] sm:$0xf]
        %v1187 = vld [vmem:[%s1163 + $0x5c] sm:$0xf]
        %v1188 = vld [vmem:[%s1163 + $0x60] sm:$0xf]
        %v1189 = vld [vmem:[%s1163 + $0x64] sm:$0xf]
        %v1190 = vld [vmem:[%s1163 + $0x68] sm:$0xf]
        %v1191 = vld [vmem:[%s1163 + $0x6c] sm:$0xf]
        %v1192 = vld [vmem:[%s1163 + $0x70] sm:$0xf]
        %v1193 = vld [vmem:[%s1163 + $0x74] sm:$0xf]
        %v1194 = vld [vmem:[%s1163 + $0x78] sm:$0xf]
        %v1195 = vld [vmem:[%s1163 + $0x7c] sm:$0xf]
        %v1196 = vld [vmem:[%s1163 + $0x80] sm:$0xf]
        %v1197 = vld [vmem:[%s1163 + $0x84] sm:$0xf]
        %v1198 = vld [vmem:[%s1163 + $0x88] sm:$0xf]
        %v1199 = vld [vmem:[%s1163 + $0x8c] sm:$0xf]
        %v1200 = vld [vmem:[%s1163 + $0x90] sm:$0xf]
        %v1201 = vld [vmem:[%s1163 + $0x94] sm:$0xf]
        %v1202 = vld [vmem:[%s1163 + $0x98] sm:$0xf]
        %v1203 = vld [vmem:[%s1163 + $0x9c] sm:$0xf]
        %v1204 = vld [vmem:[%s1163 + $0xa0] sm:$0xf]
        %v1205 = vld [vmem:[%s1163 + $0xa4] sm:$0xf]
        %v1206 = vld [vmem:[%s1163 + $0xa8] sm:$0xf]
        %v1207 = vld [vmem:[%s1163 + $0xac] sm:$0xf]
        %v1208 = vld [vmem:[%s1163 + $0xb0] sm:$0xf]
        %v1209 = vld [vmem:[%s1163 + $0xb4] sm:$0xf]
        %v1210 = vld [vmem:[%s1163 + $0xb8] sm:$0xf]
        %v1211 = vld [vmem:[%s1163 + $0xbc] sm:$0xf]
        %v1260 = vunpack.c.l.b16 %v1164
        %v1261 = vunpack.c.l.b16 %v1165
        %v1262 = vunpack.c.l.b16 %v1166
        %v1263 = vunpack.c.l.b16 %v1167
        %v1264 = vunpack.c.l.b16 %v1168
        %v1265 = vunpack.c.l.b16 %v1169
        %v1266 = vunpack.c.l.b16 %v1170
        %v1267 = vunpack.c.l.b16 %v1171
        %v1268 = vunpack.c.l.b16 %v1172
        %v1269 = vunpack.c.l.b16 %v1173
        %v1270 = vunpack.c.l.b16 %v1174
        %v1271 = vunpack.c.l.b16 %v1175
        %v1272 = vunpack.c.l.b16 %v1176
        %v1273 = vunpack.c.l.b16 %v1177
        %v1274 = vunpack.c.l.b16 %v1178
        %v1275 = vunpack.c.l.b16 %v1179
        %v1276 = vunpack.c.l.b16 %v1180
        %v1277 = vunpack.c.l.b16 %v1181
        %v1278 = vunpack.c.l.b16 %v1182
        %v1279 = vunpack.c.l.b16 %v1183
        %v1280 = vunpack.c.l.b16 %v1184
        %v1281 = vunpack.c.l.b16 %v1185
        %v1282 = vunpack.c.l.b16 %v1186
        %v1283 = vunpack.c.l.b16 %v1187
        %v1284 = vunpack.c.l.b16 %v1188
        %v1285 = vunpack.c.l.b16 %v1189
        %v1286 = vunpack.c.l.b16 %v1190
        %v1287 = vunpack.c.l.b16 %v1191
        %v1288 = vunpack.c.l.b16 %v1192
        %v1289 = vunpack.c.l.b16 %v1193
        %v1290 = vunpack.c.l.b16 %v1194
        %v1291 = vunpack.c.l.b16 %v1195
        %v1292 = vunpack.c.l.b16 %v1196
        %v1293 = vunpack.c.l.b16 %v1197
        %v1294 = vunpack.c.l.b16 %v1198
        %v1295 = vunpack.c.l.b16 %v1199
        %v1296 = vunpack.c.l.b16 %v1200
        %v1297 = vunpack.c.l.b16 %v1201
        %v1298 = vunpack.c.l.b16 %v1202
        %v1299 = vunpack.c.l.b16 %v1203
        %v1300 = vunpack.c.l.b16 %v1204
        %v1301 = vunpack.c.l.b16 %v1205
        %v1302 = vunpack.c.l.b16 %v1206
        %v1303 = vunpack.c.l.b16 %v1207
        %v1304 = vunpack.c.l.b16 %v1208
        %v1305 = vunpack.c.l.b16 %v1209
        %v1306 = vunpack.c.l.b16 %v1210
        %v1307 = vunpack.c.l.b16 %v1211
        %v1308 = vpack.c.b16 %v1261, %v1260
        %v1309 = vpack.c.b16 %v1263, %v1262
        %v1310 = vpack.c.b16 %v1265, %v1264
        %v1311 = vpack.c.b16 %v1267, %v1266
        %v1312 = vpack.c.b16 %v1269, %v1268
        %v1313 = vpack.c.b16 %v1271, %v1270
        %v1314 = vpack.c.b16 %v1273, %v1272
        %v1315 = vpack.c.b16 %v1275, %v1274
        %v1316 = vpack.c.b16 %v1277, %v1276
        %v1317 = vpack.c.b16 %v1279, %v1278
        %v1318 = vpack.c.b16 %v1281, %v1280
        %v1319 = vpack.c.b16 %v1283, %v1282
        %v1320 = vpack.c.b16 %v1285, %v1284
        %v1321 = vpack.c.b16 %v1287, %v1286
        %v1322 = vpack.c.b16 %v1289, %v1288
        %v1323 = vpack.c.b16 %v1291, %v1290
        %v1324 = vpack.c.b16 %v1293, %v1292
        %v1325 = vpack.c.b16 %v1295, %v1294
        %v1326 = vpack.c.b16 %v1297, %v1296
        %v1327 = vpack.c.b16 %v1299, %v1298
        %v1328 = vpack.c.b16 %v1301, %v1300
        %v1329 = vpack.c.b16 %v1303, %v1302
        %v1330 = vpack.c.b16 %v1305, %v1304
        %v1331 = vpack.c.b16 %v1307, %v1306
        %1356 = vmatprep.subr.bf16.mxu0 0
        %1357 = vmatpush1.bf16.msra.mxu0 %v1308
        %1358 = vmatprep.subr.bf16.mxu0 0
        %1359 = vmatpush1.bf16.msra.mxu0 %v1309
        %1360 = vmatprep.subr.bf16.mxu0 0
        %1361 = vmatpush1.bf16.msra.mxu0 %v1310
        %1362 = vmatprep.subr.bf16.mxu0 0
        %1363 = vmatpush1.bf16.msra.mxu0 %v1311
        %1364 = vmatprep.subr.bf16.mxu0 0
        %1365 = vmatpush1.bf16.msra.mxu0 %v1312
        %1366 = vmatprep.subr.bf16.mxu0 0
        %1367 = vmatpush1.bf16.msra.mxu0 %v1313
        %1368 = vmatprep.subr.bf16.mxu0 0
        %1369 = vmatpush1.bf16.msra.mxu0 %v1314
        %1370 = vmatprep.subr.bf16.mxu0 0
        %1371 = vmatpush1.bf16.msra.mxu0 %v1315
        %1372 = vmatprep.subr.bf16.mxu0 0
        %1373 = vmatpush1.bf16.msra.mxu0 %v1316
        %1374 = vmatprep.subr.bf16.mxu0 0
        %1375 = vmatpush1.bf16.msra.mxu0 %v1317
        %1376 = vmatprep.subr.bf16.mxu0 0
        %1377 = vmatpush1.bf16.msra.mxu0 %v1318
        %1378 = vmatprep.subr.bf16.mxu0 0
        %1379 = vmatpush1.bf16.msra.mxu0 %v1319
        %1380 = vmatprep.subr.bf16.mxu0 0
        %1381 = vmatpush1.bf16.msra.mxu0 %v1320
        %1382 = vmatprep.subr.bf16.mxu0 0
        %1383 = vmatpush1.bf16.msra.mxu0 %v1321
        %1384 = vmatprep.subr.bf16.mxu0 0
        %1385 = vmatpush1.bf16.msra.mxu0 %v1322
        %1386 = vmatprep.subr.bf16.mxu0 0
        %1387 = vmatpush1.bf16.msra.mxu0 %v1323
        %1388 = vmatprep.mubr.bf16.mxu0 %v1115
        %1389 = vmatmul.mubr.bf16.gmra.mrb[0].mxu0 %v1083
        %v1390 = vpop.f32.mrb[0].mxu0
        %v1391 = vadd.f32 0.0, %v1390
        %v1392 = vpop.f32.mrb[0].mxu0
        %v1393 = vpop.f32.mrb[0].mxu0
        %v1394 = vadd.f32 0.0, %v1393
        %v1395 = vpop.f32.mrb[0].mxu0
        %1396 = vmatprep.mubr.bf16.mxu0 %v1116
        %1397 = vmatmul.mubr.bf16.gmra.mrb[0].mxu0 %v1084
        %v1398 = vpop.f32.mrb[0].mxu0
        %v1399 = vadd.f32 0.0, %v1398
        %v1400 = vpop.f32.mrb[0].mxu0
        %v1401 = vpop.f32.mrb[0].mxu0
        %v1402 = vadd.f32 0.0, %v1401
        %v1403 = vpop.f32.mrb[0].mxu0
        %1404 = vmatprep.mubr.bf16.mxu0 %v1117
        %1405 = vmatmul.mubr.bf16.gmra.mrb[0].mxu0 %v1085
        %v1406 = vpop.f32.mrb[0].mxu0
        %v1407 = vadd.f32 0.0, %v1406
        %v1408 = vpop.f32.mrb[0].mxu0
        %v1409 = vpop.f32.mrb[0].mxu0
        %v1410 = vadd.f32 0.0, %v1409
        %v1411 = vpop.f32.mrb[0].mxu0
        %1412 = vmatprep.mubr.bf16.mxu0 %v1118
        %1413 = vmatmul.mubr.bf16.gmra.mrb[0].mxu0 %v1086
        %v1414 = vpop.f32.mrb[0].mxu0
        %v1415 = vadd.f32 0.0, %v1414
        %v1416 = vpop.f32.mrb[0].mxu0
        %v1417 = vpop.f32.mrb[0].mxu0
        %v1418 = vadd.f32 0.0, %v1417
        %v1419 = vpop.f32.mrb[0].mxu0
        %1420 = vmatprep.mubr.bf16.mxu0 %v1119
        %1421 = vmatmul.mubr.bf16.gmra.mrb[0].mxu0 %v1087
        %v1422 = vpop.f32.mrb[0].mxu0
        %v1423 = vadd.f32 0.0, %v1422
        %v1424 = vpop.f32.mrb[0].mxu0
        %v1425 = vpop.f32.mrb[0].mxu0
        %v1426 = vadd.f32 0.0, %v1425
        %v1427 = vpop.f32.mrb[0].mxu0
        %1428 = vmatprep.mubr.bf16.mxu0 %v1120
        %1429 = vmatmul.mubr.bf16.gmra.mrb[0].mxu0 %v1088
        %v1430 = vpop.f32.mrb[0].mxu0
        %v1431 = vadd.f32 0.0, %v1430
        %v1432 = vpop.f32.mrb[0].mxu0
        %v1433 = vpop.f32.mrb[0].mxu0
        %v1434 = vadd.f32 0.0, %v1433
        %v1435 = vpop.f32.mrb[0].mxu0
        %1436 = vmatprep.mubr.bf16.mxu0 %v1121
        %1437 = vmatmul.mubr.bf16.gmra.mrb[0].mxu0 %v1089
        %v1438 = vpop.f32.mrb[0].mxu0
        %v1439 = vadd.f32 0.0, %v1438
        %v1440 = vpop.f32.mrb[0].mxu0
        %v1441 = vpop.f32.mrb[0].mxu0
        %v1442 = vadd.f32 0.0, %v1441
        %v1443 = vpop.f32.mrb[0].mxu0
        %1444 = vmatprep.mubr.bf16.mxu0 %v1122
        %1445 = vmatmul.mubr.bf16.gmra.mrb[0].mxu0 %v1090
        %v1446 = vpop.f32.mrb[0].mxu0
        %v1447 = vadd.f32 0.0, %v1446
        %v1448 = vpop.f32.mrb[0].mxu0
        %v1449 = vpop.f32.mrb[0].mxu0
        %v1450 = vadd.f32 0.0, %v1449
        %v1451 = vpop.f32.mrb[0].mxu0
        %1452 = vdwg.mxu0
        %1453 = vmatprep.subr.bf16.mxu0 0
        %1454 = vmatpush1.bf16.msra.mxu0 %v1324
        %1455 = vmatprep.subr.bf16.mxu0 0
        %1456 = vmatpush1.bf16.msra.mxu0 %v1325
        %1457 = vmatprep.subr.bf16.mxu0 0
        %1458 = vmatpush1.bf16.msra.mxu0 %v1326
        %1459 = vmatprep.subr.bf16.mxu0 0
        %1460 = vmatpush1.bf16.msra.mxu0 %v1327
        %1461 = vmatprep.subr.bf16.mxu0 0
        %1462 = vmatpush1.bf16.msra.mxu0 %v1328
        %1463 = vmatprep.subr.bf16.mxu0 0
        %1464 = vmatpush1.bf16.msra.mxu0 %v1329
        %1465 = vmatprep.subr.bf16.mxu0 0
        %1466 = vmatpush1.bf16.msra.mxu0 %v1330
        %1467 = vmatprep.subr.bf16.mxu0 0
        %1468 = vmatpush1.bf16.msra.mxu0 %v1331
        %1469 = vmatprep.subr.bf16.mxu0 0
        %1470 = vmatpush1.bf16.msra.mxu0 0
        %1471 = vmatprep.subr.bf16.mxu0 0
        %1472 = vmatpush1.bf16.msra.mxu0 0
        %1473 = vmatprep.subr.bf16.mxu0 0
        %1474 = vmatpush1.bf16.msra.mxu0 0
        %1475 = vmatprep.subr.bf16.mxu0 0
        %1476 = vmatpush1.bf16.msra.mxu0 0
        %1477 = vmatprep.subr.bf16.mxu0 0
        %1478 = vmatpush1.bf16.msra.mxu0 0
        %1479 = vmatprep.subr.bf16.mxu0 0
        %1480 = vmatpush1.bf16.msra.mxu0 0
        %1481 = vmatprep.subr.bf16.mxu0 0
        %1482 = vmatpush1.bf16.msra.mxu0 0
        %1483 = vmatprep.subr.bf16.mxu0 0
        %1484 = vmatpush1.bf16.msra.mxu0 0
        %1485 = vmatprep.mubr.bf16.mxu0 0
        %1486 = vmatmul.mubr.bf16.gmra.mrb[0].mxu0 %v1147
        %v1487 = vpop.f32.mrb[0].mxu0
        %v1488 = vadd.f32 %v1391, %v1487
        %v1489 = vpop.f32.mrb[0].mxu0
        %v1490 = vpop.f32.mrb[0].mxu0
        %v1491 = vadd.f32 %v1394, %v1490
        %v1492 = vpop.f32.mrb[0].mxu0
        %1493 = vmatprep.mubr.bf16.mxu0 0
        %1494 = vmatmul.mubr.bf16.gmra.mrb[0].mxu0 %v1148
        %v1495 = vpop.f32.mrb[0].mxu0
        %v1496 = vadd.f32 %v1399, %v1495
        %v1497 = vpop.f32.mrb[0].mxu0
        %v1498 = vpop.f32.mrb[0].mxu0
        %v1499 = vadd.f32 %v1402, %v1498
        %v1500 = vpop.f32.mrb[0].mxu0
        %1501 = vmatprep.mubr.bf16.mxu0 0
        %1502 = vmatmul.mubr.bf16.gmra.mrb[0].mxu0 %v1149
        %v1503 = vpop.f32.mrb[0].mxu0
        %v1504 = vadd.f32 %v1407, %v1503
        %v1505 = vpop.f32.mrb[0].mxu0
        %v1506 = vpop.f32.mrb[0].mxu0
        %v1507 = vadd.f32 %v1410, %v1506
        %v1508 = vpop.f32.mrb[0].mxu0
        %1509 = vmatprep.mubr.bf16.mxu0 0
        %1510 = vmatmul.mubr.bf16.gmra.mrb[0].mxu0 %v1150
        %v1511 = vpop.f32.mrb[0].mxu0
        %v1512 = vadd.f32 %v1415, %v1511
        %v1513 = vpop.f32.mrb[0].mxu0
        %v1514 = vpop.f32.mrb[0].mxu0
        %v1515 = vadd.f32 %v1418, %v1514
        %v1516 = vpop.f32.mrb[0].mxu0
        %1517 = vmatprep.mubr.bf16.mxu0 0
        %1518 = vmatmul.mubr.bf16.gmra.mrb[0].mxu0 %v1151
        %v1519 = vpop.f32.mrb[0].mxu0
        %v1520 = vadd.f32 %v1423, %v1519
        %v1521 = vpop.f32.mrb[0].mxu0
        %v1522 = vpop.f32.mrb[0].mxu0
        %v1523 = vadd.f32 %v1426, %v1522
        %v1524 = vpop.f32.mrb[0].mxu0
        %1525 = vmatprep.mubr.bf16.mxu0 0
        %1526 = vmatmul.mubr.bf16.gmra.mrb[0].mxu0 %v1152
        %v1527 = vpop.f32.mrb[0].mxu0
        %v1528 = vadd.f32 %v1431, %v1527
        %v1529 = vpop.f32.mrb[0].mxu0
        %v1530 = vpop.f32.mrb[0].mxu0
        %v1531 = vadd.f32 %v1434, %v1530
        %v1532 = vpop.f32.mrb[0].mxu0
        %1533 = vmatprep.mubr.bf16.mxu0 0
        %1534 = vmatmul.mubr.bf16.gmra.mrb[0].mxu0 %v1153
        %v1535 = vpop.f32.mrb[0].mxu0
        %v1536 = vadd.f32 %v1439, %v1535
        %v1537 = vpop.f32.mrb[0].mxu0
        %v1538 = vpop.f32.mrb[0].mxu0
        %v1539 = vadd.f32 %v1442, %v1538
        %v1540 = vpop.f32.mrb[0].mxu0
        %1541 = vmatprep.mubr.bf16.mxu0 0
        %1542 = vmatmul.mubr.bf16.gmra.mrb[0].mxu0 %v1154
        %v1543 = vpop.f32.mrb[0].mxu0
        %v1544 = vadd.f32 %v1447, %v1543
        %v1545 = vpop.f32.mrb[0].mxu0
        %v1546 = vpop.f32.mrb[0].mxu0
        %v1547 = vadd.f32 %v1450, %v1546
        %v1548 = vpop.f32.mrb[0].mxu0
        %1549 = vdwg.mxu0
        %v1598 = vunpack.c.l.b16 %v416
        %v1599 = vunpack.c.l.b16 %v417
        %v1600 = vunpack.c.l.b16 %v418
        %v1601 = vunpack.c.l.b16 %v419
        %v1602 = vunpack.c.l.b16 %v420
        %v1603 = vunpack.c.l.b16 %v421
        %v1604 = vunpack.c.l.b16 %v422
        %v1605 = vunpack.c.l.b16 %v423
        %v1606 = vunpack.c.l.b16 %v424
        %v1607 = vunpack.c.l.b16 %v425
        %v1608 = vunpack.c.l.b16 %v426
        %v1609 = vunpack.c.l.b16 %v427
        %v1610 = vunpack.c.l.b16 %v428
        %v1611 = vunpack.c.l.b16 %v429
        %v1612 = vunpack.c.l.b16 %v430
        %v1613 = vunpack.c.l.b16 %v431
        %v1614 = vunpack.c.l.b16 %v432
        %v1615 = vunpack.c.l.b16 %v433
        %v1616 = vunpack.c.l.b16 %v434
        %v1617 = vunpack.c.l.b16 %v435
        %v1618 = vunpack.c.l.b16 %v436
        %v1619 = vunpack.c.l.b16 %v437
        %v1620 = vunpack.c.l.b16 %v438
        %v1621 = vunpack.c.l.b16 %v439
        %v1622 = vunpack.c.l.b16 %v440
        %v1623 = vunpack.c.l.b16 %v441
        %v1624 = vunpack.c.l.b16 %v442
        %v1625 = vunpack.c.l.b16 %v443
        %v1626 = vunpack.c.l.b16 %v444
        %v1627 = vunpack.c.l.b16 %v445
        %v1628 = vunpack.c.l.b16 %v446
        %v1629 = vunpack.c.l.b16 %v447
        %v1630 = vunpack.c.l.b16 %v448
        %v1631 = vunpack.c.l.b16 %v449
        %v1632 = vunpack.c.l.b16 %v450
        %v1633 = vunpack.c.l.b16 %v451
        %v1634 = vunpack.c.l.b16 %v452
        %v1635 = vunpack.c.l.b16 %v453
        %v1636 = vunpack.c.l.b16 %v454
        %v1637 = vunpack.c.l.b16 %v455
        %v1638 = vunpack.c.l.b16 %v456
        %v1639 = vunpack.c.l.b16 %v457
        %v1640 = vunpack.c.l.b16 %v458
        %v1641 = vunpack.c.l.b16 %v459
        %v1642 = vunpack.c.l.b16 %v460
        %v1643 = vunpack.c.l.b16 %v461
        %v1644 = vunpack.c.l.b16 %v462
        %v1645 = vunpack.c.l.b16 %v463
        %v1646 = vpack.c.b16 %v1599, %v1598
        %v1647 = vpack.c.b16 %v1601, %v1600
        %v1648 = vpack.c.b16 %v1603, %v1602
        %v1649 = vpack.c.b16 %v1605, %v1604
        %v1650 = vpack.c.b16 %v1607, %v1606
        %v1651 = vpack.c.b16 %v1609, %v1608
        %v1652 = vpack.c.b16 %v1611, %v1610
        %v1653 = vpack.c.b16 %v1613, %v1612
        %v1654 = vpack.c.b16 %v1615, %v1614
        %v1655 = vpack.c.b16 %v1617, %v1616
        %v1656 = vpack.c.b16 %v1619, %v1618
        %v1657 = vpack.c.b16 %v1621, %v1620
        %v1658 = vpack.c.b16 %v1623, %v1622
        %v1659 = vpack.c.b16 %v1625, %v1624
        %v1660 = vpack.c.b16 %v1627, %v1626
        %v1661 = vpack.c.b16 %v1629, %v1628
        %v1662 = vpack.c.b16 %v1631, %v1630
        %v1663 = vpack.c.b16 %v1633, %v1632
        %v1664 = vpack.c.b16 %v1635, %v1634
        %v1665 = vpack.c.b16 %v1637, %v1636
        %v1666 = vpack.c.b16 %v1639, %v1638
        %v1667 = vpack.c.b16 %v1641, %v1640
        %v1668 = vpack.c.b16 %v1643, %v1642
        %v1669 = vpack.c.b16 %v1645, %v1644
        %1694 = vmatprep.subr.bf16.mxu0 0
        %1695 = vmatpush1.bf16.msra.mxu0 %v1646
        %1696 = vmatprep.subr.bf16.mxu0 0
        %1697 = vmatpush1.bf16.msra.mxu0 %v1647
        %1698 = vmatprep.subr.bf16.mxu0 0
        %1699 = vmatpush1.bf16.msra.mxu0 %v1648
        %1700 = vmatprep.subr.bf16.mxu0 0
        %1701 = vmatpush1.bf16.msra.mxu0 %v1649
        %1702 = vmatprep.subr.bf16.mxu0 0
        %1703 = vmatpush1.bf16.msra.mxu0 %v1650
        %1704 = vmatprep.subr.bf16.mxu0 0
        %1705 = vmatpush1.bf16.msra.mxu0 %v1651
        %1706 = vmatprep.subr.bf16.mxu0 0
        %1707 = vmatpush1.bf16.msra.mxu0 %v1652
        %1708 = vmatprep.subr.bf16.mxu0 0
        %1709 = vmatpush1.bf16.msra.mxu0 %v1653
        %1710 = vmatprep.subr.bf16.mxu0 0
        %1711 = vmatpush1.bf16.msra.mxu0 %v1654
        %1712 = vmatprep.subr.bf16.mxu0 0
        %1713 = vmatpush1.bf16.msra.mxu0 %v1655
        %1714 = vmatprep.subr.bf16.mxu0 0
        %1715 = vmatpush1.bf16.msra.mxu0 %v1656
        %1716 = vmatprep.subr.bf16.mxu0 0
        %1717 = vmatpush1.bf16.msra.mxu0 %v1657
        %1718 = vmatprep.subr.bf16.mxu0 0
        %1719 = vmatpush1.bf16.msra.mxu0 %v1658
        %1720 = vmatprep.subr.bf16.mxu0 0
        %1721 = vmatpush1.bf16.msra.mxu0 %v1659
        %1722 = vmatprep.subr.bf16.mxu0 0
        %1723 = vmatpush1.bf16.msra.mxu0 %v1660
        %1724 = vmatprep.subr.bf16.mxu0 0
        %1725 = vmatpush1.bf16.msra.mxu0 %v1661
        %1726 = vmatprep.mubr.bf16.mxu0 %v352
        %1727 = vmatmul.mubr.bf16.gmra.mrb[0].mxu0 %v304
        %v1728 = vpop.f32.mrb[0].mxu0
        %v1729 = vadd.f32 %v1488, %v1728
        %v1730 = vpop.f32.mrb[0].mxu0
        %v1731 = vpop.f32.mrb[0].mxu0
        %v1732 = vadd.f32 %v1491, %v1731
        %v1733 = vpop.f32.mrb[0].mxu0
        %1734 = vmatprep.mubr.bf16.mxu0 %v353
        %1735 = vmatmul.mubr.bf16.gmra.mrb[0].mxu0 %v305
        %v1736 = vpop.f32.mrb[0].mxu0
        %v1737 = vadd.f32 %v1496, %v1736
        %v1738 = vpop.f32.mrb[0].mxu0
        %v1739 = vpop.f32.mrb[0].mxu0
        %v1740 = vadd.f32 %v1499, %v1739
        %v1741 = vpop.f32.mrb[0].mxu0
        %1742 = vmatprep.mubr.bf16.mxu0 %v354
        %1743 = vmatmul.mubr.bf16.gmra.mrb[0].mxu0 %v306
        %v1744 = vpop.f32.mrb[0].mxu0
        %v1745 = vadd.f32 %v1504, %v1744
        %v1746 = vpop.f32.mrb[0].mxu0
        %v1747 = vpop.f32.mrb[0].mxu0
        %v1748 = vadd.f32 %v1507, %v1747
        %v1749 = vpop.f32.mrb[0].mxu0
        %1750 = vmatprep.mubr.bf16.mxu0 %v355
        %1751 = vmatmul.mubr.bf16.gmra.mrb[0].mxu0 %v307
        %v1752 = vpop.f32.mrb[0].mxu0
        %v1753 = vadd.f32 %v1512, %v1752
        %v1754 = vpop.f32.mrb[0].mxu0
        %v1755 = vpop.f32.mrb[0].mxu0
        %v1756 = vadd.f32 %v1515, %v1755
        %v1757 = vpop.f32.mrb[0].mxu0
        %1758 = vmatprep.mubr.bf16.mxu0 %v356
        %1759 = vmatmul.mubr.bf16.gmra.mrb[0].mxu0 %v308
        %v1760 = vpop.f32.mrb[0].mxu0
        %v1761 = vadd.f32 %v1520, %v1760
        %v1762 = vpop.f32.mrb[0].mxu0
        %v1763 = vpop.f32.mrb[0].mxu0
        %v1764 = vadd.f32 %v1523, %v1763
        %v1765 = vpop.f32.mrb[0].mxu0
        %1766 = vmatprep.mubr.bf16.mxu0 %v357
        %1767 = vmatmul.mubr.bf16.gmra.mrb[0].mxu0 %v309
        %v1768 = vpop.f32.mrb[0].mxu0
        %v1769 = vadd.f32 %v1528, %v1768
        %v1770 = vpop.f32.mrb[0].mxu0
        %v1771 = vpop.f32.mrb[0].mxu0
        %v1772 = vadd.f32 %v1531, %v1771
        %v1773 = vpop.f32.mrb[0].mxu0
        %1774 = vmatprep.mubr.bf16.mxu0 %v358
        %1775 = vmatmul.mubr.bf16.gmra.mrb[0].mxu0 %v310
        %v1776 = vpop.f32.mrb[0].mxu0
        %v1777 = vadd.f32 %v1536, %v1776
        %v1778 = vpop.f32.mrb[0].mxu0
        %v1779 = vpop.f32.mrb[0].mxu0
        %v1780 = vadd.f32 %v1539, %v1779
        %v1781 = vpop.f32.mrb[0].mxu0
        %1782 = vmatprep.mubr.bf16.mxu0 %v359
        %1783 = vmatmul.mubr.bf16.gmra.mrb[0].mxu0 %v311
        %v1784 = vpop.f32.mrb[0].mxu0
        %v1785 = vadd.f32 %v1544, %v1784
        %v1786 = vpop.f32.mrb[0].mxu0
        %v1787 = vpop.f32.mrb[0].mxu0
        %v1788 = vadd.f32 %v1547, %v1787
        %v1789 = vpop.f32.mrb[0].mxu0
        %1790 = vdwg.mxu0
        %1791 = vmatprep.subr.bf16.mxu0 0
        %1792 = vmatpush1.bf16.msra.mxu0 %v1662
        %1793 = vmatprep.subr.bf16.mxu0 0
        %1794 = vmatpush1.bf16.msra.mxu0 %v1663
        %1795 = vmatprep.subr.bf16.mxu0 0
        %1796 = vmatpush1.bf16.msra.mxu0 %v1664
        %1797 = vmatprep.subr.bf16.mxu0 0
        %1798 = vmatpush1.bf16.msra.mxu0 %v1665
        %1799 = vmatprep.subr.bf16.mxu0 0
        %1800 = vmatpush1.bf16.msra.mxu0 %v1666
        %1801 = vmatprep.subr.bf16.mxu0 0
        %1802 = vmatpush1.bf16.msra.mxu0 %v1667
        %1803 = vmatprep.subr.bf16.mxu0 0
        %1804 = vmatpush1.bf16.msra.mxu0 %v1668
        %1805 = vmatprep.subr.bf16.mxu0 0
        %1806 = vmatpush1.bf16.msra.mxu0 %v1669
        %1807 = vmatprep.subr.bf16.mxu0 0
        %1808 = vmatpush1.bf16.msra.mxu0 0
        %1809 = vmatprep.subr.bf16.mxu0 0
        %1810 = vmatpush1.bf16.msra.mxu0 0
        %1811 = vmatprep.subr.bf16.mxu0 0
        %1812 = vmatpush1.bf16.msra.mxu0 0
        %1813 = vmatprep.subr.bf16.mxu0 0
        %1814 = vmatpush1.bf16.msra.mxu0 0
        %1815 = vmatprep.subr.bf16.mxu0 0
        %1816 = vmatpush1.bf16.msra.mxu0 0
        %1817 = vmatprep.subr.bf16.mxu0 0
        %1818 = vmatpush1.bf16.msra.mxu0 0
        %1819 = vmatprep.subr.bf16.mxu0 0
        %1820 = vmatpush1.bf16.msra.mxu0 0
        %1821 = vmatprep.subr.bf16.mxu0 0
        %1822 = vmatpush1.bf16.msra.mxu0 0
        %1823 = vmatprep.mubr.bf16.mxu0 0
        %1824 = vmatmul.mubr.bf16.gmra.mrb[0].mxu0 %v400
        %v1825 = vpop.f32.mrb[0].mxu0
        %v1826 = vadd.f32 %v1729, %v1825
        %v1827 = vpop.f32.mrb[0].mxu0
        %v1828 = vpop.f32.mrb[0].mxu0
        %v1829 = vadd.f32 %v1732, %v1828
        %v1830 = vpop.f32.mrb[0].mxu0
        %1831 = vmatprep.mubr.bf16.mxu0 0
        %1832 = vmatmul.mubr.bf16.gmra.mrb[0].mxu0 %v401
        %v1833 = vpop.f32.mrb[0].mxu0
        %v1834 = vadd.f32 %v1737, %v1833
        %v1835 = vpop.f32.mrb[0].mxu0
        %v1836 = vpop.f32.mrb[0].mxu0
        %v1837 = vadd.f32 %v1740, %v1836
        %v1838 = vpop.f32.mrb[0].mxu0
        %1839 = vmatprep.mubr.bf16.mxu0 0
        %1840 = vmatmul.mubr.bf16.gmra.mrb[0].mxu0 %v402
        %v1841 = vpop.f32.mrb[0].mxu0
        %v1842 = vadd.f32 %v1745, %v1841
        %v1843 = vpop.f32.mrb[0].mxu0
        %v1844 = vpop.f32.mrb[0].mxu0
        %v1845 = vadd.f32 %v1748, %v1844
        %v1846 = vpop.f32.mrb[0].mxu0
        %1847 = vmatprep.mubr.bf16.mxu0 0
        %1848 = vmatmul.mubr.bf16.gmra.mrb[0].mxu0 %v403
        %v1849 = vpop.f32.mrb[0].mxu0
        %v1850 = vadd.f32 %v1753, %v1849
        %v1851 = vpop.f32.mrb[0].mxu0
        %v1852 = vpop.f32.mrb[0].mxu0
        %v1853 = vadd.f32 %v1756, %v1852
        %v1854 = vpop.f32.mrb[0].mxu0
        %1855 = vmatprep.mubr.bf16.mxu0 0
        %1856 = vmatmul.mubr.bf16.gmra.mrb[0].mxu0 %v404
        %v1857 = vpop.f32.mrb[0].mxu0
        %v1858 = vadd.f32 %v1761, %v1857
        %v1859 = vpop.f32.mrb[0].mxu0
        %v1860 = vpop.f32.mrb[0].mxu0
        %v1861 = vadd.f32 %v1764, %v1860
        %v1862 = vpop.f32.mrb[0].mxu0
        %1863 = vmatprep.mubr.bf16.mxu0 0
        %1864 = vmatmul.mubr.bf16.gmra.mrb[0].mxu0 %v405
        %v1865 = vpop.f32.mrb[0].mxu0
        %v1866 = vadd.f32 %v1769, %v1865
        %v1867 = vpop.f32.mrb[0].mxu0
        %v1868 = vpop.f32.mrb[0].mxu0
        %v1869 = vadd.f32 %v1772, %v1868
        %v1870 = vpop.f32.mrb[0].mxu0
        %1871 = vmatprep.mubr.bf16.mxu0 0
        %1872 = vmatmul.mubr.bf16.gmra.mrb[0].mxu0 %v406
        %v1873 = vpop.f32.mrb[0].mxu0
        %v1874 = vadd.f32 %v1777, %v1873
        %v1875 = vpop.f32.mrb[0].mxu0
        %v1876 = vpop.f32.mrb[0].mxu0
        %v1877 = vadd.f32 %v1780, %v1876
        %v1878 = vpop.f32.mrb[0].mxu0
        %1879 = vmatprep.mubr.bf16.mxu0 0
        %1880 = vmatmul.mubr.bf16.gmra.mrb[0].mxu0 %v407
        %v1881 = vpop.f32.mrb[0].mxu0
        %v1882 = vadd.f32 %v1785, %v1881
        %v1883 = vpop.f32.mrb[0].mxu0
        %v1884 = vpop.f32.mrb[0].mxu0
        %v1885 = vadd.f32 %v1788, %v1884
        %v1886 = vpop.f32.mrb[0].mxu0
        %1887 = vdwg.mxu0
        %v1888 = vld [vmem:[%s215] sm:$0xe]
        %v1889 = vld [vmem:[%s215 + $0xc] sm:$0xe]
        %v1890 = vld [vmem:[%s215 + $0x18] sm:$0xe]
        %v1891 = vld [vmem:[%s215 + $0x24] sm:$0xe]
        %v1892 = vld [vmem:[%s215 + $0x30] sm:$0xe]
        %v1893 = vld [vmem:[%s215 + $0x3c] sm:$0xe]
        %v1894 = vld [vmem:[%s215 + $0x48] sm:$0xe]
        %v1895 = vld [vmem:[%s215 + $0x54] sm:$0xe]
        %vm1912 = vcmask 1042432
        %vm1913 = vcmask 1046532
        %vm1914 = vmor %vm1912, %vm1913
        %v1915 = vrot.slane %v1888, 5
        %v1916 = vrot.slane %v1915, 4
        %v1917 = vrot.slane %v217, 5
        %v1918 = vsel %vm1914, %v1916, %v1917
        %v1919 = vrot.slane %v1917, 4
        %v1920 = vrot.slane %v464, 5
        %v1921 = vsel %vm1914, %v1919, %v1920
        %v1922 = vrot.slane %v1889, 5
        %v1923 = vrot.slane %v1922, 4
        %v1924 = vrot.slane %v219, 5
        %v1925 = vsel %vm1914, %v1923, %v1924
        %v1926 = vrot.slane %v1924, 4
        %v1927 = vrot.slane %v465, 5
        %v1928 = vsel %vm1914, %v1926, %v1927
        %v1929 = vrot.slane %v1890, 5
        %v1930 = vrot.slane %v1929, 4
        %v1931 = vrot.slane %v221, 5
        %v1932 = vsel %vm1914, %v1930, %v1931
        %v1933 = vrot.slane %v1931, 4
        %v1934 = vrot.slane %v466, 5
        %v1935 = vsel %vm1914, %v1933, %v1934
        %v1936 = vrot.slane %v1891, 5
        %v1937 = vrot.slane %v1936, 4
        %v1938 = vrot.slane %v223, 5
        %v1939 = vsel %vm1914, %v1937, %v1938
        %v1940 = vrot.slane %v1938, 4
        %v1941 = vrot.slane %v467, 5
        %v1942 = vsel %vm1914, %v1940, %v1941
        %v1943 = vrot.slane %v1892, 5
        %v1944 = vrot.slane %v1943, 4
        %v1945 = vrot.slane %v225, 5
        %v1946 = vsel %vm1914, %v1944, %v1945
        %v1947 = vrot.slane %v1945, 4
        %v1948 = vrot.slane %v468, 5
        %v1949 = vsel %vm1914, %v1947, %v1948
        %v1950 = vrot.slane %v1893, 5
        %v1951 = vrot.slane %v1950, 4
        %v1952 = vrot.slane %v227, 5
        %v1953 = vsel %vm1914, %v1951, %v1952
        %v1954 = vrot.slane %v1952, 4
        %v1955 = vrot.slane %v469, 5
        %v1956 = vsel %vm1914, %v1954, %v1955
        %v1957 = vrot.slane %v1894, 5
        %v1958 = vrot.slane %v1957, 4
        %v1959 = vrot.slane %v229, 5
        %v1960 = vsel %vm1914, %v1958, %v1959
        %v1961 = vrot.slane %v1959, 4
        %v1962 = vrot.slane %v470, 5
        %v1963 = vsel %vm1914, %v1961, %v1962
        %v1964 = vrot.slane %v1895, 5
        %v1965 = vrot.slane %v1964, 4
        %v1966 = vrot.slane %v231, 5
        %v1967 = vsel %vm1914, %v1965, %v1966
        %v1968 = vrot.slane %v1966, 4
        %v1969 = vrot.slane %v471, 5
        %v1970 = vsel %vm1914, %v1968, %v1969
        %v1971 = vld [vmem:[%s235] sm:$0xe]
        %v1972 = vld [vmem:[%s235 + $0xc] sm:$0xe]
        %v1973 = vld [vmem:[%s235 + $0x18] sm:$0xe]
        %v1974 = vld [vmem:[%s235 + $0x24] sm:$0xe]
        %v1975 = vld [vmem:[%s235 + $0x30] sm:$0xe]
        %v1976 = vld [vmem:[%s235 + $0x3c] sm:$0xe]
        %v1977 = vld [vmem:[%s235 + $0x48] sm:$0xe]
        %v1978 = vld [vmem:[%s235 + $0x54] sm:$0xe]
        %v1995 = vrot.slane %v1971, 5
        %v1996 = vrot.slane %v1995, 4
        %v1997 = vrot.slane %v237, 5
        %v1998 = vsel %vm1914, %v1996, %v1997
        %v1999 = vrot.slane %v1997, 4
        %v2000 = vrot.slane %v667, 5
        %v2001 = vsel %vm1914, %v1999, %v2000
        %v2002 = vrot.slane %v1972, 5
        %v2003 = vrot.slane %v2002, 4
        %v2004 = vrot.slane %v239, 5
        %v2005 = vsel %vm1914, %v2003, %v2004
        %v2006 = vrot.slane %v2004, 4
        %v2007 = vrot.slane %v668, 5
        %v2008 = vsel %vm1914, %v2006, %v2007
        %v2009 = vrot.slane %v1973, 5
        %v2010 = vrot.slane %v2009, 4
        %v2011 = vrot.slane %v241, 5
        %v2012 = vsel %vm1914, %v2010, %v2011
        %v2013 = vrot.slane %v2011, 4
        %v2014 = vrot.slane %v669, 5
        %v2015 = vsel %vm1914, %v2013, %v2014
        %v2016 = vrot.slane %v1974, 5
        %v2017 = vrot.slane %v2016, 4
        %v2018 = vrot.slane %v243, 5
        %v2019 = vsel %vm1914, %v2017, %v2018
        %v2020 = vrot.slane %v2018, 4
        %v2021 = vrot.slane %v670, 5
        %v2022 = vsel %vm1914, %v2020, %v2021
        %v2023 = vrot.slane %v1975, 5
        %v2024 = vrot.slane %v2023, 4
        %v2025 = vrot.slane %v245, 5
        %v2026 = vsel %vm1914, %v2024, %v2025
        %v2027 = vrot.slane %v2025, 4
        %v2028 = vrot.slane %v671, 5
        %v2029 = vsel %vm1914, %v2027, %v2028
        %v2030 = vrot.slane %v1976, 5
        %v2031 = vrot.slane %v2030, 4
        %v2032 = vrot.slane %v247, 5
        %v2033 = vsel %vm1914, %v2031, %v2032
        %v2034 = vrot.slane %v2032, 4
        %v2035 = vrot.slane %v672, 5
        %v2036 = vsel %vm1914, %v2034, %v2035
        %v2037 = vrot.slane %v1977, 5
        %v2038 = vrot.slane %v2037, 4
        %v2039 = vrot.slane %v249, 5
        %v2040 = vsel %vm1914, %v2038, %v2039
        %v2041 = vrot.slane %v2039, 4
        %v2042 = vrot.slane %v673, 5
        %v2043 = vsel %vm1914, %v2041, %v2042
        %v2044 = vrot.slane %v1978, 5
        %v2045 = vrot.slane %v2044, 4
        %v2046 = vrot.slane %v251, 5
        %v2047 = vsel %vm1914, %v2045, %v2046
        %v2048 = vrot.slane %v2046, 4
        %v2049 = vrot.slane %v674, 5
        %v2050 = vsel %vm1914, %v2048, %v2049
        %v2051 = vld [vmem:[%s255] sm:$0xe]
        %v2052 = vld [vmem:[%s255 + $0xc] sm:$0xe]
        %v2053 = vld [vmem:[%s255 + $0x18] sm:$0xe]
        %v2054 = vld [vmem:[%s255 + $0x24] sm:$0xe]
        %v2055 = vld [vmem:[%s255 + $0x30] sm:$0xe]
        %v2056 = vld [vmem:[%s255 + $0x3c] sm:$0xe]
        %v2057 = vld [vmem:[%s255 + $0x48] sm:$0xe]
        %v2058 = vld [vmem:[%s255 + $0x54] sm:$0xe]
        %v2075 = vrot.slane %v2051, 5
        %v2076 = vrot.slane %v2075, 4
        %v2077 = vrot.slane %v257, 5
        %v2078 = vsel %vm1914, %v2076, %v2077
        %v2079 = vrot.slane %v2077, 4
        %v2080 = vrot.slane %v867, 5
        %v2081 = vsel %vm1914, %v2079, %v2080
        %v2082 = vrot.slane %v2052, 5
        %v2083 = vrot.slane %v2082, 4
        %v2084 = vrot.slane %v259, 5
        %v2085 = vsel %vm1914, %v2083, %v2084
        %v2086 = vrot.slane %v2084, 4
        %v2087 = vrot.slane %v868, 5
        %v2088 = vsel %vm1914, %v2086, %v2087
        %v2089 = vrot.slane %v2053, 5
        %v2090 = vrot.slane %v2089, 4
        %v2091 = vrot.slane %v261, 5
        %v2092 = vsel %vm1914, %v2090, %v2091
        %v2093 = vrot.slane %v2091, 4
        %v2094 = vrot.slane %v869, 5
        %v2095 = vsel %vm1914, %v2093, %v2094
        %v2096 = vrot.slane %v2054, 5
        %v2097 = vrot.slane %v2096, 4
        %v2098 = vrot.slane %v263, 5
        %v2099 = vsel %vm1914, %v2097, %v2098
        %v2100 = vrot.slane %v2098, 4
        %v2101 = vrot.slane %v870, 5
        %v2102 = vsel %vm1914, %v2100, %v2101
        %v2103 = vrot.slane %v2055, 5
        %v2104 = vrot.slane %v2103, 4
        %v2105 = vrot.slane %v265, 5
        %v2106 = vsel %vm1914, %v2104, %v2105
        %v2107 = vrot.slane %v2105, 4
        %v2108 = vrot.slane %v871, 5
        %v2109 = vsel %vm1914, %v2107, %v2108
        %v2110 = vrot.slane %v2056, 5
        %v2111 = vrot.slane %v2110, 4
        %v2112 = vrot.slane %v267, 5
        %v2113 = vsel %vm1914, %v2111, %v2112
        %v2114 = vrot.slane %v2112, 4
        %v2115 = vrot.slane %v872, 5
        %v2116 = vsel %vm1914, %v2114, %v2115
        %v2117 = vrot.slane %v2057, 5
        %v2118 = vrot.slane %v2117, 4
        %v2119 = vrot.slane %v269, 5
        %v2120 = vsel %vm1914, %v2118, %v2119
        %v2121 = vrot.slane %v2119, 4
        %v2122 = vrot.slane %v873, 5
        %v2123 = vsel %vm1914, %v2121, %v2122
        %v2124 = vrot.slane %v2058, 5
        %v2125 = vrot.slane %v2124, 4
        %v2126 = vrot.slane %v271, 5
        %v2127 = vsel %vm1914, %v2125, %v2126
        %v2128 = vrot.slane %v2126, 4
        %v2129 = vrot.slane %v874, 5
        %v2130 = vsel %vm1914, %v2128, %v2129
        %v2131 = vunpack.c.l.b16 %v1918
        %v2132 = vunpack.c.l.b16 %v1921
        %v2133 = vunpack.c.l.b16 %v1925
        %v2134 = vunpack.c.l.b16 %v1928
        %v2135 = vunpack.c.l.b16 %v1932
        %v2136 = vunpack.c.l.b16 %v1935
        %v2137 = vunpack.c.l.b16 %v1939
        %v2138 = vunpack.c.l.b16 %v1942
        %v2139 = vunpack.c.l.b16 %v1946
        %v2140 = vunpack.c.l.b16 %v1949
        %v2141 = vunpack.c.l.b16 %v1953
        %v2142 = vunpack.c.l.b16 %v1956
        %v2143 = vunpack.c.l.b16 %v1960
        %v2144 = vunpack.c.l.b16 %v1963
        %v2145 = vunpack.c.l.b16 %v1967
        %v2146 = vunpack.c.l.b16 %v1970
        %v2147 = vpack.c.b16 %v2132, %v2131
        %v2148 = vpack.c.b16 %v2134, %v2133
        %v2149 = vpack.c.b16 %v2136, %v2135
        %v2150 = vpack.c.b16 %v2138, %v2137
        %v2151 = vpack.c.b16 %v2140, %v2139
        %v2152 = vpack.c.b16 %v2142, %v2141
        %v2153 = vpack.c.b16 %v2144, %v2143
        %v2154 = vpack.c.b16 %v2146, %v2145
        %v2163 = vunpack.c.l.b16 %v1998
        %v2164 = vunpack.c.l.b16 %v2001
        %v2165 = vunpack.c.l.b16 %v2005
        %v2166 = vunpack.c.l.b16 %v2008
        %v2167 = vunpack.c.l.b16 %v2012
        %v2168 = vunpack.c.l.b16 %v2015
        %v2169 = vunpack.c.l.b16 %v2019
        %v2170 = vunpack.c.l.b16 %v2022
        %v2171 = vunpack.c.l.b16 %v2026
        %v2172 = vunpack.c.l.b16 %v2029
        %v2173 = vunpack.c.l.b16 %v2033
        %v2174 = vunpack.c.l.b16 %v2036
        %v2175 = vunpack.c.l.b16 %v2040
        %v2176 = vunpack.c.l.b16 %v2043
        %v2177 = vunpack.c.l.b16 %v2047
        %v2178 = vunpack.c.l.b16 %v2050
        %v2179 = vpack.c.b16 %v2164, %v2163
        %v2180 = vpack.c.b16 %v2166, %v2165
        %v2181 = vpack.c.b16 %v2168, %v2167
        %v2182 = vpack.c.b16 %v2170, %v2169
        %v2183 = vpack.c.b16 %v2172, %v2171
        %v2184 = vpack.c.b16 %v2174, %v2173
        %v2185 = vpack.c.b16 %v2176, %v2175
        %v2186 = vpack.c.b16 %v2178, %v2177
        %v2195 = vunpack.c.l.b16 %v2078
        %v2196 = vunpack.c.l.b16 %v2081
        %v2197 = vunpack.c.l.b16 %v2085
        %v2198 = vunpack.c.l.b16 %v2088
        %v2199 = vunpack.c.l.b16 %v2092
        %v2200 = vunpack.c.l.b16 %v2095
        %v2201 = vunpack.c.l.b16 %v2099
        %v2202 = vunpack.c.l.b16 %v2102
        %v2203 = vunpack.c.l.b16 %v2106
        %v2204 = vunpack.c.l.b16 %v2109
        %v2205 = vunpack.c.l.b16 %v2113
        %v2206 = vunpack.c.l.b16 %v2116
        %v2207 = vunpack.c.l.b16 %v2120
        %v2208 = vunpack.c.l.b16 %v2123
        %v2209 = vunpack.c.l.b16 %v2127
        %v2210 = vunpack.c.l.b16 %v2130
        %v2211 = vpack.c.b16 %v2196, %v2195
        %v2212 = vpack.c.b16 %v2198, %v2197
        %v2213 = vpack.c.b16 %v2200, %v2199
        %v2214 = vpack.c.b16 %v2202, %v2201
        %v2215 = vpack.c.b16 %v2204, %v2203
        %v2216 = vpack.c.b16 %v2206, %v2205
        %v2217 = vpack.c.b16 %v2208, %v2207
        %v2218 = vpack.c.b16 %v2210, %v2209
        %s2227 = scalar_lea.vmem %s1, 384
        %v2228 = vld [vmem:[%s2227] sm:$0xf]
        %v2229 = vld [vmem:[%s2227 + $0x4] sm:$0xf]
        %v2230 = vld [vmem:[%s2227 + $0x8] sm:$0xf]
        %v2231 = vld [vmem:[%s2227 + $0xc] sm:$0xf]
        %v2232 = vld [vmem:[%s2227 + $0x10] sm:$0xf]
        %v2233 = vld [vmem:[%s2227 + $0x14] sm:$0xf]
        %v2234 = vld [vmem:[%s2227 + $0x18] sm:$0xf]
        %v2235 = vld [vmem:[%s2227 + $0x1c] sm:$0xf]
        %v2236 = vld [vmem:[%s2227 + $0x20] sm:$0xf]
        %v2237 = vld [vmem:[%s2227 + $0x24] sm:$0xf]
        %v2238 = vld [vmem:[%s2227 + $0x28] sm:$0xf]
        %v2239 = vld [vmem:[%s2227 + $0x2c] sm:$0xf]
        %v2240 = vld [vmem:[%s2227 + $0x30] sm:$0xf]
        %v2241 = vld [vmem:[%s2227 + $0x34] sm:$0xf]
        %v2242 = vld [vmem:[%s2227 + $0x38] sm:$0xf]
        %v2243 = vld [vmem:[%s2227 + $0x3c] sm:$0xf]
        %v2244 = vld [vmem:[%s2227 + $0x40] sm:$0xf]
        %v2245 = vld [vmem:[%s2227 + $0x44] sm:$0xf]
        %v2246 = vld [vmem:[%s2227 + $0x48] sm:$0xf]
        %v2247 = vld [vmem:[%s2227 + $0x4c] sm:$0xf]
        %v2248 = vld [vmem:[%s2227 + $0x50] sm:$0xf]
        %v2249 = vld [vmem:[%s2227 + $0x54] sm:$0xf]
        %v2250 = vld [vmem:[%s2227 + $0x58] sm:$0xf]
        %v2251 = vld [vmem:[%s2227 + $0x5c] sm:$0xf]
        %v2252 = vld [vmem:[%s2227 + $0x60] sm:$0xf]
        %v2253 = vld [vmem:[%s2227 + $0x64] sm:$0xf]
        %v2254 = vld [vmem:[%s2227 + $0x68] sm:$0xf]
        %v2255 = vld [vmem:[%s2227 + $0x6c] sm:$0xf]
        %v2256 = vld [vmem:[%s2227 + $0x70] sm:$0xf]
        %v2257 = vld [vmem:[%s2227 + $0x74] sm:$0xf]
        %v2258 = vld [vmem:[%s2227 + $0x78] sm:$0xf]
        %v2259 = vld [vmem:[%s2227 + $0x7c] sm:$0xf]
        %v2260 = vld [vmem:[%s2227 + $0x80] sm:$0xf]
        %v2261 = vld [vmem:[%s2227 + $0x84] sm:$0xf]
        %v2262 = vld [vmem:[%s2227 + $0x88] sm:$0xf]
        %v2263 = vld [vmem:[%s2227 + $0x8c] sm:$0xf]
        %v2264 = vld [vmem:[%s2227 + $0x90] sm:$0xf]
        %v2265 = vld [vmem:[%s2227 + $0x94] sm:$0xf]
        %v2266 = vld [vmem:[%s2227 + $0x98] sm:$0xf]
        %v2267 = vld [vmem:[%s2227 + $0x9c] sm:$0xf]
        %v2268 = vld [vmem:[%s2227 + $0xa0] sm:$0xf]
        %v2269 = vld [vmem:[%s2227 + $0xa4] sm:$0xf]
        %v2270 = vld [vmem:[%s2227 + $0xa8] sm:$0xf]
        %v2271 = vld [vmem:[%s2227 + $0xac] sm:$0xf]
        %v2272 = vld [vmem:[%s2227 + $0xb0] sm:$0xf]
        %v2273 = vld [vmem:[%s2227 + $0xb4] sm:$0xf]
        %v2274 = vld [vmem:[%s2227 + $0xb8] sm:$0xf]
        %v2275 = vld [vmem:[%s2227 + $0xbc] sm:$0xf]
        %v2324 = vunpack.c.l.b16 %v2228
        %v2325 = vunpack.c.l.b16 %v2229
        %v2326 = vunpack.c.l.b16 %v2230
        %v2327 = vunpack.c.l.b16 %v2231
        %v2328 = vunpack.c.l.b16 %v2232
        %v2329 = vunpack.c.l.b16 %v2233
        %v2330 = vunpack.c.l.b16 %v2234
        %v2331 = vunpack.c.l.b16 %v2235
        %v2332 = vunpack.c.l.b16 %v2236
        %v2333 = vunpack.c.l.b16 %v2237
        %v2334 = vunpack.c.l.b16 %v2238
        %v2335 = vunpack.c.l.b16 %v2239
        %v2336 = vunpack.c.l.b16 %v2240
        %v2337 = vunpack.c.l.b16 %v2241
        %v2338 = vunpack.c.l.b16 %v2242
        %v2339 = vunpack.c.l.b16 %v2243
        %v2340 = vunpack.c.l.b16 %v2244
        %v2341 = vunpack.c.l.b16 %v2245
        %v2342 = vunpack.c.l.b16 %v2246
        %v2343 = vunpack.c.l.b16 %v2247
        %v2344 = vunpack.c.l.b16 %v2248
        %v2345 = vunpack.c.l.b16 %v2249
        %v2346 = vunpack.c.l.b16 %v2250
        %v2347 = vunpack.c.l.b16 %v2251
        %v2348 = vunpack.c.l.b16 %v2252
        %v2349 = vunpack.c.l.b16 %v2253
        %v2350 = vunpack.c.l.b16 %v2254
        %v2351 = vunpack.c.l.b16 %v2255
        %v2352 = vunpack.c.l.b16 %v2256
        %v2353 = vunpack.c.l.b16 %v2257
        %v2354 = vunpack.c.l.b16 %v2258
        %v2355 = vunpack.c.l.b16 %v2259
        %v2356 = vunpack.c.l.b16 %v2260
        %v2357 = vunpack.c.l.b16 %v2261
        %v2358 = vunpack.c.l.b16 %v2262
        %v2359 = vunpack.c.l.b16 %v2263
        %v2360 = vunpack.c.l.b16 %v2264
        %v2361 = vunpack.c.l.b16 %v2265
        %v2362 = vunpack.c.l.b16 %v2266
        %v2363 = vunpack.c.l.b16 %v2267
        %v2364 = vunpack.c.l.b16 %v2268
        %v2365 = vunpack.c.l.b16 %v2269
        %v2366 = vunpack.c.l.b16 %v2270
        %v2367 = vunpack.c.l.b16 %v2271
        %v2368 = vunpack.c.l.b16 %v2272
        %v2369 = vunpack.c.l.b16 %v2273
        %v2370 = vunpack.c.l.b16 %v2274
        %v2371 = vunpack.c.l.b16 %v2275
        %v2372 = vpack.c.b16 %v2325, %v2324
        %v2373 = vpack.c.b16 %v2327, %v2326
        %v2374 = vpack.c.b16 %v2329, %v2328
        %v2375 = vpack.c.b16 %v2331, %v2330
        %v2376 = vpack.c.b16 %v2333, %v2332
        %v2377 = vpack.c.b16 %v2335, %v2334
        %v2378 = vpack.c.b16 %v2337, %v2336
        %v2379 = vpack.c.b16 %v2339, %v2338
        %v2380 = vpack.c.b16 %v2341, %v2340
        %v2381 = vpack.c.b16 %v2343, %v2342
        %v2382 = vpack.c.b16 %v2345, %v2344
        %v2383 = vpack.c.b16 %v2347, %v2346
        %v2384 = vpack.c.b16 %v2349, %v2348
        %v2385 = vpack.c.b16 %v2351, %v2350
        %v2386 = vpack.c.b16 %v2353, %v2352
        %v2387 = vpack.c.b16 %v2355, %v2354
        %v2388 = vpack.c.b16 %v2357, %v2356
        %v2389 = vpack.c.b16 %v2359, %v2358
        %v2390 = vpack.c.b16 %v2361, %v2360
        %v2391 = vpack.c.b16 %v2363, %v2362
        %v2392 = vpack.c.b16 %v2365, %v2364
        %v2393 = vpack.c.b16 %v2367, %v2366
        %v2394 = vpack.c.b16 %v2369, %v2368
        %v2395 = vpack.c.b16 %v2371, %v2370
        %2420 = vmatprep.subr.bf16.mxu0 0
        %2421 = vmatpush1.bf16.msra.mxu0 %v2372
        %2422 = vmatprep.subr.bf16.mxu0 0
        %2423 = vmatpush1.bf16.msra.mxu0 %v2373
        %2424 = vmatprep.subr.bf16.mxu0 0
        %2425 = vmatpush1.bf16.msra.mxu0 %v2374
        %2426 = vmatprep.subr.bf16.mxu0 0
        %2427 = vmatpush1.bf16.msra.mxu0 %v2375
        %2428 = vmatprep.subr.bf16.mxu0 0
        %2429 = vmatpush1.bf16.msra.mxu0 %v2376
        %2430 = vmatprep.subr.bf16.mxu0 0
        %2431 = vmatpush1.bf16.msra.mxu0 %v2377
        %2432 = vmatprep.subr.bf16.mxu0 0
        %2433 = vmatpush1.bf16.msra.mxu0 %v2378
        %2434 = vmatprep.subr.bf16.mxu0 0
        %2435 = vmatpush1.bf16.msra.mxu0 %v2379
        %2436 = vmatprep.subr.bf16.mxu0 0
        %2437 = vmatpush1.bf16.msra.mxu0 %v2380
        %2438 = vmatprep.subr.bf16.mxu0 0
        %2439 = vmatpush1.bf16.msra.mxu0 %v2381
        %2440 = vmatprep.subr.bf16.mxu0 0
        %2441 = vmatpush1.bf16.msra.mxu0 %v2382
        %2442 = vmatprep.subr.bf16.mxu0 0
        %2443 = vmatpush1.bf16.msra.mxu0 %v2383
        %2444 = vmatprep.subr.bf16.mxu0 0
        %2445 = vmatpush1.bf16.msra.mxu0 %v2384
        %2446 = vmatprep.subr.bf16.mxu0 0
        %2447 = vmatpush1.bf16.msra.mxu0 %v2385
        %2448 = vmatprep.subr.bf16.mxu0 0
        %2449 = vmatpush1.bf16.msra.mxu0 %v2386
        %2450 = vmatprep.subr.bf16.mxu0 0
        %2451 = vmatpush1.bf16.msra.mxu0 %v2387
        %2452 = vmatprep.mubr.bf16.mxu0 %v2179
        %2453 = vmatmul.mubr.bf16.gmra.mrb[0].mxu0 %v2147
        %v2454 = vpop.f32.mrb[0].mxu0
        %v2455 = vadd.f32 0.0, %v2454
        %v2456 = vpop.f32.mrb[0].mxu0
        %v2457 = vpop.f32.mrb[0].mxu0
        %v2458 = vadd.f32 0.0, %v2457
        %v2459 = vpop.f32.mrb[0].mxu0
        %2460 = vmatprep.mubr.bf16.mxu0 %v2180
        %2461 = vmatmul.mubr.bf16.gmra.mrb[0].mxu0 %v2148
        %v2462 = vpop.f32.mrb[0].mxu0
        %v2463 = vadd.f32 0.0, %v2462
        %v2464 = vpop.f32.mrb[0].mxu0
        %v2465 = vpop.f32.mrb[0].mxu0
        %v2466 = vadd.f32 0.0, %v2465
        %v2467 = vpop.f32.mrb[0].mxu0
        %2468 = vmatprep.mubr.bf16.mxu0 %v2181
        %2469 = vmatmul.mubr.bf16.gmra.mrb[0].mxu0 %v2149
        %v2470 = vpop.f32.mrb[0].mxu0
        %v2471 = vadd.f32 0.0, %v2470
        %v2472 = vpop.f32.mrb[0].mxu0
        %v2473 = vpop.f32.mrb[0].mxu0
        %v2474 = vadd.f32 0.0, %v2473
        %v2475 = vpop.f32.mrb[0].mxu0
        %2476 = vmatprep.mubr.bf16.mxu0 %v2182
        %2477 = vmatmul.mubr.bf16.gmra.mrb[0].mxu0 %v2150
        %v2478 = vpop.f32.mrb[0].mxu0
        %v2479 = vadd.f32 0.0, %v2478
        %v2480 = vpop.f32.mrb[0].mxu0
        %v2481 = vpop.f32.mrb[0].mxu0
        %v2482 = vadd.f32 0.0, %v2481
        %v2483 = vpop.f32.mrb[0].mxu0
        %2484 = vmatprep.mubr.bf16.mxu0 %v2183
        %2485 = vmatmul.mubr.bf16.gmra.mrb[0].mxu0 %v2151
        %v2486 = vpop.f32.mrb[0].mxu0
        %v2487 = vadd.f32 0.0, %v2486
        %v2488 = vpop.f32.mrb[0].mxu0
        %v2489 = vpop.f32.mrb[0].mxu0
        %v2490 = vadd.f32 0.0, %v2489
        %v2491 = vpop.f32.mrb[0].mxu0
        %2492 = vmatprep.mubr.bf16.mxu0 %v2184
        %2493 = vmatmul.mubr.bf16.gmra.mrb[0].mxu0 %v2152
        %v2494 = vpop.f32.mrb[0].mxu0
        %v2495 = vadd.f32 0.0, %v2494
        %v2496 = vpop.f32.mrb[0].mxu0
        %v2497 = vpop.f32.mrb[0].mxu0
        %v2498 = vadd.f32 0.0, %v2497
        %v2499 = vpop.f32.mrb[0].mxu0
        %2500 = vmatprep.mubr.bf16.mxu0 %v2185
        %2501 = vmatmul.mubr.bf16.gmra.mrb[0].mxu0 %v2153
        %v2502 = vpop.f32.mrb[0].mxu0
        %v2503 = vadd.f32 0.0, %v2502
        %v2504 = vpop.f32.mrb[0].mxu0
        %v2505 = vpop.f32.mrb[0].mxu0
        %v2506 = vadd.f32 0.0, %v2505
        %v2507 = vpop.f32.mrb[0].mxu0
        %2508 = vmatprep.mubr.bf16.mxu0 %v2186
        %2509 = vmatmul.mubr.bf16.gmra.mrb[0].mxu0 %v2154
        %v2510 = vpop.f32.mrb[0].mxu0
        %v2511 = vadd.f32 0.0, %v2510
        %v2512 = vpop.f32.mrb[0].mxu0
        %v2513 = vpop.f32.mrb[0].mxu0
        %v2514 = vadd.f32 0.0, %v2513
        %v2515 = vpop.f32.mrb[0].mxu0
        %2516 = vdwg.mxu0
        %2517 = vmatprep.subr.bf16.mxu0 0
        %2518 = vmatpush1.bf16.msra.mxu0 %v2388
        %2519 = vmatprep.subr.bf16.mxu0 0
        %2520 = vmatpush1.bf16.msra.mxu0 %v2389
        %2521 = vmatprep.subr.bf16.mxu0 0
        %2522 = vmatpush1.bf16.msra.mxu0 %v2390
        %2523 = vmatprep.subr.bf16.mxu0 0
        %2524 = vmatpush1.bf16.msra.mxu0 %v2391
        %2525 = vmatprep.subr.bf16.mxu0 0
        %2526 = vmatpush1.bf16.msra.mxu0 %v2392
        %2527 = vmatprep.subr.bf16.mxu0 0
        %2528 = vmatpush1.bf16.msra.mxu0 %v2393
        %2529 = vmatprep.subr.bf16.mxu0 0
        %2530 = vmatpush1.bf16.msra.mxu0 %v2394
        %2531 = vmatprep.subr.bf16.mxu0 0
        %2532 = vmatpush1.bf16.msra.mxu0 %v2395
        %2533 = vmatprep.subr.bf16.mxu0 0
        %2534 = vmatpush1.bf16.msra.mxu0 0
        %2535 = vmatprep.subr.bf16.mxu0 0
        %2536 = vmatpush1.bf16.msra.mxu0 0
        %2537 = vmatprep.subr.bf16.mxu0 0
        %2538 = vmatpush1.bf16.msra.mxu0 0
        %2539 = vmatprep.subr.bf16.mxu0 0
        %2540 = vmatpush1.bf16.msra.mxu0 0
        %2541 = vmatprep.subr.bf16.mxu0 0
        %2542 = vmatpush1.bf16.msra.mxu0 0
        %2543 = vmatprep.subr.bf16.mxu0 0
        %2544 = vmatpush1.bf16.msra.mxu0 0
        %2545 = vmatprep.subr.bf16.mxu0 0
        %2546 = vmatpush1.bf16.msra.mxu0 0
        %2547 = vmatprep.subr.bf16.mxu0 0
        %2548 = vmatpush1.bf16.msra.mxu0 0
        %2549 = vmatprep.mubr.bf16.mxu0 0
        %2550 = vmatmul.mubr.bf16.gmra.mrb[0].mxu0 %v2211
        %v2551 = vpop.f32.mrb[0].mxu0
        %v2552 = vadd.f32 %v2455, %v2551
        %v2553 = vpop.f32.mrb[0].mxu0
        %v2554 = vpop.f32.mrb[0].mxu0
        %v2555 = vadd.f32 %v2458, %v2554
        %v2556 = vpop.f32.mrb[0].mxu0
        %2557 = vmatprep.mubr.bf16.mxu0 0
        %2558 = vmatmul.mubr.bf16.gmra.mrb[0].mxu0 %v2212
        %v2559 = vpop.f32.mrb[0].mxu0
        %v2560 = vadd.f32 %v2463, %v2559
        %v2561 = vpop.f32.mrb[0].mxu0
        %v2562 = vpop.f32.mrb[0].mxu0
        %v2563 = vadd.f32 %v2466, %v2562
        %v2564 = vpop.f32.mrb[0].mxu0
        %2565 = vmatprep.mubr.bf16.mxu0 0
        %2566 = vmatmul.mubr.bf16.gmra.mrb[0].mxu0 %v2213
        %v2567 = vpop.f32.mrb[0].mxu0
        %v2568 = vadd.f32 %v2471, %v2567
        %v2569 = vpop.f32.mrb[0].mxu0
        %v2570 = vpop.f32.mrb[0].mxu0
        %v2571 = vadd.f32 %v2474, %v2570
        %v2572 = vpop.f32.mrb[0].mxu0
        %2573 = vmatprep.mubr.bf16.mxu0 0
        %2574 = vmatmul.mubr.bf16.gmra.mrb[0].mxu0 %v2214
        %v2575 = vpop.f32.mrb[0].mxu0
        %v2576 = vadd.f32 %v2479, %v2575
        %v2577 = vpop.f32.mrb[0].mxu0
        %v2578 = vpop.f32.mrb[0].mxu0
        %v2579 = vadd.f32 %v2482, %v2578
        %v2580 = vpop.f32.mrb[0].mxu0
        %2581 = vmatprep.mubr.bf16.mxu0 0
        %2582 = vmatmul.mubr.bf16.gmra.mrb[0].mxu0 %v2215
        %v2583 = vpop.f32.mrb[0].mxu0
        %v2584 = vadd.f32 %v2487, %v2583
        %v2585 = vpop.f32.mrb[0].mxu0
        %v2586 = vpop.f32.mrb[0].mxu0
        %v2587 = vadd.f32 %v2490, %v2586
        %v2588 = vpop.f32.mrb[0].mxu0
        %2589 = vmatprep.mubr.bf16.mxu0 0
        %2590 = vmatmul.mubr.bf16.gmra.mrb[0].mxu0 %v2216
        %v2591 = vpop.f32.mrb[0].mxu0
        %v2592 = vadd.f32 %v2495, %v2591
        %v2593 = vpop.f32.mrb[0].mxu0
        %v2594 = vpop.f32.mrb[0].mxu0
        %v2595 = vadd.f32 %v2498, %v2594
        %v2596 = vpop.f32.mrb[0].mxu0
        %2597 = vmatprep.mubr.bf16.mxu0 0
        %2598 = vmatmul.mubr.bf16.gmra.mrb[0].mxu0 %v2217
        %v2599 = vpop.f32.mrb[0].mxu0
        %v2600 = vadd.f32 %v2503, %v2599
        %v2601 = vpop.f32.mrb[0].mxu0
        %v2602 = vpop.f32.mrb[0].mxu0
        %v2603 = vadd.f32 %v2506, %v2602
        %v2604 = vpop.f32.mrb[0].mxu0
        %2605 = vmatprep.mubr.bf16.mxu0 0
        %2606 = vmatmul.mubr.bf16.gmra.mrb[0].mxu0 %v2218
        %v2607 = vpop.f32.mrb[0].mxu0
        %v2608 = vadd.f32 %v2511, %v2607
        %v2609 = vpop.f32.mrb[0].mxu0
        %v2610 = vpop.f32.mrb[0].mxu0
        %v2611 = vadd.f32 %v2514, %v2610
        %v2612 = vpop.f32.mrb[0].mxu0
        %2613 = vdwg.mxu0
        %v2614 = vadd.f32 %v1826, %v2552
        %v2615 = vadd.f32 %v1829, %v2555
        %v2616 = vadd.f32 %v1834, %v2560
        %v2617 = vadd.f32 %v1837, %v2563
        %v2618 = vadd.f32 %v1842, %v2568
        %v2619 = vadd.f32 %v1845, %v2571
        %v2620 = vadd.f32 %v1850, %v2576
        %v2621 = vadd.f32 %v1853, %v2579
        %v2622 = vadd.f32 %v1858, %v2584
        %v2623 = vadd.f32 %v1861, %v2587
        %v2624 = vadd.f32 %v1866, %v2592
        %v2625 = vadd.f32 %v1869, %v2595
        %v2626 = vadd.f32 %v1874, %v2600
        %v2627 = vadd.f32 %v1877, %v2603
        %v2628 = vadd.f32 %v1882, %v2608
        %v2629 = vadd.f32 %v1885, %v2611
        %v2630 = vld [vmem:[%s2] sm:$0x1]
        %v2632 = vlaneseq
        %v2633 = vshrl.u32 %v2632, 7
        %v2634 = vsub.s32 0, %v2633
        %v2635 = vrot.slane %v2630, %v2634
        %v2637 = vmul.f32 %v2614, %v2635
        %v2638 = vmul.f32 %v2615, %v2635
        %v2639 = vmul.f32 %v2616, %v2635
        %v2640 = vmul.f32 %v2617, %v2635
        %v2641 = vmul.f32 %v2618, %v2635
        %v2642 = vmul.f32 %v2619, %v2635
        %v2643 = vmul.f32 %v2620, %v2635
        %v2644 = vmul.f32 %v2621, %v2635
        %v2645 = vmul.f32 %v2622, %v2635
        %v2646 = vmul.f32 %v2623, %v2635
        %v2647 = vmul.f32 %v2624, %v2635
        %v2648 = vmul.f32 %v2625, %v2635
        %v2649 = vmul.f32 %v2626, %v2635
        %v2650 = vmul.f32 %v2627, %v2635
        %v2651 = vmul.f32 %v2628, %v2635
        %v2652 = vmul.f32 %v2629, %v2635
        %v2653 = vld [vmem:[%s3] sm:$0x1]
        %v2655 = vlaneseq
        %v2656 = vshrl.u32 %v2655, 7
        %v2657 = vsub.s32 0, %v2656
        %v2658 = vrot.slane %v2653, %v2657
        %v2660 = vadd.f32 %v2637, %v2658
        %v2661 = vadd.f32 %v2638, %v2658
        %v2662 = vadd.f32 %v2639, %v2658
        %v2663 = vadd.f32 %v2640, %v2658
        %v2664 = vadd.f32 %v2641, %v2658
        %v2665 = vadd.f32 %v2642, %v2658
        %v2666 = vadd.f32 %v2643, %v2658
        %v2667 = vadd.f32 %v2644, %v2658
        %v2668 = vadd.f32 %v2645, %v2658
        %v2669 = vadd.f32 %v2646, %v2658
        %v2670 = vadd.f32 %v2647, %v2658
        %v2671 = vadd.f32 %v2648, %v2658
        %v2672 = vadd.f32 %v2649, %v2658
        %v2673 = vadd.f32 %v2650, %v2658
        %v2674 = vadd.f32 %v2651, %v2658
        %v2675 = vadd.f32 %v2652, %v2658
        %v2676 = vsub.f32 0.0, %v2660
        %v2677 = vsub.f32 0.0, %v2661
        %v2678 = vsub.f32 0.0, %v2662
        %v2679 = vsub.f32 0.0, %v2663
        %v2680 = vsub.f32 0.0, %v2664
        %v2681 = vsub.f32 0.0, %v2665
        %v2682 = vsub.f32 0.0, %v2666
        %v2683 = vsub.f32 0.0, %v2667
        %v2684 = vsub.f32 0.0, %v2668
        %v2685 = vsub.f32 0.0, %v2669
        %v2686 = vsub.f32 0.0, %v2670
        %v2687 = vsub.f32 0.0, %v2671
        %v2688 = vsub.f32 0.0, %v2672
        %v2689 = vsub.f32 0.0, %v2673
        %v2690 = vsub.f32 0.0, %v2674
        %v2691 = vsub.f32 0.0, %v2675
        %v2692 = vmul.f32 %v2676, 1.442695
        %v2693 = vpow.pop %v2692
        %v2694 = vmul.f32 %v2677, 1.442695
        %v2695 = vpow.pop %v2694
        %v2696 = vmul.f32 %v2678, 1.442695
        %v2697 = vpow.pop %v2696
        %v2698 = vmul.f32 %v2679, 1.442695
        %v2699 = vpow.pop %v2698
        %v2700 = vmul.f32 %v2680, 1.442695
        %v2701 = vpow.pop %v2700
        %v2702 = vmul.f32 %v2681, 1.442695
        %v2703 = vpow.pop %v2702
        %v2704 = vmul.f32 %v2682, 1.442695
        %v2705 = vpow.pop %v2704
        %v2706 = vmul.f32 %v2683, 1.442695
        %v2707 = vpow.pop %v2706
        %v2708 = vmul.f32 %v2684, 1.442695
        %v2709 = vpow.pop %v2708
        %v2710 = vmul.f32 %v2685, 1.442695
        %v2711 = vpow.pop %v2710
        %v2712 = vmul.f32 %v2686, 1.442695
        %v2713 = vpow.pop %v2712
        %v2714 = vmul.f32 %v2687, 1.442695
        %v2715 = vpow.pop %v2714
        %v2716 = vmul.f32 %v2688, 1.442695
        %v2717 = vpow.pop %v2716
        %v2718 = vmul.f32 %v2689, 1.442695
        %v2719 = vpow.pop %v2718
        %v2720 = vmul.f32 %v2690, 1.442695
        %v2721 = vpow.pop %v2720
        %v2722 = vmul.f32 %v2691, 1.442695
        %v2723 = vpow.pop %v2722
        %v2724 = vadd.f32 %v2693, 1.0
        %v2725 = vadd.f32 %v2695, 1.0
        %v2726 = vadd.f32 %v2697, 1.0
        %v2727 = vadd.f32 %v2699, 1.0
        %v2728 = vadd.f32 %v2701, 1.0
        %v2729 = vadd.f32 %v2703, 1.0
        %v2730 = vadd.f32 %v2705, 1.0
        %v2731 = vadd.f32 %v2707, 1.0
        %v2732 = vadd.f32 %v2709, 1.0
        %v2733 = vadd.f32 %v2711, 1.0
        %v2734 = vadd.f32 %v2713, 1.0
        %v2735 = vadd.f32 %v2715, 1.0
        %v2736 = vadd.f32 %v2717, 1.0
        %v2737 = vadd.f32 %v2719, 1.0
        %v2738 = vadd.f32 %v2721, 1.0
        %v2739 = vadd.f32 %v2723, 1.0
        %v2740 = vrcp.pop %v2724
        %v2741 = vmul.f32 1.0, %v2740
        %v2742 = vrcp.pop %v2725
        %v2743 = vmul.f32 1.0, %v2742
        %v2744 = vrcp.pop %v2726
        %v2745 = vmul.f32 1.0, %v2744
        %v2746 = vrcp.pop %v2727
        %v2747 = vmul.f32 1.0, %v2746
        %v2748 = vrcp.pop %v2728
        %v2749 = vmul.f32 1.0, %v2748
        %v2750 = vrcp.pop %v2729
        %v2751 = vmul.f32 1.0, %v2750
        %v2752 = vrcp.pop %v2730
        %v2753 = vmul.f32 1.0, %v2752
        %v2754 = vrcp.pop %v2731
        %v2755 = vmul.f32 1.0, %v2754
        %v2756 = vrcp.pop %v2732
        %v2757 = vmul.f32 1.0, %v2756
        %v2758 = vrcp.pop %v2733
        %v2759 = vmul.f32 1.0, %v2758
        %v2760 = vrcp.pop %v2734
        %v2761 = vmul.f32 1.0, %v2760
        %v2762 = vrcp.pop %v2735
        %v2763 = vmul.f32 1.0, %v2762
        %v2764 = vrcp.pop %v2736
        %v2765 = vmul.f32 1.0, %v2764
        %v2766 = vrcp.pop %v2737
        %v2767 = vmul.f32 1.0, %v2766
        %v2768 = vrcp.pop %v2738
        %v2769 = vmul.f32 1.0, %v2768
        %v2770 = vrcp.pop %v2739
        %v2771 = vmul.f32 1.0, %v2770
        %v2772 = vmul.f32 %v2660, %v2741
        %v2773 = vmul.f32 %v2661, %v2743
        %v2774 = vmul.f32 %v2662, %v2745
        %v2775 = vmul.f32 %v2663, %v2747
        %v2776 = vmul.f32 %v2664, %v2749
        %v2777 = vmul.f32 %v2665, %v2751
        %v2778 = vmul.f32 %v2666, %v2753
        %v2779 = vmul.f32 %v2667, %v2755
        %v2780 = vmul.f32 %v2668, %v2757
        %v2781 = vmul.f32 %v2669, %v2759
        %v2782 = vmul.f32 %v2670, %v2761
        %v2783 = vmul.f32 %v2671, %v2763
        %v2784 = vmul.f32 %v2672, %v2765
        %v2785 = vmul.f32 %v2673, %v2767
        %v2786 = vmul.f32 %v2674, %v2769
        %v2787 = vmul.f32 %v2675, %v2771
        %v2788 = vpack.c.bf16 %v2773, %v2772
        %v2789 = vpack.c.bf16 %v2775, %v2774
        %v2790 = vpack.c.bf16 %v2777, %v2776
        %v2791 = vpack.c.bf16 %v2779, %v2778
        %v2792 = vpack.c.bf16 %v2781, %v2780
        %v2793 = vpack.c.bf16 %v2783, %v2782
        %v2794 = vpack.c.bf16 %v2785, %v2784
        %v2795 = vpack.c.bf16 %v2787, %v2786
        %v2804 = vunpack.c.l.b16 %v2788
        %v2805 = vunpack.c.h.b16 %v2788
        %v2806 = vunpack.c.l.b16 %v2789
        %v2807 = vunpack.c.h.b16 %v2789
        %v2808 = vunpack.c.l.b16 %v2790
        %v2809 = vunpack.c.h.b16 %v2790
        %v2810 = vunpack.c.l.b16 %v2791
        %v2811 = vunpack.c.h.b16 %v2791
        %v2812 = vunpack.c.l.b16 %v2792
        %v2813 = vunpack.c.h.b16 %v2792
        %v2814 = vunpack.c.l.b16 %v2793
        %v2815 = vunpack.c.h.b16 %v2793
        %v2816 = vunpack.c.l.b16 %v2794
        %v2817 = vunpack.c.h.b16 %v2794
        %v2818 = vunpack.c.l.b16 %v2795
        %v2819 = vunpack.c.h.b16 %v2795
        %v2820 = vpack.c.b16 %v2804, %v2804
        %v2821 = vpack.c.b16 %v2805, %v2805
        %v2822 = vpack.c.b16 %v2806, %v2806
        %v2823 = vpack.c.b16 %v2807, %v2807
        %v2824 = vpack.c.b16 %v2808, %v2808
        %v2825 = vpack.c.b16 %v2809, %v2809
        %v2826 = vpack.c.b16 %v2810, %v2810
        %v2827 = vpack.c.b16 %v2811, %v2811
        %v2828 = vpack.c.b16 %v2812, %v2812
        %v2829 = vpack.c.b16 %v2813, %v2813
        %v2830 = vpack.c.b16 %v2814, %v2814
        %v2831 = vpack.c.b16 %v2815, %v2815
        %v2832 = vpack.c.b16 %v2816, %v2816
        %v2833 = vpack.c.b16 %v2817, %v2817
        %v2834 = vpack.c.b16 %v2818, %v2818
        %v2835 = vpack.c.b16 %v2819, %v2819
        %2852 = vst [vmem:[%s204] sm:$0xf] %v2820
        %2853 = vst [vmem:[%s204 + $0x4] sm:$0xf] %v2821
        %2854 = vst [vmem:[%s204 + $0x8] sm:$0xf] %v2822
        %2855 = vst [vmem:[%s204 + $0xc] sm:$0xf] %v2823
        %2856 = vst [vmem:[%s204 + $0x10] sm:$0xf] %v2824
        %2857 = vst [vmem:[%s204 + $0x14] sm:$0xf] %v2825
        %2858 = vst [vmem:[%s204 + $0x18] sm:$0xf] %v2826
        %2859 = vst [vmem:[%s204 + $0x1c] sm:$0xf] %v2827
        %2860 = vst [vmem:[%s204 + $0x20] sm:$0xf] %v2828
        %2861 = vst [vmem:[%s204 + $0x24] sm:$0xf] %v2829
        %2862 = vst [vmem:[%s204 + $0x28] sm:$0xf] %v2830
        %2863 = vst [vmem:[%s204 + $0x2c] sm:$0xf] %v2831
        %2864 = vst [vmem:[%s204 + $0x30] sm:$0xf] %v2832
        %2865 = vst [vmem:[%s204 + $0x34] sm:$0xf] %v2833
        %2866 = vst [vmem:[%s204 + $0x38] sm:$0xf] %v2834
        %2867 = vst [vmem:[%s204 + $0x3c] sm:$0xf] %v2835
        %s2868 = sand.u32 %s129, 1
        %s2869 = scalar_lea.sflag [#allocation3], %s2868
        %s2870 = sand.u32 %s129, 1
        %s2871 = smul.addr %s2870, 64
        %s2872 = scalar_lea.vmem [#allocation2], %s2871
        // Predicated region
        $region37: #{tpu_custom_call.1} parent=35 // pred_check
          %p2873 = pneg %p139
        $region38: #{tpu_custom_call.1} parent=35 // pred_check_branch
          %2875 = sbr.rel (%p2873) target = $region40
        $region39: #{tpu_custom_call.1} parent=35 // pred_region
          %s2876 = smul.u32 8, %s23
          %s2878 = ssub.s32 1024, 1024
          %2879 = vsyncadd %s2869, %s2878
          %s2880 = smul.addr %s2876, 2
          %s2881 = smul.addr %s22, 32
          %s2882 = sadd.s32 %s2880, %s2881
          %s2883 = smul.addr %s2882, 64
          %s2884 = scalar_lea.hbm %s4, %s2883
          %s2885 = sshll.u32 %s2872, 4
          %s2886 = int_to_ptr.vmem [resolvable:$true] %s2885
          %2891 = dma.vmem_to_hbm [thread:$0]  %s2886, 1024, %s2884, %s2869, 64, 64, 4
        $region40: #{tpu_custom_call.1} parent=35 // pred_fallthru
          _
      $region36: #{tpu_custom_call.1} parent=5 // pred_fallthru
        _
      %p2892 = scmp.le.s32.totalorder 2, %s13
      // Predicated region
      $region41: #{tpu_custom_call.1} parent=5 // pred_check
        %p2893 = pneg %p2892
      $region42: #{tpu_custom_call.1} parent=5 // pred_check_branch
        %2895 = sbr.rel (%p2893) target = $region44
      $region43: #{tpu_custom_call.1} parent=5 // pred_region
        %s2896 = ssub.s32 %s13, 2
        // Predicated region
        $region45: #{tpu_custom_call.1} parent=43 // pred_check
          %p2897 = pneg %p145
        $region46: #{tpu_custom_call.1} parent=43 // pred_check_branch
          %2899 = sbr.rel (%p2897) target = $region48
        $region47: #{tpu_custom_call.1} parent=43 // pred_region
          %s2900 = sand.u32 %s130, 1
          %s2901 = scalar_lea.sflag [#allocation3], %s2900
          %s2902 = sand.u32 %s130, 1
          %s2903 = smul.addr %s2902, 64
          %s2904 = scalar_lea.vmem [#allocation2], %s2903
          %2905 = dma.done %s2901, 1024
        $region48: #{tpu_custom_call.1} parent=43 // pred_fallthru
          _
      $region44: #{tpu_custom_call.1} parent=5 // pred_fallthru
        _
    $region6: #{tpu_custom_call.1} parent=1 // loop_footer
      %s17 = sadd.s32 1, %s13
    $region7: #{tpu_custom_call.1} parent=1 // loop_footer_branch
      %12 = sbr.rel target = $region3
    $region8: #{tpu_custom_call.1} parent=1 // loop_exit
      _
    %2906 = vsyncpa [#allocation3], 1
    %s2907 = scalar_lea.sflag [#allocation3], 1
    %2908 = vsyncpa %s2907, 1

// kernel: tpu_custom_call.1
$region0: #{tpu_custom_call.1}
  #allocation0 [shape = 'u32[]', space=smem, size = 0x4, offset = 0x4, fixed_abs, tag = 'smem constant byte address 0x4 - core index']
  #allocation1 [shape = 'u32[144,128]{1,0:T(1,128)}', space=vmem, size = 0x12000, scoped, tag = 'internal scratch']
  %s0 = inlined_call_operand.vmem [shape: bf16[2,18,18,128], index: 0, kind: input, shape index: {}]
  %s1 = inlined_call_operand.vmem [shape: bf16[3,384,128], index: 1, kind: input, shape index: {}]
  %s2 = inlined_call_operand.vmem [shape: f32[1,128], index: 2, kind: input, shape index: {}]
  %s3 = inlined_call_operand.vmem [shape: f32[1,128], index: 3, kind: input, shape index: {}]
  %s4 = inlined_call_operand.hbm [shape: bf16[2,16,16,128], index: 4, kind: output, shape index: {}]
  %s5 = sld [smem:[#allocation0]]
  $region49: #{tpu_custom_call.1} parent=0
    _
  %s7 = ssub.s32 1, %s5
  %s8 = scalar_select 0, %s7, %s5
  $region1: #{tpu_custom_call.1} parent=0
    #allocation2 [shape = 'u8[65536]{0}', space=vmem, size = 0x10000, scoped, tag = 'output window, operand 0']
    #allocation3 [shape = 's32[2]{0}', space=sflag, size = 0x8, scoped, tag = 'scoped memory for tpu_custom_call.1']
    %9 = vsyncpa [#allocation3], 0
    %s10 = scalar_lea.sflag [#allocation3], 1
    %11 = vsyncpa %s10, 0
    loop: start=0, step=1, limit=6
    $region2: #{tpu_custom_call.1} parent=1 // loop_pre_header
      _
    $region3: #{tpu_custom_call.1} parent=1 // loop_header
      %s13 = sphi 0, %s17
      %p14 = scmp.ge.s32.totalorder %s13, 6
      %s20 = sphi 0, %s32
      %s21 = sphi 0, %s28
      %s22 = sphi 0, %s20
      %s23 = sphi 0, %s21
      %s24 = sphi 0, %s22
      %s25 = sphi 0, %s23
      %s35 = sphi 0, %s37
      %s38 = sphi 0, %s35
      %s39 = sphi 0, %s38
      %s55 = sphi 0, %s39
      %s59 = sphi 0, %s59
      %s61 = sphi 0, %s59
      %s62 = sphi 0, %s61
      %s76 = sphi 0, %s62
      %s80 = sphi 0, %s80
      %s82 = sphi 0, %s80
      %s83 = sphi 0, %s82
      %s97 = sphi 0, %s83
      %s101 = sphi 0, %s101
      %s103 = sphi 0, %s101
      %s104 = sphi 0, %s103
      %s118 = sphi 0, %s104
      %s126 = sphi 0, %s128
      %s129 = sphi 0, %s126
      %s130 = sphi 0, %s129
      %s146 = sphi 0, %s130
    $region4: #{tpu_custom_call.1} parent=1 // loop_header_branch
      %16 = sbr.rel (%p14) target = $region8
    $region5: #{tpu_custom_call.1} parent=1 // loop_body
      %s18 = ssub.s32 %s13, 1
      %s19 = ssub.s32 %s13, 2
      %s26 = sadd.s32 1, %s21
      %p27 = scmp.ge.s32.totalorder %s26, 2
      %s28 = scalar_select %p27, 0, %s26
      %s29 = sadd.s32 1, %s20
      %s30 = scalar_select %p27, %s29, %s20
      %p31 = scmp.ge.s32.totalorder %s30, 2
      %s32 = scalar_select %p31, 0, %s30
      %s33 = ssub.s32 %s20, %s32
      %p34 = scmp.eq.s32.totalorder %s33, 0
      %s36 = sadd.s32 %s35, 1
      %s37 = scalar_select %p34, %s35, %s36
      %p40 = pneg %p34
      %p41 = scmp.eq.s32.totalorder %s13, 3
      %p42 = por %p40, %p41
      %p43 = scmp.ne.s32.totalorder %s35, %s38
      %p44 = scmp.eq.s32.totalorder %s13, 0
      %p45 = por %p43, %p44
      %p46 = scmp.ne.s32.totalorder %s35, %s38
      %p47 = scmp.eq.s32.totalorder %s18, 3
      %p48 = por %p46, %p47
      %p49 = scmp.ne.s32.totalorder %s38, %s39
      %p50 = scmp.eq.s32.totalorder %s18, 0
      %p51 = por %p49, %p50
      %p52 = scmp.ne.s32.totalorder %s38, %s39
      %p53 = scmp.eq.s32.totalorder %s19, 3
      %p54 = por %p52, %p53
      %p56 = scmp.ne.s32.totalorder %s39, %s55
      %p57 = scmp.eq.s32.totalorder %s19, 0
      %p58 = por %p56, %p57
      %s60 = sadd.s32 %s59, 1
      %p63 = scmp.eq.s32.totalorder %s13, 3
      %p64 = scmp.ne.s32.totalorder %s59, %s61
      %p65 = scmp.eq.s32.totalorder %s13, 0
      %p66 = por %p64, %p65
      %p67 = scmp.ne.s32.totalorder %s59, %s61
      %p68 = scmp.eq.s32.totalorder %s18, 3
      %p69 = por %p67, %p68
      %p70 = scmp.ne.s32.totalorder %s61, %s62
      %p71 = scmp.eq.s32.totalorder %s18, 0
      %p72 = por %p70, %p71
      %p73 = scmp.ne.s32.totalorder %s61, %s62
      %p74 = scmp.eq.s32.totalorder %s19, 3
      %p75 = por %p73, %p74
      %p77 = scmp.ne.s32.totalorder %s62, %s76
      %p78 = scmp.eq.s32.totalorder %s19, 0
      %p79 = por %p77, %p78
      %s81 = sadd.s32 %s80, 1
      %p84 = scmp.eq.s32.totalorder %s13, 3
      %p85 = scmp.ne.s32.totalorder %s80, %s82
      %p86 = scmp.eq.s32.totalorder %s13, 0
      %p87 = por %p85, %p86
      %p88 = scmp.ne.s32.totalorder %s80, %s82
      %p89 = scmp.eq.s32.totalorder %s18, 3
      %p90 = por %p88, %p89
      %p91 = scmp.ne.s32.totalorder %s82, %s83
      %p92 = scmp.eq.s32.totalorder %s18, 0
      %p93 = por %p91, %p92
      %p94 = scmp.ne.s32.totalorder %s82, %s83
      %p95 = scmp.eq.s32.totalorder %s19, 3
      %p96 = por %p94, %p95
      %p98 = scmp.ne.s32.totalorder %s83, %s97
      %p99 = scmp.eq.s32.totalorder %s19, 0
      %p100 = por %p98, %p99
      %s102 = sadd.s32 %s101, 1
      %p105 = scmp.eq.s32.totalorder %s13, 3
      %p106 = scmp.ne.s32.totalorder %s101, %s103
      %p107 = scmp.eq.s32.totalorder %s13, 0
      %p108 = por %p106, %p107
      %p109 = scmp.ne.s32.totalorder %s101, %s103
      %p110 = scmp.eq.s32.totalorder %s18, 3
      %p111 = por %p109, %p110
      %p112 = scmp.ne.s32.totalorder %s103, %s104
      %p113 = scmp.eq.s32.totalorder %s18, 0
      %p114 = por %p112, %p113
      %p115 = scmp.ne.s32.totalorder %s103, %s104
      %p116 = scmp.eq.s32.totalorder %s19, 3
      %p117 = por %p115, %p116
      %p119 = scmp.ne.s32.totalorder %s104, %s118
      %p120 = scmp.eq.s32.totalorder %s19, 0
      %p121 = por %p119, %p120
      %s122 = ssub.s32 %s20, %s32
      %s123 = ssub.s32 %s21, %s28
      %s124 = sor.u32 %s122, %s123
      %p125 = scmp.eq.s32.totalorder %s124, 0
      %s127 = sadd.s32 %s126, 1
      %s128 = scalar_select %p125, %s126, %s127
      %p131 = pneg %p125
      %p132 = scmp.eq.s32.totalorder %s13, 3
      %p133 = por %p131, %p132
      %p134 = scmp.ne.s32.totalorder %s126, %s129
      %p135 = scmp.eq.s32.totalorder %s13, 0
      %p136 = por %p134, %p135
      %p137 = scmp.ne.s32.totalorder %s126, %s129
      %p138 = scmp.eq.s32.totalorder %s18, 3
      %p139 = por %p137, %p138
      %p140 = scmp.ne.s32.totalorder %s129, %s130
      %p141 = scmp.eq.s32.totalorder %s18, 0
      %p142 = por %p140, %p141
      %p143 = scmp.ne.s32.totalorder %s129, %s130
      %p144 = scmp.eq.s32.totalorder %s19, 3
      %p145 = por %p143, %p144
      %p147 = scmp.ne.s32.totalorder %s130, %s146
      %p148 = scmp.eq.s32.totalorder %s19, 0
      %p149 = por %p147, %p148
      %p150 = scmp.le.s32.totalorder 1, %s13
      %p151 = scmp.lt.s32.totalorder %s13, 5
      %p152 = pnand %p150, %p151
      %p153 = pneg %p152
      // Predicated region
      $region9: #{tpu_custom_call.1} parent=5 // pred_check
        _
      $region10: #{tpu_custom_call.1} parent=5 // pred_check_branch
        %155 = sbr.rel (%p152) target = $region12
      $region11: #{tpu_custom_call.1} parent=5 // pred_region
        %s156 = ssub.s32 %s13, 1
        // Predicated region
        $region13: #{tpu_custom_call.1} parent=11 // pred_check
          %p157 = pneg %p72
        $region14: #{tpu_custom_call.1} parent=11 // pred_check_branch
          %159 = sbr.rel (%p157) target = $region16
        $region15: #{tpu_custom_call.1} parent=11 // pred_region
          _
        $region16: #{tpu_custom_call.1} parent=11 // pred_fallthru
          _
        // Predicated region
        $region17: #{tpu_custom_call.1} parent=11 // pred_check
          %p160 = pneg %p93
        $region18: #{tpu_custom_call.1} parent=11 // pred_check_branch
          %162 = sbr.rel (%p160) target = $region20
        $region19: #{tpu_custom_call.1} parent=11 // pred_region
          _
        $region20: #{tpu_custom_call.1} parent=11 // pred_fallthru
          _
        // Predicated region
        $region21: #{tpu_custom_call.1} parent=11 // pred_check
          %p163 = pneg %p114
        $region22: #{tpu_custom_call.1} parent=11 // pred_check_branch
          %165 = sbr.rel (%p163) target = $region24
        $region23: #{tpu_custom_call.1} parent=11 // pred_region
          _
        $region24: #{tpu_custom_call.1} parent=11 // pred_fallthru
          _
      $region12: #{tpu_custom_call.1} parent=5 // pred_fallthru
        _
      %p166 = scmp.lt.s32.totalorder %s13, 4
      // Predicated region
      $region25: #{tpu_custom_call.1} parent=5 // pred_check
        %p167 = pneg %p166
      $region26: #{tpu_custom_call.1} parent=5 // pred_check_branch
        %169 = sbr.rel (%p167) target = $region28
      $region27: #{tpu_custom_call.1} parent=5 // pred_region
        // Predicated region
        $region29: #{tpu_custom_call.1} parent=27 // pred_check
          %p170 = pneg %p45
        $region30: #{tpu_custom_call.1} parent=27 // pred_check_branch
          %172 = sbr.rel (%p170) target = $region32
        $region31: #{tpu_custom_call.1} parent=27 // pred_region
          %p173 = scmp.lt.s32.totalorder %s20, 1
          %s174 = scalar_select %p173, %s20, 1
          %s175 = smul.addr %s174, 54
          %s176 = smul.addr %s175, 4
          %s177 = scalar_lea.vmem %s0, %s176
        $region32: #{tpu_custom_call.1} parent=27 // pred_fallthru
          _
      $region28: #{tpu_custom_call.1} parent=5 // pred_fallthru
        _
      %p178 = scmp.le.s32.totalorder 1, %s13
      %p179 = scmp.lt.s32.totalorder %s13, 5
      %p180 = pnand %p178, %p179
      %p181 = pneg %p180
      // Predicated region
      $region33: #{tpu_custom_call.1} parent=5 // pred_check
        _
      $region34: #{tpu_custom_call.1} parent=5 // pred_check_branch
        %183 = sbr.rel (%p180) target = $region36
      $region35: #{tpu_custom_call.1} parent=5 // pred_region
        %s184 = ssub.s32 %s13, 1
        %p185 = scmp.lt.s32.totalorder %s22, 1
        %s186 = scalar_select %p185, %s22, 1
        %s187 = smul.addr %s186, 54
        %s188 = smul.addr %s187, 4
        %s189 = scalar_lea.vmem %s0, %s188
        %p190 = pneg %p51
        %p191 = pneg %p48
        %p192 = pneg %p72
        %p193 = pneg %p69
        %p194 = pneg %p93
        %p195 = pneg %p90
        %p196 = pneg %p114
        %p197 = pneg %p111
        %p198 = pneg %p142
        %p199 = pneg %p139
        %s200 = sand.u32 %s129, 1
        %s201 = scalar_lea.sflag [#allocation3], %s200
        %s202 = sand.u32 %s129, 1
        %s203 = smul.addr %s202, 64
        %s204 = scalar_lea.vmem [#allocation2], %s203
        %p205 = scmp.lt.s32.totalorder %s22, 1
        %s206 = scalar_select %p205, %s22, 1
        %s207 = smul.addr %s206, 54
        %s208 = smul.addr %s207, 4
        %s209 = scalar_lea.vmem %s0, %s208
        %s210 = smul.u32 8, %s23
        %s212 = smul.u32 %s23, 8
        %s213 = smul.u32 %s212, 3
        %s214 = smul.addr %s213, 4
        %s215 = scalar_lea.vmem %s209, %s214
        %v216 = vld [vmem:[%s215] sm:$0xf]
        %v217 = vld [vmem:[%s215 + $0x4] sm:$0xf]
        %v218 = vld [vmem:[%s215 + $0xc] sm:$0xf]
        %v219 = vld [vmem:[%s215 + $0x10] sm:$0xf]
        %v220 = vld [vmem:[%s215 + $0x18] sm:$0xf]
        %v221 = vld [vmem:[%s215 + $0x1c] sm:$0xf]
        %v222 = vld [vmem:[%s215 + $0x24] sm:$0xf]
        %v223 = vld [vmem:[%s215 + $0x28] sm:$0xf]
        %v224 = vld [vmem:[%s215 + $0x30] sm:$0xf]
        %v225 = vld [vmem:[%s215 + $0x34] sm:$0xf]
        %v226 = vld [vmem:[%s215 + $0x3c] sm:$0xf]
        %v227 = vld [vmem:[%s215 + $0x40] sm:$0xf]
        %v228 = vld [vmem:[%s215 + $0x48] sm:$0xf]
        %v229 = vld [vmem:[%s215 + $0x4c] sm:$0xf]
        %v230 = vld [vmem:[%s215 + $0x54] sm:$0xf]
        %v231 = vld [vmem:[%s215 + $0x58] sm:$0xf]
        %s232 = sadd.s32 %s212, 1
        %s233 = smul.u32 %s232, 3
        %s234 = smul.addr %s233, 4
        %s235 = scalar_lea.vmem %s209, %s234
        %v236 = vld [vmem:[%s235] sm:$0xf]
        %v237 = vld [vmem:[%s235 + $0x4] sm:$0xf]
        %v238 = vld [vmem:[%s235 + $0xc] sm:$0xf]
        %v239 = vld [vmem:[%s235 + $0x10] sm:$0xf]
        %v240 = vld [vmem:[%s235 + $0x18] sm:$0xf]
        %v241 = vld [vmem:[%s235 + $0x1c] sm:$0xf]
        %v242 = vld [vmem:[%s235 + $0x24] sm:$0xf]
        %v243 = vld [vmem:[%s235 + $0x28] sm:$0xf]
        %v244 = vld [vmem:[%s235 + $0x30] sm:$0xf]
        %v245 = vld [vmem:[%s235 + $0x34] sm:$0xf]
        %v246 = vld [vmem:[%s235 + $0x3c] sm:$0xf]
        %v247 = vld [vmem:[%s235 + $0x40] sm:$0xf]
        %v248 = vld [vmem:[%s235 + $0x48] sm:$0xf]
        %v249 = vld [vmem:[%s235 + $0x4c] sm:$0xf]
        %v250 = vld [vmem:[%s235 + $0x54] sm:$0xf]
        %v251 = vld [vmem:[%s235 + $0x58] sm:$0xf]
        %s252 = sadd.s32 %s212, 2
        %s253 = smul.u32 %s252, 3
        %s254 = smul.addr %s253, 4
        %s255 = scalar_lea.vmem %s209, %s254
        %v256 = vld [vmem:[%s255] sm:$0xf]
        %v257 = vld [vmem:[%s255 + $0x4] sm:$0xf]
        %v258 = vld [vmem:[%s255 + $0xc] sm:$0xf]
        %v259 = vld [vmem:[%s255 + $0x10] sm:$0xf]
        %v260 = vld [vmem:[%s255 + $0x18] sm:$0xf]
        %v261 = vld [vmem:[%s255 + $0x1c] sm:$0xf]
        %v262 = vld [vmem:[%s255 + $0x24] sm:$0xf]
        %v263 = vld [vmem:[%s255 + $0x28] sm:$0xf]
        %v264 = vld [vmem:[%s255 + $0x30] sm:$0xf]
        %v265 = vld [vmem:[%s255 + $0x34] sm:$0xf]
        %v266 = vld [vmem:[%s255 + $0x3c] sm:$0xf]
        %v267 = vld [vmem:[%s255 + $0x40] sm:$0xf]
        %v268 = vld [vmem:[%s255 + $0x48] sm:$0xf]
        %v269 = vld [vmem:[%s255 + $0x4c] sm:$0xf]
        %v270 = vld [vmem:[%s255 + $0x54] sm:$0xf]
        %v271 = vld [vmem:[%s255 + $0x58] sm:$0xf]
        %v288 = vunpack.c.l.b16 %v216
        %v289 = vunpack.c.l.b16 %v217
        %v290 = vunpack.c.l.b16 %v218
        %v291 = vunpack.c.l.b16 %v219
        %v292 = vunpack.c.l.b16 %v220
        %v293 = vunpack.c.l.b16 %v221
        %v294 = vunpack.c.l.b16 %v222
        %v295 = vunpack.c.l.b16 %v223
        %v296 = vunpack.c.l.b16 %v224
        %v297 = vunpack.c.l.b16 %v225
        %v298 = vunpack.c.l.b16 %v226
        %v299 = vunpack.c.l.b16 %v227
        %v300 = vunpack.c.l.b16 %v228
        %v301 = vunpack.c.l.b16 %v229
        %v302 = vunpack.c.l.b16 %v230
        %v303 = vunpack.c.l.b16 %v231
        %v304 = vpack.c.b16 %v289, %v288
        %v305 = vpack.c.b16 %v291, %v290
        %v306 = vpack.c.b16 %v293, %v292
        %v307 = vpack.c.b16 %v295, %v294
        %v308 = vpack.c.b16 %v297, %v296
        %v309 = vpack.c.b16 %v299, %v298
        %v310 = vpack.c.b16 %v301, %v300
        %v311 = vpack.c.b16 %v303, %v302
        %v336 = vunpack.c.l.b16 %v236
        %v337 = vunpack.c.l.b16 %v237
        %v338 = vunpack.c.l.b16 %v238
        %v339 = vunpack.c.l.b16 %v239
        %v340 = vunpack.c.l.b16 %v240
        %v341 = vunpack.c.l.b16 %v241
        %v342 = vunpack.c.l.b16 %v242
        %v343 = vunpack.c.l.b16 %v243
        %v344 = vunpack.c.l.b16 %v244
        %v345 = vunpack.c.l.b16 %v245
        %v346 = vunpack.c.l.b16 %v246
        %v347 = vunpack.c.l.b16 %v247
        %v348 = vunpack.c.l.b16 %v248
        %v349 = vunpack.c.l.b16 %v249
        %v350 = vunpack.c.l.b16 %v250
        %v351 = vunpack.c.l.b16 %v251
        %v352 = vpack.c.b16 %v337, %v336
        %v353 = vpack.c.b16 %v339, %v338
        %v354 = vpack.c.b16 %v341, %v340
        %v355 = vpack.c.b16 %v343, %v342
        %v356 = vpack.c.b16 %v345, %v344
        %v357 = vpack.c.b16 %v347, %v346
        %v358 = vpack.c.b16 %v349, %v348
        %v359 = vpack.c.b16 %v351, %v350
        %v384 = vunpack.c.l.b16 %v256
        %v385 = vunpack.c.l.b16 %v257
        %v386 = vunpack.c.l.b16 %v258
        %v387 = vunpack.c.l.b16 %v259
        %v388 = vunpack.c.l.b16 %v260
        %v389 = vunpack.c.l.b16 %v261
        %v390 = vunpack.c.l.b16 %v262
        %v391 = vunpack.c.l.b16 %v263
        %v392 = vunpack.c.l.b16 %v264
        %v393 = vunpack.c.l.b16 %v265
        %v394 = vunpack.c.l.b16 %v266
        %v395 = vunpack.c.l.b16 %v267
        %v396 = vunpack.c.l.b16 %v268
        %v397 = vunpack.c.l.b16 %v269
        %v398 = vunpack.c.l.b16 %v270
        %v399 = vunpack.c.l.b16 %v271
        %v400 = vpack.c.b16 %v385, %v384
        %v401 = vpack.c.b16 %v387, %v386
        %v402 = vpack.c.b16 %v389, %v388
        %v403 = vpack.c.b16 %v391, %v390
        %v404 = vpack.c.b16 %v393, %v392
        %v405 = vpack.c.b16 %v395, %v394
        %v406 = vpack.c.b16 %v397, %v396
        %v407 = vpack.c.b16 %v399, %v398
        %v416 = vld [vmem:[%s1] sm:$0xf]
        %v417 = vld [vmem:[%s1 + $0x4] sm:$0xf]
        %v418 = vld [vmem:[%s1 + $0x8] sm:$0xf]
        %v419 = vld [vmem:[%s1 + $0xc] sm:$0xf]
        %v420 = vld [vmem:[%s1 + $0x10] sm:$0xf]
        %v421 = vld [vmem:[%s1 + $0x14] sm:$0xf]
        %v422 = vld [vmem:[%s1 + $0x18] sm:$0xf]
        %v423 = vld [vmem:[%s1 + $0x1c] sm:$0xf]
        %v424 = vld [vmem:[%s1 + $0x20] sm:$0xf]
        %v425 = vld [vmem:[%s1 + $0x24] sm:$0xf]
        %v426 = vld [vmem:[%s1 + $0x28] sm:$0xf]
        %v427 = vld [vmem:[%s1 + $0x2c] sm:$0xf]
        %v428 = vld [vmem:[%s1 + $0x30] sm:$0xf]
        %v429 = vld [vmem:[%s1 + $0x34] sm:$0xf]
        %v430 = vld [vmem:[%s1 + $0x38] sm:$0xf]
        %v431 = vld [vmem:[%s1 + $0x3c] sm:$0xf]
        %v432 = vld [vmem:[%s1 + $0x40] sm:$0xf]
        %v433 = vld [vmem:[%s1 + $0x44] sm:$0xf]
        %v434 = vld [vmem:[%s1 + $0x48] sm:$0xf]
        %v435 = vld [vmem:[%s1 + $0x4c] sm:$0xf]
        %v436 = vld [vmem:[%s1 + $0x50] sm:$0xf]
        %v437 = vld [vmem:[%s1 + $0x54] sm:$0xf]
        %v438 = vld [vmem:[%s1 + $0x58] sm:$0xf]
        %v439 = vld [vmem:[%s1 + $0x5c] sm:$0xf]
        %v440 = vld [vmem:[%s1 + $0x60] sm:$0xf]
        %v441 = vld [vmem:[%s1 + $0x64] sm:$0xf]
        %v442 = vld [vmem:[%s1 + $0x68] sm:$0xf]
        %v443 = vld [vmem:[%s1 + $0x6c] sm:$0xf]
        %v444 = vld [vmem:[%s1 + $0x70] sm:$0xf]
        %v445 = vld [vmem:[%s1 + $0x74] sm:$0xf]
        %v446 = vld [vmem:[%s1 + $0x78] sm:$0xf]
        %v447 = vld [vmem:[%s1 + $0x7c] sm:$0xf]
        %v448 = vld [vmem:[%s1 + $0x80] sm:$0xf]
        %v449 = vld [vmem:[%s1 + $0x84] sm:$0xf]
        %v450 = vld [vmem:[%s1 + $0x88] sm:$0xf]
        %v451 = vld [vmem:[%s1 + $0x8c] sm:$0xf]
        %v452 = vld [vmem:[%s1 + $0x90] sm:$0xf]
        %v453 = vld [vmem:[%s1 + $0x94] sm:$0xf]
        %v454 = vld [vmem:[%s1 + $0x98] sm:$0xf]
        %v455 = vld [vmem:[%s1 + $0x9c] sm:$0xf]
        %v456 = vld [vmem:[%s1 + $0xa0] sm:$0xf]
        %v457 = vld [vmem:[%s1 + $0xa4] sm:$0xf]
        %v458 = vld [vmem:[%s1 + $0xa8] sm:$0xf]
        %v459 = vld [vmem:[%s1 + $0xac] sm:$0xf]
        %v460 = vld [vmem:[%s1 + $0xb0] sm:$0xf]
        %v461 = vld [vmem:[%s1 + $0xb4] sm:$0xf]
        %v462 = vld [vmem:[%s1 + $0xb8] sm:$0xf]
        %v463 = vld [vmem:[%s1 + $0xbc] sm:$0xf]
        %v464 = vld [vmem:[%s215 + $0x8] sm:$0x1]
        %v465 = vld [vmem:[%s215 + $0x14] sm:$0x1]
        %v466 = vld [vmem:[%s215 + $0x20] sm:$0x1]
        %v467 = vld [vmem:[%s215 + $0x2c] sm:$0x1]
        %v468 = vld [vmem:[%s215 + $0x38] sm:$0x1]
        %v469 = vld [vmem:[%s215 + $0x44] sm:$0x1]
        %v470 = vld [vmem:[%s215 + $0x50] sm:$0x1]
        %v471 = vld [vmem:[%s215 + $0x5c] sm:$0x1]
        %vm472 = vsmask.f32 3328
        %vm473 = vsmask.f32 7440
        %vm474 = vmor %vm472, %vm473
        %v476 = vshrl.u32 %v216, 16
        %v478 = vrot.slane %v476, 4
        %v479 = vshll.u32 %v216, 16
        %v481 = vrot.slane %v479, 5
        %v482 = vor.u32 %v478, %v481
        %v483 = vrot.slane %v482, 4
        %v485 = vshll.u32 %v217, 16
        %v487 = vrot.slane %v485, 5
        %v488 = vsel %vm474, %v483, %v487
        %v489 = vshrl.u32 %v217, 16
        %v491 = vrot.slane %v489, 4
        %v492 = vor.u32 %v491, %v487
        %v493 = vrot.slane %v492, 4
        %v495 = vshll.u32 %v464, 16
        %v497 = vrot.slane %v495, 5
        %v498 = vsel %vm474, %v493, %v497
        %v500 = vshrl.u32 %v218, 16
        %v502 = vrot.slane %v500, 4
        %v503 = vshll.u32 %v218, 16
        %v505 = vrot.slane %v503, 5
        %v506 = vor.u32 %v502, %v505
        %v507 = vrot.slane %v506, 4
        %v509 = vshll.u32 %v219, 16
        %v511 = vrot.slane %v509, 5
        %v512 = vsel %vm474, %v507, %v511
        %v513 = vshrl.u32 %v219, 16
        %v515 = vrot.slane %v513, 4
        %v516 = vor.u32 %v515, %v511
        %v517 = vrot.slane %v516, 4
        %v519 = vshll.u32 %v465, 16
        %v521 = vrot.slane %v519, 5
        %v522 = vsel %vm474, %v517, %v521
        %v524 = vshrl.u32 %v220, 16
        %v526 = vrot.slane %v524, 4
        %v527 = vshll.u32 %v220, 16
        %v529 = vrot.slane %v527, 5
        %v530 = vor.u32 %v526, %v529
        %v531 = vrot.slane %v530, 4
        %v533 = vshll.u32 %v221, 16
        %v535 = vrot.slane %v533, 5
        %v536 = vsel %vm474, %v531, %v535
        %v537 = vshrl.u32 %v221, 16
        %v539 = vrot.slane %v537, 4
        %v540 = vor.u32 %v539, %v535
        %v541 = vrot.slane %v540, 4
        %v543 = vshll.u32 %v466, 16
        %v545 = vrot.slane %v543, 5
        %v546 = vsel %vm474, %v541, %v545
        %v548 = vshrl.u32 %v222, 16
        %v550 = vrot.slane %v548, 4
        %v551 = vshll.u32 %v222, 16
        %v553 = vrot.slane %v551, 5
        %v554 = vor.u32 %v550, %v553
        %v555 = vrot.slane %v554, 4
        %v557 = vshll.u32 %v223, 16
        %v559 = vrot.slane %v557, 5
        %v560 = vsel %vm474, %v555, %v559
        %v561 = vshrl.u32 %v223, 16
        %v563 = vrot.slane %v561, 4
        %v564 = vor.u32 %v563, %v559
        %v565 = vrot.slane %v564, 4
        %v567 = vshll.u32 %v467, 16
        %v569 = vrot.slane %v567, 5
        %v570 = vsel %vm474, %v565, %v569
        %v572 = vshrl.u32 %v224, 16
        %v574 = vrot.slane %v572, 4
        %v575 = vshll.u32 %v224, 16
        %v577 = vrot.slane %v575, 5
        %v578 = vor.u32 %v574, %v577
        %v579 = vrot.slane %v578, 4
        %v581 = vshll.u32 %v225, 16
        %v583 = vrot.slane %v581, 5
        %v584 = vsel %vm474, %v579, %v583
        %v585 = vshrl.u32 %v225, 16
        %v587 = vrot.slane %v585, 4
        %v588 = vor.u32 %v587, %v583
        %v589 = vrot.slane %v588, 4
        %v591 = vshll.u32 %v468, 16
        %v593 = vrot.slane %v591, 5
        %v594 = vsel %vm474, %v589, %v593
        %v596 = vshrl.u32 %v226, 16
        %v598 = vrot.slane %v596, 4
        %v599 = vshll.u32 %v226, 16
        %v601 = vrot.slane %v599, 5
        %v602 = vor.u32 %v598, %v601
        %v603 = vrot.slane %v602, 4
        %v605 = vshll.u32 %v227, 16
        %v607 = vrot.slane %v605, 5
        %v608 = vsel %vm474, %v603, %v607
        %v609 = vshrl.u32 %v227, 16
        %v611 = vrot.slane %v609, 4
        %v612 = vor.u32 %v611, %v607
        %v613 = vrot.slane %v612, 4
        %v615 = vshll.u32 %v469, 16
        %v617 = vrot.slane %v615, 5
        %v618 = vsel %vm474, %v613, %v617
        %v620 = vshrl.u32 %v228, 16
        %v622 = vrot.slane %v620, 4
        %v623 = vshll.u32 %v228, 16
        %v625 = vrot.slane %v623, 5
        %v626 = vor.u32 %v622, %v625
        %v627 = vrot.slane %v626, 4
        %v629 = vshll.u32 %v229, 16
        %v631 = vrot.slane %v629, 5
        %v632 = vsel %vm474, %v627, %v631
        %v633 = vshrl.u32 %v229, 16
        %v635 = vrot.slane %v633, 4
        %v636 = vor.u32 %v635, %v631
        %v637 = vrot.slane %v636, 4
        %v639 = vshll.u32 %v470, 16
        %v641 = vrot.slane %v639, 5
        %v642 = vsel %vm474, %v637, %v641
        %v644 = vshrl.u32 %v230, 16
        %v646 = vrot.slane %v644, 4
        %v647 = vshll.u32 %v230, 16
        %v649 = vrot.slane %v647, 5
        %v650 = vor.u32 %v646, %v649
        %v651 = vrot.slane %v650, 4
        %v653 = vshll.u32 %v231, 16
        %v655 = vrot.slane %v653, 5
        %v656 = vsel %vm474, %v651, %v655
        %v657 = vshrl.u32 %v231, 16
        %v659 = vrot.slane %v657, 4
        %v660 = vor.u32 %v659, %v655
        %v661 = vrot.slane %v660, 4
        %v663 = vshll.u32 %v471, 16
        %v665 = vrot.slane %v663, 5
        %v666 = vsel %vm474, %v661, %v665
        %v667 = vld [vmem:[%s235 + $0x8] sm:$0x1]
        %v668 = vld [vmem:[%s235 + $0x14] sm:$0x1]
        %v669 = vld [vmem:[%s235 + $0x20] sm:$0x1]
        %v670 = vld [vmem:[%s235 + $0x2c] sm:$0x1]
        %v671 = vld [vmem:[%s235 + $0x38] sm:$0x1]
        %v672 = vld [vmem:[%s235 + $0x44] sm:$0x1]
        %v673 = vld [vmem:[%s235 + $0x50] sm:$0x1]
        %v674 = vld [vmem:[%s235 + $0x5c] sm:$0x1]
        %v676 = vshrl.u32 %v236, 16
        %v678 = vrot.slane %v676, 4
        %v679 = vshll.u32 %v236, 16
        %v681 = vrot.slane %v679, 5
        %v682 = vor.u32 %v678, %v681
        %v683 = vrot.slane %v682, 4
        %v685 = vshll.u32 %v237, 16
        %v687 = vrot.slane %v685, 5
        %v688 = vsel %vm474, %v683, %v687
        %v689 = vshrl.u32 %v237, 16
        %v691 = vrot.slane %v689, 4
        %v692 = vor.u32 %v691, %v687
        %v693 = vrot.slane %v692, 4
        %v695 = vshll.u32 %v667, 16
        %v697 = vrot.slane %v695, 5
        %v698 = vsel %vm474, %v693, %v697
        %v700 = vshrl.u32 %v238, 16
        %v702 = vrot.slane %v700, 4
        %v703 = vshll.u32 %v238, 16
        %v705 = vrot.slane %v703, 5
        %v706 = vor.u32 %v702, %v705
        %v707 = vrot.slane %v706, 4
        %v709 = vshll.u32 %v239, 16
        %v711 = vrot.slane %v709, 5
        %v712 = vsel %vm474, %v707, %v711
        %v713 = vshrl.u32 %v239, 16
        %v715 = vrot.slane %v713, 4
        %v716 = vor.u32 %v715, %v711
        %v717 = vrot.slane %v716, 4
        %v719 = vshll.u32 %v668, 16
        %v721 = vrot.slane %v719, 5
        %v722 = vsel %vm474, %v717, %v721
        %v724 = vshrl.u32 %v240, 16
        %v726 = vrot.slane %v724, 4
        %v727 = vshll.u32 %v240, 16
        %v729 = vrot.slane %v727, 5
        %v730 = vor.u32 %v726, %v729
        %v731 = vrot.slane %v730, 4
        %v733 = vshll.u32 %v241, 16
        %v735 = vrot.slane %v733, 5
        %v736 = vsel %vm474, %v731, %v735
        %v737 = vshrl.u32 %v241, 16
        %v739 = vrot.slane %v737, 4
        %v740 = vor.u32 %v739, %v735
        %v741 = vrot.slane %v740, 4
        %v743 = vshll.u32 %v669, 16
        %v745 = vrot.slane %v743, 5
        %v746 = vsel %vm474, %v741, %v745
        %v748 = vshrl.u32 %v242, 16
        %v750 = vrot.slane %v748, 4
        %v751 = vshll.u32 %v242, 16
        %v753 = vrot.slane %v751, 5
        %v754 = vor.u32 %v750, %v753
        %v755 = vrot.slane %v754, 4
        %v757 = vshll.u32 %v243, 16
        %v759 = vrot.slane %v757, 5
        %v760 = vsel %vm474, %v755, %v759
        %v761 = vshrl.u32 %v243, 16
        %v763 = vrot.slane %v761, 4
        %v764 = vor.u32 %v763, %v759
        %v765 = vrot.slane %v764, 4
        %v767 = vshll.u32 %v670, 16
        %v769 = vrot.slane %v767, 5
        %v770 = vsel %vm474, %v765, %v769
        %v772 = vshrl.u32 %v244, 16
        %v774 = vrot.slane %v772, 4
        %v775 = vshll.u32 %v244, 16
        %v777 = vrot.slane %v775, 5
        %v778 = vor.u32 %v774, %v777
        %v779 = vrot.slane %v778, 4
        %v781 = vshll.u32 %v245, 16
        %v783 = vrot.slane %v781, 5
        %v784 = vsel %vm474, %v779, %v783
        %v785 = vshrl.u32 %v245, 16
        %v787 = vrot.slane %v785, 4
        %v788 = vor.u32 %v787, %v783
        %v789 = vrot.slane %v788, 4
        %v791 = vshll.u32 %v671, 16
        %v793 = vrot.slane %v791, 5
        %v794 = vsel %vm474, %v789, %v793
        %v796 = vshrl.u32 %v246, 16
        %v798 = vrot.slane %v796, 4
        %v799 = vshll.u32 %v246, 16
        %v801 = vrot.slane %v799, 5
        %v802 = vor.u32 %v798, %v801
        %v803 = vrot.slane %v802, 4
        %v805 = vshll.u32 %v247, 16
        %v807 = vrot.slane %v805, 5
        %v808 = vsel %vm474, %v803, %v807
        %v809 = vshrl.u32 %v247, 16
        %v811 = vrot.slane %v809, 4
        %v812 = vor.u32 %v811, %v807
        %v813 = vrot.slane %v812, 4
        %v815 = vshll.u32 %v672, 16
        %v817 = vrot.slane %v815, 5
        %v818 = vsel %vm474, %v813, %v817
        %v820 = vshrl.u32 %v248, 16
        %v822 = vrot.slane %v820, 4
        %v823 = vshll.u32 %v248, 16
        %v825 = vrot.slane %v823, 5
        %v826 = vor.u32 %v822, %v825
        %v827 = vrot.slane %v826, 4
        %v829 = vshll.u32 %v249, 16
        %v831 = vrot.slane %v829, 5
        %v832 = vsel %vm474, %v827, %v831
        %v833 = vshrl.u32 %v249, 16
        %v835 = vrot.slane %v833, 4
        %v836 = vor.u32 %v835, %v831
        %v837 = vrot.slane %v836, 4
        %v839 = vshll.u32 %v673, 16
        %v841 = vrot.slane %v839, 5
        %v842 = vsel %vm474, %v837, %v841
        %v844 = vshrl.u32 %v250, 16
        %v846 = vrot.slane %v844, 4
        %v847 = vshll.u32 %v250, 16
        %v849 = vrot.slane %v847, 5
        %v850 = vor.u32 %v846, %v849
        %v851 = vrot.slane %v850, 4
        %v853 = vshll.u32 %v251, 16
        %v855 = vrot.slane %v853, 5
        %v856 = vsel %vm474, %v851, %v855
        %v857 = vshrl.u32 %v251, 16
        %v859 = vrot.slane %v857, 4
        %v860 = vor.u32 %v859, %v855
        %v861 = vrot.slane %v860, 4
        %v863 = vshll.u32 %v674, 16
        %v865 = vrot.slane %v863, 5
        %v866 = vsel %vm474, %v861, %v865
        %v867 = vld [vmem:[%s255 + $0x8] sm:$0x1]
        %v868 = vld [vmem:[%s255 + $0x14] sm:$0x1]
        %v869 = vld [vmem:[%s255 + $0x20] sm:$0x1]
        %v870 = vld [vmem:[%s255 + $0x2c] sm:$0x1]
        %v871 = vld [vmem:[%s255 + $0x38] sm:$0x1]
        %v872 = vld [vmem:[%s255 + $0x44] sm:$0x1]
        %v873 = vld [vmem:[%s255 + $0x50] sm:$0x1]
        %v874 = vld [vmem:[%s255 + $0x5c] sm:$0x1]
        %v876 = vshrl.u32 %v256, 16
        %v878 = vrot.slane %v876, 4
        %v879 = vshll.u32 %v256, 16
        %v881 = vrot.slane %v879, 5
        %v882 = vor.u32 %v878, %v881
        %v883 = vrot.slane %v882, 4
        %v885 = vshll.u32 %v257, 16
        %v887 = vrot.slane %v885, 5
        %v888 = vsel %vm474, %v883, %v887
        %v889 = vshrl.u32 %v257, 16
        %v891 = vrot.slane %v889, 4
        %v892 = vor.u32 %v891, %v887
        %v893 = vrot.slane %v892, 4
        %v895 = vshll.u32 %v867, 16
        %v897 = vrot.slane %v895, 5
        %v898 = vsel %vm474, %v893, %v897
        %v900 = vshrl.u32 %v258, 16
        %v902 = vrot.slane %v900, 4
        %v903 = vshll.u32 %v258, 16
        %v905 = vrot.slane %v903, 5
        %v906 = vor.u32 %v902, %v905
        %v907 = vrot.slane %v906, 4
        %v909 = vshll.u32 %v259, 16
        %v911 = vrot.slane %v909, 5
        %v912 = vsel %vm474, %v907, %v911
        %v913 = vshrl.u32 %v259, 16
        %v915 = vrot.slane %v913, 4
        %v916 = vor.u32 %v915, %v911
        %v917 = vrot.slane %v916, 4
        %v919 = vshll.u32 %v868, 16
        %v921 = vrot.slane %v919, 5
        %v922 = vsel %vm474, %v917, %v921
        %v924 = vshrl.u32 %v260, 16
        %v926 = vrot.slane %v924, 4
        %v927 = vshll.u32 %v260, 16
        %v929 = vrot.slane %v927, 5
        %v930 = vor.u32 %v926, %v929
        %v931 = vrot.slane %v930, 4
        %v933 = vshll.u32 %v261, 16
        %v935 = vrot.slane %v933, 5
        %v936 = vsel %vm474, %v931, %v935
        %v937 = vshrl.u32 %v261, 16
        %v939 = vrot.slane %v937, 4
        %v940 = vor.u32 %v939, %v935
        %v941 = vrot.slane %v940, 4
        %v943 = vshll.u32 %v869, 16
        %v945 = vrot.slane %v943, 5
        %v946 = vsel %vm474, %v941, %v945
        %v948 = vshrl.u32 %v262, 16
        %v950 = vrot.slane %v948, 4
        %v951 = vshll.u32 %v262, 16
        %v953 = vrot.slane %v951, 5
        %v954 = vor.u32 %v950, %v953
        %v955 = vrot.slane %v954, 4
        %v957 = vshll.u32 %v263, 16
        %v959 = vrot.slane %v957, 5
        %v960 = vsel %vm474, %v955, %v959
        %v961 = vshrl.u32 %v263, 16
        %v963 = vrot.slane %v961, 4
        %v964 = vor.u32 %v963, %v959
        %v965 = vrot.slane %v964, 4
        %v967 = vshll.u32 %v870, 16
        %v969 = vrot.slane %v967, 5
        %v970 = vsel %vm474, %v965, %v969
        %v972 = vshrl.u32 %v264, 16
        %v974 = vrot.slane %v972, 4
        %v975 = vshll.u32 %v264, 16
        %v977 = vrot.slane %v975, 5
        %v978 = vor.u32 %v974, %v977
        %v979 = vrot.slane %v978, 4
        %v981 = vshll.u32 %v265, 16
        %v983 = vrot.slane %v981, 5
        %v984 = vsel %vm474, %v979, %v983
        %v985 = vshrl.u32 %v265, 16
        %v987 = vrot.slane %v985, 4
        %v988 = vor.u32 %v987, %v983
        %v989 = vrot.slane %v988, 4
        %v991 = vshll.u32 %v871, 16
        %v993 = vrot.slane %v991, 5
        %v994 = vsel %vm474, %v989, %v993
        %v996 = vshrl.u32 %v266, 16
        %v998 = vrot.slane %v996, 4
        %v999 = vshll.u32 %v266, 16
        %v1001 = vrot.slane %v999, 5
        %v1002 = vor.u32 %v998, %v1001
        %v1003 = vrot.slane %v1002, 4
        %v1005 = vshll.u32 %v267, 16
        %v1007 = vrot.slane %v1005, 5
        %v1008 = vsel %vm474, %v1003, %v1007
        %v1009 = vshrl.u32 %v267, 16
        %v1011 = vrot.slane %v1009, 4
        %v1012 = vor.u32 %v1011, %v1007
        %v1013 = vrot.slane %v1012, 4
        %v1015 = vshll.u32 %v872, 16
        %v1017 = vrot.slane %v1015, 5
        %v1018 = vsel %vm474, %v1013, %v1017
        %v1020 = vshrl.u32 %v268, 16
        %v1022 = vrot.slane %v1020, 4
        %v1023 = vshll.u32 %v268, 16
        %v1025 = vrot.slane %v1023, 5
        %v1026 = vor.u32 %v1022, %v1025
        %v1027 = vrot.slane %v1026, 4
        %v1029 = vshll.u32 %v269, 16
        %v1031 = vrot.slane %v1029, 5
        %v1032 = vsel %vm474, %v1027, %v1031
        %v1033 = vshrl.u32 %v269, 16
        %v1035 = vrot.slane %v1033, 4
        %v1036 = vor.u32 %v1035, %v1031
        %v1037 = vrot.slane %v1036, 4
        %v1039 = vshll.u32 %v873, 16
        %v1041 = vrot.slane %v1039, 5
        %v1042 = vsel %vm474, %v1037, %v1041
        %v1044 = vshrl.u32 %v270, 16
        %v1046 = vrot.slane %v1044, 4
        %v1047 = vshll.u32 %v270, 16
        %v1049 = vrot.slane %v1047, 5
        %v1050 = vor.u32 %v1046, %v1049
        %v1051 = vrot.slane %v1050, 4
        %v1053 = vshll.u32 %v271, 16
        %v1055 = vrot.slane %v1053, 5
        %v1056 = vsel %vm474, %v1051, %v1055
        %v1057 = vshrl.u32 %v271, 16
        %v1059 = vrot.slane %v1057, 4
        %v1060 = vor.u32 %v1059, %v1055
        %v1061 = vrot.slane %v1060, 4
        %v1063 = vshll.u32 %v874, 16
        %v1065 = vrot.slane %v1063, 5
        %v1066 = vsel %vm474, %v1061, %v1065
        %v1067 = vunpack.c.l.b16 %v488
        %v1068 = vunpack.c.l.b16 %v498
        %v1069 = vunpack.c.l.b16 %v512
        %v1070 = vunpack.c.l.b16 %v522
        %v1071 = vunpack.c.l.b16 %v536
        %v1072 = vunpack.c.l.b16 %v546
        %v1073 = vunpack.c.l.b16 %v560
        %v1074 = vunpack.c.l.b16 %v570
        %v1075 = vunpack.c.l.b16 %v584
        %v1076 = vunpack.c.l.b16 %v594
        %v1077 = vunpack.c.l.b16 %v608
        %v1078 = vunpack.c.l.b16 %v618
        %v1079 = vunpack.c.l.b16 %v632
        %v1080 = vunpack.c.l.b16 %v642
        %v1081 = vunpack.c.l.b16 %v656
        %v1082 = vunpack.c.l.b16 %v666
        %v1083 = vpack.c.b16 %v1068, %v1067
        %v1084 = vpack.c.b16 %v1070, %v1069
        %v1085 = vpack.c.b16 %v1072, %v1071
        %v1086 = vpack.c.b16 %v1074, %v1073
        %v1087 = vpack.c.b16 %v1076, %v1075
        %v1088 = vpack.c.b16 %v1078, %v1077
        %v1089 = vpack.c.b16 %v1080, %v1079
        %v1090 = vpack.c.b16 %v1082, %v1081
        %v1099 = vunpack.c.l.b16 %v688
        %v1100 = vunpack.c.l.b16 %v698
        %v1101 = vunpack.c.l.b16 %v712
        %v1102 = vunpack.c.l.b16 %v722
        %v1103 = vunpack.c.l.b16 %v736
        %v1104 = vunpack.c.l.b16 %v746
        %v1105 = vunpack.c.l.b16 %v760
        %v1106 = vunpack.c.l.b16 %v770
        %v1107 = vunpack.c.l.b16 %v784
        %v1108 = vunpack.c.l.b16 %v794
        %v1109 = vunpack.c.l.b16 %v808
        %v1110 = vunpack.c.l.b16 %v818
        %v1111 = vunpack.c.l.b16 %v832
        %v1112 = vunpack.c.l.b16 %v842
        %v1113 = vunpack.c.l.b16 %v856
        %v1114 = vunpack.c.l.b16 %v866
        %v1115 = vpack.c.b16 %v1100, %v1099
        %v1116 = vpack.c.b16 %v1102, %v1101
        %v1117 = vpack.c.b16 %v1104, %v1103
        %v1118 = vpack.c.b16 %v1106, %v1105
        %v1119 = vpack.c.b16 %v1108, %v1107
        %v1120 = vpack.c.b16 %v1110, %v1109
        %v1121 = vpack.c.b16 %v1112, %v1111
        %v1122 = vpack.c.b16 %v1114, %v1113
        %v1131 = vunpack.c.l.b16 %v888
        %v1132 = vunpack.c.l.b16 %v898
        %v1133 = vunpack.c.l.b16 %v912
        %v1134 = vunpack.c.l.b16 %v922
        %v1135 = vunpack.c.l.b16 %v936
        %v1136 = vunpack.c.l.b16 %v946
        %v1137 = vunpack.c.l.b16 %v960
        %v1138 = vunpack.c.l.b16 %v970
        %v1139 = vunpack.c.l.b16 %v984
        %v1140 = vunpack.c.l.b16 %v994
        %v1141 = vunpack.c.l.b16 %v1008
        %v1142 = vunpack.c.l.b16 %v1018
        %v1143 = vunpack.c.l.b16 %v1032
        %v1144 = vunpack.c.l.b16 %v1042
        %v1145 = vunpack.c.l.b16 %v1056
        %v1146 = vunpack.c.l.b16 %v1066
        %v1147 = vpack.c.b16 %v1132, %v1131
        %v1148 = vpack.c.b16 %v1134, %v1133
        %v1149 = vpack.c.b16 %v1136, %v1135
        %v1150 = vpack.c.b16 %v1138, %v1137
        %v1151 = vpack.c.b16 %v1140, %v1139
        %v1152 = vpack.c.b16 %v1142, %v1141
        %v1153 = vpack.c.b16 %v1144, %v1143
        %v1154 = vpack.c.b16 %v1146, %v1145
        %s1163 = scalar_lea.vmem %s1, 192
        %v1164 = vld [vmem:[%s1163] sm:$0xf]
        %v1165 = vld [vmem:[%s1163 + $0x4] sm:$0xf]
        %v1166 = vld [vmem:[%s1163 + $0x8] sm:$0xf]
        %v1167 = vld [vmem:[%s1163 + $0xc] sm:$0xf]
        %v1168 = vld [vmem:[%s1163 + $0x10] sm:$0xf]
        %v1169 = vld [vmem:[%s1163 + $0x14] sm:$0xf]
        %v1170 = vld [vmem:[%s1163 + $0x18] sm:$0xf]
        %v1171 = vld [vmem:[%s1163 + $0x1c] sm:$0xf]
        %v1172 = vld [vmem:[%s1163 + $0x20] sm:$0xf]
        %v1173 = vld [vmem:[%s1163 + $0x24] sm:$0xf]
        %v1174 = vld [vmem:[%s1163 + $0x28] sm:$0xf]
        %v1175 = vld [vmem:[%s1163 + $0x2c] sm:$0xf]
        %v1176 = vld [vmem:[%s1163 + $0x30] sm:$0xf]
        %v1177 = vld [vmem:[%s1163 + $0x34] sm:$0xf]
        %v1178 = vld [vmem:[%s1163 + $0x38] sm:$0xf]
        %v1179 = vld [vmem:[%s1163 + $0x3c] sm:$0xf]
        %v1180 = vld [vmem:[%s1163 + $0x40] sm:$0xf]
        %v1181 = vld [vmem:[%s1163 + $0x44] sm:$0xf]
        %v1182 = vld [vmem:[%s1163 + $0x48] sm:$0xf]
        %v1183 = vld [vmem:[%s1163 + $0x4c] sm:$0xf]
        %v1184 = vld [vmem:[%s1163 + $0x50] sm:$0xf]
        %v1185 = vld [vmem:[%s1163 + $0x54] sm:$0xf]
        %v1186 = vld [vmem:[%s1163 + $0x58] sm:$0xf]
        %v1187 = vld [vmem:[%s1163 + $0x5c] sm:$0xf]
        %v1188 = vld [vmem:[%s1163 + $0x60] sm:$0xf]
        %v1189 = vld [vmem:[%s1163 + $0x64] sm:$0xf]
        %v1190 = vld [vmem:[%s1163 + $0x68] sm:$0xf]
        %v1191 = vld [vmem:[%s1163 + $0x6c] sm:$0xf]
        %v1192 = vld [vmem:[%s1163 + $0x70] sm:$0xf]
        %v1193 = vld [vmem:[%s1163 + $0x74] sm:$0xf]
        %v1194 = vld [vmem:[%s1163 + $0x78] sm:$0xf]
        %v1195 = vld [vmem:[%s1163 + $0x7c] sm:$0xf]
        %v1196 = vld [vmem:[%s1163 + $0x80] sm:$0xf]
        %v1197 = vld [vmem:[%s1163 + $0x84] sm:$0xf]
        %v1198 = vld [vmem:[%s1163 + $0x88] sm:$0xf]
        %v1199 = vld [vmem:[%s1163 + $0x8c] sm:$0xf]
        %v1200 = vld [vmem:[%s1163 + $0x90] sm:$0xf]
        %v1201 = vld [vmem:[%s1163 + $0x94] sm:$0xf]
        %v1202 = vld [vmem:[%s1163 + $0x98] sm:$0xf]
        %v1203 = vld [vmem:[%s1163 + $0x9c] sm:$0xf]
        %v1204 = vld [vmem:[%s1163 + $0xa0] sm:$0xf]
        %v1205 = vld [vmem:[%s1163 + $0xa4] sm:$0xf]
        %v1206 = vld [vmem:[%s1163 + $0xa8] sm:$0xf]
        %v1207 = vld [vmem:[%s1163 + $0xac] sm:$0xf]
        %v1208 = vld [vmem:[%s1163 + $0xb0] sm:$0xf]
        %v1209 = vld [vmem:[%s1163 + $0xb4] sm:$0xf]
        %v1210 = vld [vmem:[%s1163 + $0xb8] sm:$0xf]
        %v1211 = vld [vmem:[%s1163 + $0xbc] sm:$0xf]
        %v1260 = vunpack.c.l.b16 %v1164
        %v1261 = vunpack.c.l.b16 %v1165
        %v1262 = vunpack.c.l.b16 %v1166
        %v1263 = vunpack.c.l.b16 %v1167
        %v1264 = vunpack.c.l.b16 %v1168
        %v1265 = vunpack.c.l.b16 %v1169
        %v1266 = vunpack.c.l.b16 %v1170
        %v1267 = vunpack.c.l.b16 %v1171
        %v1268 = vunpack.c.l.b16 %v1172
        %v1269 = vunpack.c.l.b16 %v1173
        %v1270 = vunpack.c.l.b16 %v1174
        %v1271 = vunpack.c.l.b16 %v1175
        %v1272 = vunpack.c.l.b16 %v1176
        %v1273 = vunpack.c.l.b16 %v1177
        %v1274 = vunpack.c.l.b16 %v1178
        %v1275 = vunpack.c.l.b16 %v1179
        %v1276 = vunpack.c.l.b16 %v1180
        %v1277 = vunpack.c.l.b16 %v1181
        %v1278 = vunpack.c.l.b16 %v1182
        %v1279 = vunpack.c.l.b16 %v1183
        %v1280 = vunpack.c.l.b16 %v1184
        %v1281 = vunpack.c.l.b16 %v1185
        %v1282 = vunpack.c.l.b16 %v1186
        %v1283 = vunpack.c.l.b16 %v1187
        %v1284 = vunpack.c.l.b16 %v1188
        %v1285 = vunpack.c.l.b16 %v1189
        %v1286 = vunpack.c.l.b16 %v1190
        %v1287 = vunpack.c.l.b16 %v1191
        %v1288 = vunpack.c.l.b16 %v1192
        %v1289 = vunpack.c.l.b16 %v1193
        %v1290 = vunpack.c.l.b16 %v1194
        %v1291 = vunpack.c.l.b16 %v1195
        %v1292 = vunpack.c.l.b16 %v1196
        %v1293 = vunpack.c.l.b16 %v1197
        %v1294 = vunpack.c.l.b16 %v1198
        %v1295 = vunpack.c.l.b16 %v1199
        %v1296 = vunpack.c.l.b16 %v1200
        %v1297 = vunpack.c.l.b16 %v1201
        %v1298 = vunpack.c.l.b16 %v1202
        %v1299 = vunpack.c.l.b16 %v1203
        %v1300 = vunpack.c.l.b16 %v1204
        %v1301 = vunpack.c.l.b16 %v1205
        %v1302 = vunpack.c.l.b16 %v1206
        %v1303 = vunpack.c.l.b16 %v1207
        %v1304 = vunpack.c.l.b16 %v1208
        %v1305 = vunpack.c.l.b16 %v1209
        %v1306 = vunpack.c.l.b16 %v1210
        %v1307 = vunpack.c.l.b16 %v1211
        %v1308 = vpack.c.b16 %v1261, %v1260
        %v1309 = vpack.c.b16 %v1263, %v1262
        %v1310 = vpack.c.b16 %v1265, %v1264
        %v1311 = vpack.c.b16 %v1267, %v1266
        %v1312 = vpack.c.b16 %v1269, %v1268
        %v1313 = vpack.c.b16 %v1271, %v1270
        %v1314 = vpack.c.b16 %v1273, %v1272
        %v1315 = vpack.c.b16 %v1275, %v1274
        %v1316 = vpack.c.b16 %v1277, %v1276
        %v1317 = vpack.c.b16 %v1279, %v1278
        %v1318 = vpack.c.b16 %v1281, %v1280
        %v1319 = vpack.c.b16 %v1283, %v1282
        %v1320 = vpack.c.b16 %v1285, %v1284
        %v1321 = vpack.c.b16 %v1287, %v1286
        %v1322 = vpack.c.b16 %v1289, %v1288
        %v1323 = vpack.c.b16 %v1291, %v1290
        %v1324 = vpack.c.b16 %v1293, %v1292
        %v1325 = vpack.c.b16 %v1295, %v1294
        %v1326 = vpack.c.b16 %v1297, %v1296
        %v1327 = vpack.c.b16 %v1299, %v1298
        %v1328 = vpack.c.b16 %v1301, %v1300
        %v1329 = vpack.c.b16 %v1303, %v1302
        %v1330 = vpack.c.b16 %v1305, %v1304
        %v1331 = vpack.c.b16 %v1307, %v1306
        %1356 = vmatprep.subr.bf16.mxu0 0
        %1357 = vmatpush1.bf16.msra.mxu0 %v1308
        %1358 = vmatprep.subr.bf16.mxu0 0
        %1359 = vmatpush1.bf16.msra.mxu0 %v1309
        %1360 = vmatprep.subr.bf16.mxu0 0
        %1361 = vmatpush1.bf16.msra.mxu0 %v1310
        %1362 = vmatprep.subr.bf16.mxu0 0
        %1363 = vmatpush1.bf16.msra.mxu0 %v1311
        %1364 = vmatprep.subr.bf16.mxu0 0
        %1365 = vmatpush1.bf16.msra.mxu0 %v1312
        %1366 = vmatprep.subr.bf16.mxu0 0
        %1367 = vmatpush1.bf16.msra.mxu0 %v1313
        %1368 = vmatprep.subr.bf16.mxu0 0
        %1369 = vmatpush1.bf16.msra.mxu0 %v1314
        %1370 = vmatprep.subr.bf16.mxu0 0
        %1371 = vmatpush1.bf16.msra.mxu0 %v1315
        %1372 = vmatprep.subr.bf16.mxu0 0
        %1373 = vmatpush1.bf16.msra.mxu0 %v1316
        %1374 = vmatprep.subr.bf16.mxu0 0
        %1375 = vmatpush1.bf16.msra.mxu0 %v1317
        %1376 = vmatprep.subr.bf16.mxu0 0
        %1377 = vmatpush1.bf16.msra.mxu0 %v1318
        %1378 = vmatprep.subr.bf16.mxu0 0
        %1379 = vmatpush1.bf16.msra.mxu0 %v1319
        %1380 = vmatprep.subr.bf16.mxu0 0
        %1381 = vmatpush1.bf16.msra.mxu0 %v1320
        %1382 = vmatprep.subr.bf16.mxu0 0
        %1383 = vmatpush1.bf16.msra.mxu0 %v1321
        %1384 = vmatprep.subr.bf16.mxu0 0
        %1385 = vmatpush1.bf16.msra.mxu0 %v1322
        %1386 = vmatprep.subr.bf16.mxu0 0
        %1387 = vmatpush1.bf16.msra.mxu0 %v1323
        %1388 = vmatprep.mubr.bf16.mxu0 %v1115
        %1389 = vmatmul.mubr.bf16.gmra.mrb[0].mxu0 %v1083
        %v1390 = vpop.f32.mrb[0].mxu0
        %v1391 = vadd.f32 0.0, %v1390
        %v1392 = vpop.f32.mrb[0].mxu0
        %v1393 = vpop.f32.mrb[0].mxu0
        %v1394 = vadd.f32 0.0, %v1393
        %v1395 = vpop.f32.mrb[0].mxu0
        %1396 = vmatprep.mubr.bf16.mxu0 %v1116
        %1397 = vmatmul.mubr.bf16.gmra.mrb[0].mxu0 %v1084
        %v1398 = vpop.f32.mrb[0].mxu0
        %v1399 = vadd.f32 0.0, %v1398
        %v1400 = vpop.f32.mrb[0].mxu0
        %v1401 = vpop.f32.mrb[0].mxu0
        %v1402 = vadd.f32 0.0, %v1401
        %v1403 = vpop.f32.mrb[0].mxu0
        %1404 = vmatprep.mubr.bf16.mxu0 %v1117
        %1405 = vmatmul.mubr.bf16.gmra.mrb[0].mxu0 %v1085
        %v1406 = vpop.f32.mrb[0].mxu0
        %v1407 = vadd.f32 0.0, %v1406
        %v1408 = vpop.f32.mrb[0].mxu0
        %v1409 = vpop.f32.mrb[0].mxu0
        %v1410 = vadd.f32 0.0, %v1409
        %v1411 = vpop.f32.mrb[0].mxu0
        %1412 = vmatprep.mubr.bf16.mxu0 %v1118
        %1413 = vmatmul.mubr.bf16.gmra.mrb[0].mxu0 %v1086
        %v1414 = vpop.f32.mrb[0].mxu0
        %v1415 = vadd.f32 0.0, %v1414
        %v1416 = vpop.f32.mrb[0].mxu0
        %v1417 = vpop.f32.mrb[0].mxu0
        %v1418 = vadd.f32 0.0, %v1417
        %v1419 = vpop.f32.mrb[0].mxu0
        %1420 = vmatprep.mubr.bf16.mxu0 %v1119
        %1421 = vmatmul.mubr.bf16.gmra.mrb[0].mxu0 %v1087
        %v1422 = vpop.f32.mrb[0].mxu0
        %v1423 = vadd.f32 0.0, %v1422
        %v1424 = vpop.f32.mrb[0].mxu0
        %v1425 = vpop.f32.mrb[0].mxu0
        %v1426 = vadd.f32 0.0, %v1425
        %v1427 = vpop.f32.mrb[0].mxu0
        %1428 = vmatprep.mubr.bf16.mxu0 %v1120
        %1429 = vmatmul.mubr.bf16.gmra.mrb[0].mxu0 %v1088
        %v1430 = vpop.f32.mrb[0].mxu0
        %v1431 = vadd.f32 0.0, %v1430
        %v1432 = vpop.f32.mrb[0].mxu0
        %v1433 = vpop.f32.mrb[0].mxu0
        %v1434 = vadd.f32 0.0, %v1433
        %v1435 = vpop.f32.mrb[0].mxu0
        %1436 = vmatprep.mubr.bf16.mxu0 %v1121
        %1437 = vmatmul.mubr.bf16.gmra.mrb[0].mxu0 %v1089
        %v1438 = vpop.f32.mrb[0].mxu0
        %v1439 = vadd.f32 0.0, %v1438
        %v1440 = vpop.f32.mrb[0].mxu0
        %v1441 = vpop.f32.mrb[0].mxu0
        %v1442 = vadd.f32 0.0, %v1441
        %v1443 = vpop.f32.mrb[0].mxu0
        %1444 = vmatprep.mubr.bf16.mxu0 %v1122
        %1445 = vmatmul.mubr.bf16.gmra.mrb[0].mxu0 %v1090
        %v1446 = vpop.f32.mrb[0].mxu0
        %v1447 = vadd.f32 0.0, %v1446
        %v1448 = vpop.f32.mrb[0].mxu0
        %v1449 = vpop.f32.mrb[0].mxu0
        %v1450 = vadd.f32 0.0, %v1449
        %v1451 = vpop.f32.mrb[0].mxu0
        %1452 = vdwg.mxu0
        %1453 = vmatprep.subr.bf16.mxu0 0
        %1454 = vmatpush1.bf16.msra.mxu0 %v1324
        %1455 = vmatprep.subr.bf16.mxu0 0
        %1456 = vmatpush1.bf16.msra.mxu0 %v1325
        %1457 = vmatprep.subr.bf16.mxu0 0
        %1458 = vmatpush1.bf16.msra.mxu0 %v1326
        %1459 = vmatprep.subr.bf16.mxu0 0
        %1460 = vmatpush1.bf16.msra.mxu0 %v1327
        %1461 = vmatprep.subr.bf16.mxu0 0
        %1462 = vmatpush1.bf16.msra.mxu0 %v1328
        %1463 = vmatprep.subr.bf16.mxu0 0
        %1464 = vmatpush1.bf16.msra.mxu0 %v1329
        %1465 = vmatprep.subr.bf16.mxu0 0
        %1466 = vmatpush1.bf16.msra.mxu0 %v1330
        %1467 = vmatprep.subr.bf16.mxu0 0
        %1468 = vmatpush1.bf16.msra.mxu0 %v1331
        %1469 = vmatprep.subr.bf16.mxu0 0
        %1470 = vmatpush1.bf16.msra.mxu0 0
        %1471 = vmatprep.subr.bf16.mxu0 0
        %1472 = vmatpush1.bf16.msra.mxu0 0
        %1473 = vmatprep.subr.bf16.mxu0 0
        %1474 = vmatpush1.bf16.msra.mxu0 0
        %1475 = vmatprep.subr.bf16.mxu0 0
        %1476 = vmatpush1.bf16.msra.mxu0 0
        %1477 = vmatprep.subr.bf16.mxu0 0
        %1478 = vmatpush1.bf16.msra.mxu0 0
        %1479 = vmatprep.subr.bf16.mxu0 0
        %1480 = vmatpush1.bf16.msra.mxu0 0
        %1481 = vmatprep.subr.bf16.mxu0 0
        %1482 = vmatpush1.bf16.msra.mxu0 0
        %1483 = vmatprep.subr.bf16.mxu0 0
        %1484 = vmatpush1.bf16.msra.mxu0 0
        %1485 = vmatprep.mubr.bf16.mxu0 0
        %1486 = vmatmul.mubr.bf16.gmra.mrb[0].mxu0 %v1147
        %v1487 = vpop.f32.mrb[0].mxu0
        %v1488 = vadd.f32 %v1391, %v1487
        %v1489 = vpop.f32.mrb[0].mxu0
        %v1490 = vpop.f32.mrb[0].mxu0
        %v1491 = vadd.f32 %v1394, %v1490
        %v1492 = vpop.f32.mrb[0].mxu0
        %1493 = vmatprep.mubr.bf16.mxu0 0
        %1494 = vmatmul.mubr.bf16.gmra.mrb[0].mxu0 %v1148
        %v1495 = vpop.f32.mrb[0].mxu0
        %v1496 = vadd.f32 %v1399, %v1495
        %v1497 = vpop.f32.mrb[0].mxu0
        %v1498 = vpop.f32.mrb[0].mxu0
        %v1499 = vadd.f32 %v1402, %v1498
        %v1500 = vpop.f32.mrb[0].mxu0
        %1501 = vmatprep.mubr.bf16.mxu0 0
        %1502 = vmatmul.mubr.bf16.gmra.mrb[0].mxu0 %v1149
        %v1503 = vpop.f32.mrb[0].mxu0
        %v1504 = vadd.f32 %v1407, %v1503
        %v1505 = vpop.f32.mrb[0].mxu0
        %v1506 = vpop.f32.mrb[0].mxu0
        %v1507 = vadd.f32 %v1410, %v1506
        %v1508 = vpop.f32.mrb[0].mxu0
        %1509 = vmatprep.mubr.bf16.mxu0 0
        %1510 = vmatmul.mubr.bf16.gmra.mrb[0].mxu0 %v1150
        %v1511 = vpop.f32.mrb[0].mxu0
        %v1512 = vadd.f32 %v1415, %v1511
        %v1513 = vpop.f32.mrb[0].mxu0
        %v1514 = vpop.f32.mrb[0].mxu0
        %v1515 = vadd.f32 %v1418, %v1514
        %v1516 = vpop.f32.mrb[0].mxu0
        %1517 = vmatprep.mubr.bf16.mxu0 0
        %1518 = vmatmul.mubr.bf16.gmra.mrb[0].mxu0 %v1151
        %v1519 = vpop.f32.mrb[0].mxu0
        %v1520 = vadd.f32 %v1423, %v1519
        %v1521 = vpop.f32.mrb[0].mxu0
        %v1522 = vpop.f32.mrb[0].mxu0
        %v1523 = vadd.f32 %v1426, %v1522
        %v1524 = vpop.f32.mrb[0].mxu0
        %1525 = vmatprep.mubr.bf16.mxu0 0
        %1526 = vmatmul.mubr.bf16.gmra.mrb[0].mxu0 %v1152
        %v1527 = vpop.f32.mrb[0].mxu0
        %v1528 = vadd.f32 %v1431, %v1527
        %v1529 = vpop.f32.mrb[0].mxu0
        %v1530 = vpop.f32.mrb[0].mxu0
        %v1531 = vadd.f32 %v1434, %v1530
        %v1532 = vpop.f32.mrb[0].mxu0
        %1533 = vmatprep.mubr.bf16.mxu0 0
        %1534 = vmatmul.mubr.bf16.gmra.mrb[0].mxu0 %v1153
        %v1535 = vpop.f32.mrb[0].mxu0
        %v1536 = vadd.f32 %v1439, %v1535
        %v1537 = vpop.f32.mrb[0].mxu0
        %v1538 = vpop.f32.mrb[0].mxu0
        %v1539 = vadd.f32 %v1442, %v1538
        %v1540 = vpop.f32.mrb[0].mxu0
        %1541 = vmatprep.mubr.bf16.mxu0 0
        %1542 = vmatmul.mubr.bf16.gmra.mrb[0].mxu0 %v1154
        %v1543 = vpop.f32.mrb[0].mxu0
        %v1544 = vadd.f32 %v1447, %v1543
        %v1545 = vpop.f32.mrb[0].mxu0
        %v1546 = vpop.f32.mrb[0].mxu0
        %v1547 = vadd.f32 %v1450, %v1546
        %v1548 = vpop.f32.mrb[0].mxu0
        %1549 = vdwg.mxu0
        %v1598 = vunpack.c.l.b16 %v416
        %v1599 = vunpack.c.l.b16 %v417
        %v1600 = vunpack.c.l.b16 %v418
        %v1601 = vunpack.c.l.b16 %v419
        %v1602 = vunpack.c.l.b16 %v420
        %v1603 = vunpack.c.l.b16 %v421
        %v1604 = vunpack.c.l.b16 %v422
        %v1605 = vunpack.c.l.b16 %v423
        %v1606 = vunpack.c.l.b16 %v424
        %v1607 = vunpack.c.l.b16 %v425
        %v1608 = vunpack.c.l.b16 %v426
        %v1609 = vunpack.c.l.b16 %v427
        %v1610 = vunpack.c.l.b16 %v428
        %v1611 = vunpack.c.l.b16 %v429
        %v1612 = vunpack.c.l.b16 %v430
        %v1613 = vunpack.c.l.b16 %v431
        %v1614 = vunpack.c.l.b16 %v432
        %v1615 = vunpack.c.l.b16 %v433
        %v1616 = vunpack.c.l.b16 %v434
        %v1617 = vunpack.c.l.b16 %v435
        %v1618 = vunpack.c.l.b16 %v436
        %v1619 = vunpack.c.l.b16 %v437
        %v1620 = vunpack.c.l.b16 %v438
        %v1621 = vunpack.c.l.b16 %v439
        %v1622 = vunpack.c.l.b16 %v440
        %v1623 = vunpack.c.l.b16 %v441
        %v1624 = vunpack.c.l.b16 %v442
        %v1625 = vunpack.c.l.b16 %v443
        %v1626 = vunpack.c.l.b16 %v444
        %v1627 = vunpack.c.l.b16 %v445
        %v1628 = vunpack.c.l.b16 %v446
        %v1629 = vunpack.c.l.b16 %v447
        %v1630 = vunpack.c.l.b16 %v448
        %v1631 = vunpack.c.l.b16 %v449
        %v1632 = vunpack.c.l.b16 %v450
        %v1633 = vunpack.c.l.b16 %v451
        %v1634 = vunpack.c.l.b16 %v452
        %v1635 = vunpack.c.l.b16 %v453
        %v1636 = vunpack.c.l.b16 %v454
        %v1637 = vunpack.c.l.b16 %v455
        %v1638 = vunpack.c.l.b16 %v456
        %v1639 = vunpack.c.l.b16 %v457
        %v1640 = vunpack.c.l.b16 %v458
        %v1641 = vunpack.c.l.b16 %v459
        %v1642 = vunpack.c.l.b16 %v460
        %v1643 = vunpack.c.l.b16 %v461
        %v1644 = vunpack.c.l.b16 %v462
        %v1645 = vunpack.c.l.b16 %v463
        %v1646 = vpack.c.b16 %v1599, %v1598
        %v1647 = vpack.c.b16 %v1601, %v1600
        %v1648 = vpack.c.b16 %v1603, %v1602
        %v1649 = vpack.c.b16 %v1605, %v1604
        %v1650 = vpack.c.b16 %v1607, %v1606
        %v1651 = vpack.c.b16 %v1609, %v1608
        %v1652 = vpack.c.b16 %v1611, %v1610
        %v1653 = vpack.c.b16 %v1613, %v1612
        %v1654 = vpack.c.b16 %v1615, %v1614
        %v1655 = vpack.c.b16 %v1617, %v1616
        %v1656 = vpack.c.b16 %v1619, %v1618
        %v1657 = vpack.c.b16 %v1621, %v1620
        %v1658 = vpack.c.b16 %v1623, %v1622
        %v1659 = vpack.c.b16 %v1625, %v1624
        %v1660 = vpack.c.b16 %v1627, %v1626
        %v1661 = vpack.c.b16 %v1629, %v1628
        %v1662 = vpack.c.b16 %v1631, %v1630
        %v1663 = vpack.c.b16 %v1633, %v1632
        %v1664 = vpack.c.b16 %v1635, %v1634
        %v1665 = vpack.c.b16 %v1637, %v1636
        %v1666 = vpack.c.b16 %v1639, %v1638
        %v1667 = vpack.c.b16 %v1641, %v1640
        %v1668 = vpack.c.b16 %v1643, %v1642
        %v1669 = vpack.c.b16 %v1645, %v1644
        %1694 = vmatprep.subr.bf16.mxu0 0
        %1695 = vmatpush1.bf16.msra.mxu0 %v1646
        %1696 = vmatprep.subr.bf16.mxu0 0
        %1697 = vmatpush1.bf16.msra.mxu0 %v1647
        %1698 = vmatprep.subr.bf16.mxu0 0
        %1699 = vmatpush1.bf16.msra.mxu0 %v1648
        %1700 = vmatprep.subr.bf16.mxu0 0
        %1701 = vmatpush1.bf16.msra.mxu0 %v1649
        %1702 = vmatprep.subr.bf16.mxu0 0
        %1703 = vmatpush1.bf16.msra.mxu0 %v1650
        %1704 = vmatprep.subr.bf16.mxu0 0
        %1705 = vmatpush1.bf16.msra.mxu0 %v1651
        %1706 = vmatprep.subr.bf16.mxu0 0
        %1707 = vmatpush1.bf16.msra.mxu0 %v1652
        %1708 = vmatprep.subr.bf16.mxu0 0
        %1709 = vmatpush1.bf16.msra.mxu0 %v1653
        %1710 = vmatprep.subr.bf16.mxu0 0
        %1711 = vmatpush1.bf16.msra.mxu0 %v1654
        %1712 = vmatprep.subr.bf16.mxu0 0
        %1713 = vmatpush1.bf16.msra.mxu0 %v1655
        %1714 = vmatprep.subr.bf16.mxu0 0
        %1715 = vmatpush1.bf16.msra.mxu0 %v1656
        %1716 = vmatprep.subr.bf16.mxu0 0
        %1717 = vmatpush1.bf16.msra.mxu0 %v1657
        %1718 = vmatprep.subr.bf16.mxu0 0
        %1719 = vmatpush1.bf16.msra.mxu0 %v1658
        %1720 = vmatprep.subr.bf16.mxu0 0
        %1721 = vmatpush1.bf16.msra.mxu0 %v1659
        %1722 = vmatprep.subr.bf16.mxu0 0
        %1723 = vmatpush1.bf16.msra.mxu0 %v1660
        %1724 = vmatprep.subr.bf16.mxu0 0
        %1725 = vmatpush1.bf16.msra.mxu0 %v1661
        %1726 = vmatprep.mubr.bf16.mxu0 %v352
        %1727 = vmatmul.mubr.bf16.gmra.mrb[0].mxu0 %v304
        %v1728 = vpop.f32.mrb[0].mxu0
        %v1729 = vadd.f32 %v1488, %v1728
        %v1730 = vpop.f32.mrb[0].mxu0
        %v1731 = vpop.f32.mrb[0].mxu0
        %v1732 = vadd.f32 %v1491, %v1731
        %v1733 = vpop.f32.mrb[0].mxu0
        %1734 = vmatprep.mubr.bf16.mxu0 %v353
        %1735 = vmatmul.mubr.bf16.gmra.mrb[0].mxu0 %v305
        %v1736 = vpop.f32.mrb[0].mxu0
        %v1737 = vadd.f32 %v1496, %v1736
        %v1738 = vpop.f32.mrb[0].mxu0
        %v1739 = vpop.f32.mrb[0].mxu0
        %v1740 = vadd.f32 %v1499, %v1739
        %v1741 = vpop.f32.mrb[0].mxu0
        %1742 = vmatprep.mubr.bf16.mxu0 %v354
        %1743 = vmatmul.mubr.bf16.gmra.mrb[0].mxu0 %v306
        %v1744 = vpop.f32.mrb[0].mxu0
        %v1745 = vadd.f32 %v1504, %v1744
        %v1746 = vpop.f32.mrb[0].mxu0
        %v1747 = vpop.f32.mrb[0].mxu0
        %v1748 = vadd.f32 %v1507, %v1747
        %v1749 = vpop.f32.mrb[0].mxu0
        %1750 = vmatprep.mubr.bf16.mxu0 %v355
        %1751 = vmatmul.mubr.bf16.gmra.mrb[0].mxu0 %v307
        %v1752 = vpop.f32.mrb[0].mxu0
        %v1753 = vadd.f32 %v1512, %v1752
        %v1754 = vpop.f32.mrb[0].mxu0
        %v1755 = vpop.f32.mrb[0].mxu0
        %v1756 = vadd.f32 %v1515, %v1755
        %v1757 = vpop.f32.mrb[0].mxu0
        %1758 = vmatprep.mubr.bf16.mxu0 %v356
        %1759 = vmatmul.mubr.bf16.gmra.mrb[0].mxu0 %v308
        %v1760 = vpop.f32.mrb[0].mxu0
        %v1761 = vadd.f32 %v1520, %v1760
        %v1762 = vpop.f32.mrb[0].mxu0
        %v1763 = vpop.f32.mrb[0].mxu0
        %v1764 = vadd.f32 %v1523, %v1763
        %v1765 = vpop.f32.mrb[0].mxu0
        %1766 = vmatprep.mubr.bf16.mxu0 %v357
        %1767 = vmatmul.mubr.bf16.gmra.mrb[0].mxu0 %v309
        %v1768 = vpop.f32.mrb[0].mxu0
        %v1769 = vadd.f32 %v1528, %v1768
        %v1770 = vpop.f32.mrb[0].mxu0
        %v1771 = vpop.f32.mrb[0].mxu0
        %v1772 = vadd.f32 %v1531, %v1771
        %v1773 = vpop.f32.mrb[0].mxu0
        %1774 = vmatprep.mubr.bf16.mxu0 %v358
        %1775 = vmatmul.mubr.bf16.gmra.mrb[0].mxu0 %v310
        %v1776 = vpop.f32.mrb[0].mxu0
        %v1777 = vadd.f32 %v1536, %v1776
        %v1778 = vpop.f32.mrb[0].mxu0
        %v1779 = vpop.f32.mrb[0].mxu0
        %v1780 = vadd.f32 %v1539, %v1779
        %v1781 = vpop.f32.mrb[0].mxu0
        %1782 = vmatprep.mubr.bf16.mxu0 %v359
        %1783 = vmatmul.mubr.bf16.gmra.mrb[0].mxu0 %v311
        %v1784 = vpop.f32.mrb[0].mxu0
        %v1785 = vadd.f32 %v1544, %v1784
        %v1786 = vpop.f32.mrb[0].mxu0
        %v1787 = vpop.f32.mrb[0].mxu0
        %v1788 = vadd.f32 %v1547, %v1787
        %v1789 = vpop.f32.mrb[0].mxu0
        %1790 = vdwg.mxu0
        %1791 = vmatprep.subr.bf16.mxu0 0
        %1792 = vmatpush1.bf16.msra.mxu0 %v1662
        %1793 = vmatprep.subr.bf16.mxu0 0
        %1794 = vmatpush1.bf16.msra.mxu0 %v1663
        %1795 = vmatprep.subr.bf16.mxu0 0
        %1796 = vmatpush1.bf16.msra.mxu0 %v1664
        %1797 = vmatprep.subr.bf16.mxu0 0
        %1798 = vmatpush1.bf16.msra.mxu0 %v1665
        %1799 = vmatprep.subr.bf16.mxu0 0
        %1800 = vmatpush1.bf16.msra.mxu0 %v1666
        %1801 = vmatprep.subr.bf16.mxu0 0
        %1802 = vmatpush1.bf16.msra.mxu0 %v1667
        %1803 = vmatprep.subr.bf16.mxu0 0
        %1804 = vmatpush1.bf16.msra.mxu0 %v1668
        %1805 = vmatprep.subr.bf16.mxu0 0
        %1806 = vmatpush1.bf16.msra.mxu0 %v1669
        %1807 = vmatprep.subr.bf16.mxu0 0
        %1808 = vmatpush1.bf16.msra.mxu0 0
        %1809 = vmatprep.subr.bf16.mxu0 0
        %1810 = vmatpush1.bf16.msra.mxu0 0
        %1811 = vmatprep.subr.bf16.mxu0 0
        %1812 = vmatpush1.bf16.msra.mxu0 0
        %1813 = vmatprep.subr.bf16.mxu0 0
        %1814 = vmatpush1.bf16.msra.mxu0 0
        %1815 = vmatprep.subr.bf16.mxu0 0
        %1816 = vmatpush1.bf16.msra.mxu0 0
        %1817 = vmatprep.subr.bf16.mxu0 0
        %1818 = vmatpush1.bf16.msra.mxu0 0
        %1819 = vmatprep.subr.bf16.mxu0 0
        %1820 = vmatpush1.bf16.msra.mxu0 0
        %1821 = vmatprep.subr.bf16.mxu0 0
        %1822 = vmatpush1.bf16.msra.mxu0 0
        %1823 = vmatprep.mubr.bf16.mxu0 0
        %1824 = vmatmul.mubr.bf16.gmra.mrb[0].mxu0 %v400
        %v1825 = vpop.f32.mrb[0].mxu0
        %v1826 = vadd.f32 %v1729, %v1825
        %v1827 = vpop.f32.mrb[0].mxu0
        %v1828 = vpop.f32.mrb[0].mxu0
        %v1829 = vadd.f32 %v1732, %v1828
        %v1830 = vpop.f32.mrb[0].mxu0
        %1831 = vmatprep.mubr.bf16.mxu0 0
        %1832 = vmatmul.mubr.bf16.gmra.mrb[0].mxu0 %v401
        %v1833 = vpop.f32.mrb[0].mxu0
        %v1834 = vadd.f32 %v1737, %v1833
        %v1835 = vpop.f32.mrb[0].mxu0
        %v1836 = vpop.f32.mrb[0].mxu0
        %v1837 = vadd.f32 %v1740, %v1836
        %v1838 = vpop.f32.mrb[0].mxu0
        %1839 = vmatprep.mubr.bf16.mxu0 0
        %1840 = vmatmul.mubr.bf16.gmra.mrb[0].mxu0 %v402
        %v1841 = vpop.f32.mrb[0].mxu0
        %v1842 = vadd.f32 %v1745, %v1841
        %v1843 = vpop.f32.mrb[0].mxu0
        %v1844 = vpop.f32.mrb[0].mxu0
        %v1845 = vadd.f32 %v1748, %v1844
        %v1846 = vpop.f32.mrb[0].mxu0
        %1847 = vmatprep.mubr.bf16.mxu0 0
        %1848 = vmatmul.mubr.bf16.gmra.mrb[0].mxu0 %v403
        %v1849 = vpop.f32.mrb[0].mxu0
        %v1850 = vadd.f32 %v1753, %v1849
        %v1851 = vpop.f32.mrb[0].mxu0
        %v1852 = vpop.f32.mrb[0].mxu0
        %v1853 = vadd.f32 %v1756, %v1852
        %v1854 = vpop.f32.mrb[0].mxu0
        %1855 = vmatprep.mubr.bf16.mxu0 0
        %1856 = vmatmul.mubr.bf16.gmra.mrb[0].mxu0 %v404
        %v1857 = vpop.f32.mrb[0].mxu0
        %v1858 = vadd.f32 %v1761, %v1857
        %v1859 = vpop.f32.mrb[0].mxu0
        %v1860 = vpop.f32.mrb[0].mxu0
        %v1861 = vadd.f32 %v1764, %v1860
        %v1862 = vpop.f32.mrb[0].mxu0
        %1863 = vmatprep.mubr.bf16.mxu0 0
        %1864 = vmatmul.mubr.bf16.gmra.mrb[0].mxu0 %v405
        %v1865 = vpop.f32.mrb[0].mxu0
        %v1866 = vadd.f32 %v1769, %v1865
        %v1867 = vpop.f32.mrb[0].mxu0
        %v1868 = vpop.f32.mrb[0].mxu0
        %v1869 = vadd.f32 %v1772, %v1868
        %v1870 = vpop.f32.mrb[0].mxu0
        %1871 = vmatprep.mubr.bf16.mxu0 0
        %1872 = vmatmul.mubr.bf16.gmra.mrb[0].mxu0 %v406
        %v1873 = vpop.f32.mrb[0].mxu0
        %v1874 = vadd.f32 %v1777, %v1873
        %v1875 = vpop.f32.mrb[0].mxu0
        %v1876 = vpop.f32.mrb[0].mxu0
        %v1877 = vadd.f32 %v1780, %v1876
        %v1878 = vpop.f32.mrb[0].mxu0
        %1879 = vmatprep.mubr.bf16.mxu0 0
        %1880 = vmatmul.mubr.bf16.gmra.mrb[0].mxu0 %v407
        %v1881 = vpop.f32.mrb[0].mxu0
        %v1882 = vadd.f32 %v1785, %v1881
        %v1883 = vpop.f32.mrb[0].mxu0
        %v1884 = vpop.f32.mrb[0].mxu0
        %v1885 = vadd.f32 %v1788, %v1884
        %v1886 = vpop.f32.mrb[0].mxu0
        %1887 = vdwg.mxu0
        %v1888 = vld [vmem:[%s215] sm:$0xe]
        %v1889 = vld [vmem:[%s215 + $0xc] sm:$0xe]
        %v1890 = vld [vmem:[%s215 + $0x18] sm:$0xe]
        %v1891 = vld [vmem:[%s215 + $0x24] sm:$0xe]
        %v1892 = vld [vmem:[%s215 + $0x30] sm:$0xe]
        %v1893 = vld [vmem:[%s215 + $0x3c] sm:$0xe]
        %v1894 = vld [vmem:[%s215 + $0x48] sm:$0xe]
        %v1895 = vld [vmem:[%s215 + $0x54] sm:$0xe]
        %vm1912 = vcmask 1042432
        %vm1913 = vcmask 1046532
        %vm1914 = vmor %vm1912, %vm1913
        %v1915 = vrot.slane %v1888, 5
        %v1916 = vrot.slane %v1915, 4
        %v1917 = vrot.slane %v217, 5
        %v1918 = vsel %vm1914, %v1916, %v1917
        %v1919 = vrot.slane %v1917, 4
        %v1920 = vrot.slane %v464, 5
        %v1921 = vsel %vm1914, %v1919, %v1920
        %v1922 = vrot.slane %v1889, 5
        %v1923 = vrot.slane %v1922, 4
        %v1924 = vrot.slane %v219, 5
        %v1925 = vsel %vm1914, %v1923, %v1924
        %v1926 = vrot.slane %v1924, 4
        %v1927 = vrot.slane %v465, 5
        %v1928 = vsel %vm1914, %v1926, %v1927
        %v1929 = vrot.slane %v1890, 5
        %v1930 = vrot.slane %v1929, 4
        %v1931 = vrot.slane %v221, 5
        %v1932 = vsel %vm1914, %v1930, %v1931
        %v1933 = vrot.slane %v1931, 4
        %v1934 = vrot.slane %v466, 5
        %v1935 = vsel %vm1914, %v1933, %v1934
        %v1936 = vrot.slane %v1891, 5
        %v1937 = vrot.slane %v1936, 4
        %v1938 = vrot.slane %v223, 5
        %v1939 = vsel %vm1914, %v1937, %v1938
        %v1940 = vrot.slane %v1938, 4
        %v1941 = vrot.slane %v467, 5
        %v1942 = vsel %vm1914, %v1940, %v1941
        %v1943 = vrot.slane %v1892, 5
        %v1944 = vrot.slane %v1943, 4
        %v1945 = vrot.slane %v225, 5
        %v1946 = vsel %vm1914, %v1944, %v1945
        %v1947 = vrot.slane %v1945, 4
        %v1948 = vrot.slane %v468, 5
        %v1949 = vsel %vm1914, %v1947, %v1948
        %v1950 = vrot.slane %v1893, 5
        %v1951 = vrot.slane %v1950, 4
        %v1952 = vrot.slane %v227, 5
        %v1953 = vsel %vm1914, %v1951, %v1952
        %v1954 = vrot.slane %v1952, 4
        %v1955 = vrot.slane %v469, 5
        %v1956 = vsel %vm1914, %v1954, %v1955
        %v1957 = vrot.slane %v1894, 5
        %v1958 = vrot.slane %v1957, 4
        %v1959 = vrot.slane %v229, 5
        %v1960 = vsel %vm1914, %v1958, %v1959
        %v1961 = vrot.slane %v1959, 4
        %v1962 = vrot.slane %v470, 5
        %v1963 = vsel %vm1914, %v1961, %v1962
        %v1964 = vrot.slane %v1895, 5
        %v1965 = vrot.slane %v1964, 4
        %v1966 = vrot.slane %v231, 5
        %v1967 = vsel %vm1914, %v1965, %v1966
        %v1968 = vrot.slane %v1966, 4
        %v1969 = vrot.slane %v471, 5
        %v1970 = vsel %vm1914, %v1968, %v1969
        %v1971 = vld [vmem:[%s235] sm:$0xe]
        %v1972 = vld [vmem:[%s235 + $0xc] sm:$0xe]
        %v1973 = vld [vmem:[%s235 + $0x18] sm:$0xe]
        %v1974 = vld [vmem:[%s235 + $0x24] sm:$0xe]
        %v1975 = vld [vmem:[%s235 + $0x30] sm:$0xe]
        %v1976 = vld [vmem:[%s235 + $0x3c] sm:$0xe]
        %v1977 = vld [vmem:[%s235 + $0x48] sm:$0xe]
        %v1978 = vld [vmem:[%s235 + $0x54] sm:$0xe]
        %v1995 = vrot.slane %v1971, 5
        %v1996 = vrot.slane %v1995, 4
        %v1997 = vrot.slane %v237, 5
        %v1998 = vsel %vm1914, %v1996, %v1997
        %v1999 = vrot.slane %v1997, 4
        %v2000 = vrot.slane %v667, 5
        %v2001 = vsel %vm1914, %v1999, %v2000
        %v2002 = vrot.slane %v1972, 5
        %v2003 = vrot.slane %v2002, 4
        %v2004 = vrot.slane %v239, 5
        %v2005 = vsel %vm1914, %v2003, %v2004
        %v2006 = vrot.slane %v2004, 4
        %v2007 = vrot.slane %v668, 5
        %v2008 = vsel %vm1914, %v2006, %v2007
        %v2009 = vrot.slane %v1973, 5
        %v2010 = vrot.slane %v2009, 4
        %v2011 = vrot.slane %v241, 5
        %v2012 = vsel %vm1914, %v2010, %v2011
        %v2013 = vrot.slane %v2011, 4
        %v2014 = vrot.slane %v669, 5
        %v2015 = vsel %vm1914, %v2013, %v2014
        %v2016 = vrot.slane %v1974, 5
        %v2017 = vrot.slane %v2016, 4
        %v2018 = vrot.slane %v243, 5
        %v2019 = vsel %vm1914, %v2017, %v2018
        %v2020 = vrot.slane %v2018, 4
        %v2021 = vrot.slane %v670, 5
        %v2022 = vsel %vm1914, %v2020, %v2021
        %v2023 = vrot.slane %v1975, 5
        %v2024 = vrot.slane %v2023, 4
        %v2025 = vrot.slane %v245, 5
        %v2026 = vsel %vm1914, %v2024, %v2025
        %v2027 = vrot.slane %v2025, 4
        %v2028 = vrot.slane %v671, 5
        %v2029 = vsel %vm1914, %v2027, %v2028
        %v2030 = vrot.slane %v1976, 5
        %v2031 = vrot.slane %v2030, 4
        %v2032 = vrot.slane %v247, 5
        %v2033 = vsel %vm1914, %v2031, %v2032
        %v2034 = vrot.slane %v2032, 4
        %v2035 = vrot.slane %v672, 5
        %v2036 = vsel %vm1914, %v2034, %v2035
        %v2037 = vrot.slane %v1977, 5
        %v2038 = vrot.slane %v2037, 4
        %v2039 = vrot.slane %v249, 5
        %v2040 = vsel %vm1914, %v2038, %v2039
        %v2041 = vrot.slane %v2039, 4
        %v2042 = vrot.slane %v673, 5
        %v2043 = vsel %vm1914, %v2041, %v2042
        %v2044 = vrot.slane %v1978, 5
        %v2045 = vrot.slane %v2044, 4
        %v2046 = vrot.slane %v251, 5
        %v2047 = vsel %vm1914, %v2045, %v2046
        %v2048 = vrot.slane %v2046, 4
        %v2049 = vrot.slane %v674, 5
        %v2050 = vsel %vm1914, %v2048, %v2049
        %v2051 = vld [vmem:[%s255] sm:$0xe]
        %v2052 = vld [vmem:[%s255 + $0xc] sm:$0xe]
        %v2053 = vld [vmem:[%s255 + $0x18] sm:$0xe]
        %v2054 = vld [vmem:[%s255 + $0x24] sm:$0xe]
        %v2055 = vld [vmem:[%s255 + $0x30] sm:$0xe]
        %v2056 = vld [vmem:[%s255 + $0x3c] sm:$0xe]
        %v2057 = vld [vmem:[%s255 + $0x48] sm:$0xe]
        %v2058 = vld [vmem:[%s255 + $0x54] sm:$0xe]
        %v2075 = vrot.slane %v2051, 5
        %v2076 = vrot.slane %v2075, 4
        %v2077 = vrot.slane %v257, 5
        %v2078 = vsel %vm1914, %v2076, %v2077
        %v2079 = vrot.slane %v2077, 4
        %v2080 = vrot.slane %v867, 5
        %v2081 = vsel %vm1914, %v2079, %v2080
        %v2082 = vrot.slane %v2052, 5
        %v2083 = vrot.slane %v2082, 4
        %v2084 = vrot.slane %v259, 5
        %v2085 = vsel %vm1914, %v2083, %v2084
        %v2086 = vrot.slane %v2084, 4
        %v2087 = vrot.slane %v868, 5
        %v2088 = vsel %vm1914, %v2086, %v2087
        %v2089 = vrot.slane %v2053, 5
        %v2090 = vrot.slane %v2089, 4
        %v2091 = vrot.slane %v261, 5
        %v2092 = vsel %vm1914, %v2090, %v2091
        %v2093 = vrot.slane %v2091, 4
        %v2094 = vrot.slane %v869, 5
        %v2095 = vsel %vm1914, %v2093, %v2094
        %v2096 = vrot.slane %v2054, 5
        %v2097 = vrot.slane %v2096, 4
        %v2098 = vrot.slane %v263, 5
        %v2099 = vsel %vm1914, %v2097, %v2098
        %v2100 = vrot.slane %v2098, 4
        %v2101 = vrot.slane %v870, 5
        %v2102 = vsel %vm1914, %v2100, %v2101
        %v2103 = vrot.slane %v2055, 5
        %v2104 = vrot.slane %v2103, 4
        %v2105 = vrot.slane %v265, 5
        %v2106 = vsel %vm1914, %v2104, %v2105
        %v2107 = vrot.slane %v2105, 4
        %v2108 = vrot.slane %v871, 5
        %v2109 = vsel %vm1914, %v2107, %v2108
        %v2110 = vrot.slane %v2056, 5
        %v2111 = vrot.slane %v2110, 4
        %v2112 = vrot.slane %v267, 5
        %v2113 = vsel %vm1914, %v2111, %v2112
        %v2114 = vrot.slane %v2112, 4
        %v2115 = vrot.slane %v872, 5
        %v2116 = vsel %vm1914, %v2114, %v2115
        %v2117 = vrot.slane %v2057, 5
        %v2118 = vrot.slane %v2117, 4
        %v2119 = vrot.slane %v269, 5
        %v2120 = vsel %vm1914, %v2118, %v2119
        %v2121 = vrot.slane %v2119, 4
        %v2122 = vrot.slane %v873, 5
        %v2123 = vsel %vm1914, %v2121, %v2122
        %v2124 = vrot.slane %v2058, 5
        %v2125 = vrot.slane %v2124, 4
        %v2126 = vrot.slane %v271, 5
        %v2127 = vsel %vm1914, %v2125, %v2126
        %v2128 = vrot.slane %v2126, 4
        %v2129 = vrot.slane %v874, 5
        %v2130 = vsel %vm1914, %v2128, %v2129
        %v2131 = vunpack.c.l.b16 %v1918
        %v2132 = vunpack.c.l.b16 %v1921
        %v2133 = vunpack.c.l.b16 %v1925
        %v2134 = vunpack.c.l.b16 %v1928
        %v2135 = vunpack.c.l.b16 %v1932
        %v2136 = vunpack.c.l.b16 %v1935
        %v2137 = vunpack.c.l.b16 %v1939
        %v2138 = vunpack.c.l.b16 %v1942
        %v2139 = vunpack.c.l.b16 %v1946
        %v2140 = vunpack.c.l.b16 %v1949
        %v2141 = vunpack.c.l.b16 %v1953
        %v2142 = vunpack.c.l.b16 %v1956
        %v2143 = vunpack.c.l.b16 %v1960
        %v2144 = vunpack.c.l.b16 %v1963
        %v2145 = vunpack.c.l.b16 %v1967
        %v2146 = vunpack.c.l.b16 %v1970
        %v2147 = vpack.c.b16 %v2132, %v2131
        %v2148 = vpack.c.b16 %v2134, %v2133
        %v2149 = vpack.c.b16 %v2136, %v2135
        %v2150 = vpack.c.b16 %v2138, %v2137
        %v2151 = vpack.c.b16 %v2140, %v2139
        %v2152 = vpack.c.b16 %v2142, %v2141
        %v2153 = vpack.c.b16 %v2144, %v2143
        %v2154 = vpack.c.b16 %v2146, %v2145
        %v2163 = vunpack.c.l.b16 %v1998
        %v2164 = vunpack.c.l.b16 %v2001
        %v2165 = vunpack.c.l.b16 %v2005
        %v2166 = vunpack.c.l.b16 %v2008
        %v2167 = vunpack.c.l.b16 %v2012
        %v2168 = vunpack.c.l.b16 %v2015
        %v2169 = vunpack.c.l.b16 %v2019
        %v2170 = vunpack.c.l.b16 %v2022
        %v2171 = vunpack.c.l.b16 %v2026
        %v2172 = vunpack.c.l.b16 %v2029
        %v2173 = vunpack.c.l.b16 %v2033
        %v2174 = vunpack.c.l.b16 %v2036
        %v2175 = vunpack.c.l.b16 %v2040
        %v2176 = vunpack.c.l.b16 %v2043
        %v2177 = vunpack.c.l.b16 %v2047
        %v2178 = vunpack.c.l.b16 %v2050
        %v2179 = vpack.c.b16 %v2164, %v2163
        %v2180 = vpack.c.b16 %v2166, %v2165
        %v2181 = vpack.c.b16 %v2168, %v2167
        %v2182 = vpack.c.b16 %v2170, %v2169
        %v2183 = vpack.c.b16 %v2172, %v2171
        %v2184 = vpack.c.b16 %v2174, %v2173
        %v2185 = vpack.c.b16 %v2176, %v2175
        %v2186 = vpack.c.b16 %v2178, %v2177
        %v2195 = vunpack.c.l.b16 %v2078
        %v2196 = vunpack.c.l.b16 %v2081
        %v2197 = vunpack.c.l.b16 %v2085
        %v2198 = vunpack.c.l.b16 %v2088
        %v2199 = vunpack.c.l.b16 %v2092
        %v2200 = vunpack.c.l.b16 %v2095
        %v2201 = vunpack.c.l.b16 %v2099
        %v2202 = vunpack.c.l.b16 %v2102
        %v2203 = vunpack.c.l.b16 %v2106
        %v2204 = vunpack.c.l.b16 %v2109
        %v2205 = vunpack.c.l.b16 %v2113
        %v2206 = vunpack.c.l.b16 %v2116
        %v2207 = vunpack.c.l.b16 %v2120
        %v2208 = vunpack.c.l.b16 %v2123
        %v2209 = vunpack.c.l.b16 %v2127
        %v2210 = vunpack.c.l.b16 %v2130
        %v2211 = vpack.c.b16 %v2196, %v2195
        %v2212 = vpack.c.b16 %v2198, %v2197
        %v2213 = vpack.c.b16 %v2200, %v2199
        %v2214 = vpack.c.b16 %v2202, %v2201
        %v2215 = vpack.c.b16 %v2204, %v2203
        %v2216 = vpack.c.b16 %v2206, %v2205
        %v2217 = vpack.c.b16 %v2208, %v2207
        %v2218 = vpack.c.b16 %v2210, %v2209
        %s2227 = scalar_lea.vmem %s1, 384
        %v2228 = vld [vmem:[%s2227] sm:$0xf]
        %v2229 = vld [vmem:[%s2227 + $0x4] sm:$0xf]
        %v2230 = vld [vmem:[%s2227 + $0x8] sm:$0xf]
        %v2231 = vld [vmem:[%s2227 + $0xc] sm:$0xf]
        %v2232 = vld [vmem:[%s2227 + $0x10] sm:$0xf]
        %v2233 = vld [vmem:[%s2227 + $0x14] sm:$0xf]
        %v2234 = vld [vmem:[%s2227 + $0x18] sm:$0xf]
        %v2235 = vld [vmem:[%s2227 + $0x1c] sm:$0xf]
        %v2236 = vld [vmem:[%s2227 + $0x20] sm:$0xf]
        %v2237 = vld [vmem:[%s2227 + $0x24] sm:$0xf]
        %v2238 = vld [vmem:[%s2227 + $0x28] sm:$0xf]
        %v2239 = vld [vmem:[%s2227 + $0x2c] sm:$0xf]
        %v2240 = vld [vmem:[%s2227 + $0x30] sm:$0xf]
        %v2241 = vld [vmem:[%s2227 + $0x34] sm:$0xf]
        %v2242 = vld [vmem:[%s2227 + $0x38] sm:$0xf]
        %v2243 = vld [vmem:[%s2227 + $0x3c] sm:$0xf]
        %v2244 = vld [vmem:[%s2227 + $0x40] sm:$0xf]
        %v2245 = vld [vmem:[%s2227 + $0x44] sm:$0xf]
        %v2246 = vld [vmem:[%s2227 + $0x48] sm:$0xf]
        %v2247 = vld [vmem:[%s2227 + $0x4c] sm:$0xf]
        %v2248 = vld [vmem:[%s2227 + $0x50] sm:$0xf]
        %v2249 = vld [vmem:[%s2227 + $0x54] sm:$0xf]
        %v2250 = vld [vmem:[%s2227 + $0x58] sm:$0xf]
        %v2251 = vld [vmem:[%s2227 + $0x5c] sm:$0xf]
        %v2252 = vld [vmem:[%s2227 + $0x60] sm:$0xf]
        %v2253 = vld [vmem:[%s2227 + $0x64] sm:$0xf]
        %v2254 = vld [vmem:[%s2227 + $0x68] sm:$0xf]
        %v2255 = vld [vmem:[%s2227 + $0x6c] sm:$0xf]
        %v2256 = vld [vmem:[%s2227 + $0x70] sm:$0xf]
        %v2257 = vld [vmem:[%s2227 + $0x74] sm:$0xf]
        %v2258 = vld [vmem:[%s2227 + $0x78] sm:$0xf]
        %v2259 = vld [vmem:[%s2227 + $0x7c] sm:$0xf]
        %v2260 = vld [vmem:[%s2227 + $0x80] sm:$0xf]
        %v2261 = vld [vmem:[%s2227 + $0x84] sm:$0xf]
        %v2262 = vld [vmem:[%s2227 + $0x88] sm:$0xf]
        %v2263 = vld [vmem:[%s2227 + $0x8c] sm:$0xf]
        %v2264 = vld [vmem:[%s2227 + $0x90] sm:$0xf]
        %v2265 = vld [vmem:[%s2227 + $0x94] sm:$0xf]
        %v2266 = vld [vmem:[%s2227 + $0x98] sm:$0xf]
        %v2267 = vld [vmem:[%s2227 + $0x9c] sm:$0xf]
        %v2268 = vld [vmem:[%s2227 + $0xa0] sm:$0xf]
        %v2269 = vld [vmem:[%s2227 + $0xa4] sm:$0xf]
        %v2270 = vld [vmem:[%s2227 + $0xa8] sm:$0xf]
        %v2271 = vld [vmem:[%s2227 + $0xac] sm:$0xf]
        %v2272 = vld [vmem:[%s2227 + $0xb0] sm:$0xf]
        %v2273 = vld [vmem:[%s2227 + $0xb4] sm:$0xf]
        %v2274 = vld [vmem:[%s2227 + $0xb8] sm:$0xf]
        %v2275 = vld [vmem:[%s2227 + $0xbc] sm:$0xf]
        %v2324 = vunpack.c.l.b16 %v2228
        %v2325 = vunpack.c.l.b16 %v2229
        %v2326 = vunpack.c.l.b16 %v2230
        %v2327 = vunpack.c.l.b16 %v2231
        %v2328 = vunpack.c.l.b16 %v2232
        %v2329 = vunpack.c.l.b16 %v2233
        %v2330 = vunpack.c.l.b16 %v2234
        %v2331 = vunpack.c.l.b16 %v2235
        %v2332 = vunpack.c.l.b16 %v2236
        %v2333 = vunpack.c.l.b16 %v2237
        %v2334 = vunpack.c.l.b16 %v2238
        %v2335 = vunpack.c.l.b16 %v2239
        %v2336 = vunpack.c.l.b16 %v2240
        %v2337 = vunpack.c.l.b16 %v2241
        %v2338 = vunpack.c.l.b16 %v2242
        %v2339 = vunpack.c.l.b16 %v2243
        %v2340 = vunpack.c.l.b16 %v2244
        %v2341 = vunpack.c.l.b16 %v2245
        %v2342 = vunpack.c.l.b16 %v2246
        %v2343 = vunpack.c.l.b16 %v2247
        %v2344 = vunpack.c.l.b16 %v2248
        %v2345 = vunpack.c.l.b16 %v2249
        %v2346 = vunpack.c.l.b16 %v2250
        %v2347 = vunpack.c.l.b16 %v2251
        %v2348 = vunpack.c.l.b16 %v2252
        %v2349 = vunpack.c.l.b16 %v2253
        %v2350 = vunpack.c.l.b16 %v2254
        %v2351 = vunpack.c.l.b16 %v2255
        %v2352 = vunpack.c.l.b16 %v2256
        %v2353 = vunpack.c.l.b16 %v2257
        %v2354 = vunpack.c.l.b16 %v2258
        %v2355 = vunpack.c.l.b16 %v2259
        %v2356 = vunpack.c.l.b16 %v2260
        %v2357 = vunpack.c.l.b16 %v2261
        %v2358 = vunpack.c.l.b16 %v2262
        %v2359 = vunpack.c.l.b16 %v2263
        %v2360 = vunpack.c.l.b16 %v2264
        %v2361 = vunpack.c.l.b16 %v2265
        %v2362 = vunpack.c.l.b16 %v2266
        %v2363 = vunpack.c.l.b16 %v2267
        %v2364 = vunpack.c.l.b16 %v2268
        %v2365 = vunpack.c.l.b16 %v2269
        %v2366 = vunpack.c.l.b16 %v2270
        %v2367 = vunpack.c.l.b16 %v2271
        %v2368 = vunpack.c.l.b16 %v2272
        %v2369 = vunpack.c.l.b16 %v2273
        %v2370 = vunpack.c.l.b16 %v2274
        %v2371 = vunpack.c.l.b16 %v2275
        %v2372 = vpack.c.b16 %v2325, %v2324
        %v2373 = vpack.c.b16 %v2327, %v2326
        %v2374 = vpack.c.b16 %v2329, %v2328
        %v2375 = vpack.c.b16 %v2331, %v2330
        %v2376 = vpack.c.b16 %v2333, %v2332
        %v2377 = vpack.c.b16 %v2335, %v2334
        %v2378 = vpack.c.b16 %v2337, %v2336
        %v2379 = vpack.c.b16 %v2339, %v2338
        %v2380 = vpack.c.b16 %v2341, %v2340
        %v2381 = vpack.c.b16 %v2343, %v2342
        %v2382 = vpack.c.b16 %v2345, %v2344
        %v2383 = vpack.c.b16 %v2347, %v2346
        %v2384 = vpack.c.b16 %v2349, %v2348
        %v2385 = vpack.c.b16 %v2351, %v2350
        %v2386 = vpack.c.b16 %v2353, %v2352
        %v2387 = vpack.c.b16 %v2355, %v2354
        %v2388 = vpack.c.b16 %v2357, %v2356
        %v2389 = vpack.c.b16 %v2359, %v2358
        %v2390 = vpack.c.b16 %v2361, %v2360
        %v2391 = vpack.c.b16 %v2363, %v2362
        %v2392 = vpack.c.b16 %v2365, %v2364
        %v2393 = vpack.c.b16 %v2367, %v2366
        %v2394 = vpack.c.b16 %v2369, %v2368
        %v2395 = vpack.c.b16 %v2371, %v2370
        %2420 = vmatprep.subr.bf16.mxu0 0
        %2421 = vmatpush1.bf16.msra.mxu0 %v2372
        %2422 = vmatprep.subr.bf16.mxu0 0
        %2423 = vmatpush1.bf16.msra.mxu0 %v2373
        %2424 = vmatprep.subr.bf16.mxu0 0
        %2425 = vmatpush1.bf16.msra.mxu0 %v2374
        %2426 = vmatprep.subr.bf16.mxu0 0
        %2427 = vmatpush1.bf16.msra.mxu0 %v2375
        %2428 = vmatprep.subr.bf16.mxu0 0
        %2429 = vmatpush1.bf16.msra.mxu0 %v2376
        %2430 = vmatprep.subr.bf16.mxu0 0
        %2431 = vmatpush1.bf16.msra.mxu0 %v2377
        %2432 = vmatprep.subr.bf16.mxu0 0
        %2433 = vmatpush1.bf16.msra.mxu0 %v2378
        %2434 = vmatprep.subr.bf16.mxu0 0
        %2435 = vmatpush1.bf16.msra.mxu0 %v2379
        %2436 = vmatprep.subr.bf16.mxu0 0
        %2437 = vmatpush1.bf16.msra.mxu0 %v2380
        %2438 = vmatprep.subr.bf16.mxu0 0
        %2439 = vmatpush1.bf16.msra.mxu0 %v2381
        %2440 = vmatprep.subr.bf16.mxu0 0
        %2441 = vmatpush1.bf16.msra.mxu0 %v2382
        %2442 = vmatprep.subr.bf16.mxu0 0
        %2443 = vmatpush1.bf16.msra.mxu0 %v2383
        %2444 = vmatprep.subr.bf16.mxu0 0
        %2445 = vmatpush1.bf16.msra.mxu0 %v2384
        %2446 = vmatprep.subr.bf16.mxu0 0
        %2447 = vmatpush1.bf16.msra.mxu0 %v2385
        %2448 = vmatprep.subr.bf16.mxu0 0
        %2449 = vmatpush1.bf16.msra.mxu0 %v2386
        %2450 = vmatprep.subr.bf16.mxu0 0
        %2451 = vmatpush1.bf16.msra.mxu0 %v2387
        %2452 = vmatprep.mubr.bf16.mxu0 %v2179
        %2453 = vmatmul.mubr.bf16.gmra.mrb[0].mxu0 %v2147
        %v2454 = vpop.f32.mrb[0].mxu0
        %v2455 = vadd.f32 0.0, %v2454
        %v2456 = vpop.f32.mrb[0].mxu0
        %v2457 = vpop.f32.mrb[0].mxu0
        %v2458 = vadd.f32 0.0, %v2457
        %v2459 = vpop.f32.mrb[0].mxu0
        %2460 = vmatprep.mubr.bf16.mxu0 %v2180
        %2461 = vmatmul.mubr.bf16.gmra.mrb[0].mxu0 %v2148
        %v2462 = vpop.f32.mrb[0].mxu0
        %v2463 = vadd.f32 0.0, %v2462
        %v2464 = vpop.f32.mrb[0].mxu0
        %v2465 = vpop.f32.mrb[0].mxu0
        %v2466 = vadd.f32 0.0, %v2465
        %v2467 = vpop.f32.mrb[0].mxu0
        %2468 = vmatprep.mubr.bf16.mxu0 %v2181
        %2469 = vmatmul.mubr.bf16.gmra.mrb[0].mxu0 %v2149
        %v2470 = vpop.f32.mrb[0].mxu0
        %v2471 = vadd.f32 0.0, %v2470
        %v2472 = vpop.f32.mrb[0].mxu0
        %v2473 = vpop.f32.mrb[0].mxu0
        %v2474 = vadd.f32 0.0, %v2473
        %v2475 = vpop.f32.mrb[0].mxu0
        %2476 = vmatprep.mubr.bf16.mxu0 %v2182
        %2477 = vmatmul.mubr.bf16.gmra.mrb[0].mxu0 %v2150
        %v2478 = vpop.f32.mrb[0].mxu0
        %v2479 = vadd.f32 0.0, %v2478
        %v2480 = vpop.f32.mrb[0].mxu0
        %v2481 = vpop.f32.mrb[0].mxu0
        %v2482 = vadd.f32 0.0, %v2481
        %v2483 = vpop.f32.mrb[0].mxu0
        %2484 = vmatprep.mubr.bf16.mxu0 %v2183
        %2485 = vmatmul.mubr.bf16.gmra.mrb[0].mxu0 %v2151
        %v2486 = vpop.f32.mrb[0].mxu0
        %v2487 = vadd.f32 0.0, %v2486
        %v2488 = vpop.f32.mrb[0].mxu0
        %v2489 = vpop.f32.mrb[0].mxu0
        %v2490 = vadd.f32 0.0, %v2489
        %v2491 = vpop.f32.mrb[0].mxu0
        %2492 = vmatprep.mubr.bf16.mxu0 %v2184
        %2493 = vmatmul.mubr.bf16.gmra.mrb[0].mxu0 %v2152
        %v2494 = vpop.f32.mrb[0].mxu0
        %v2495 = vadd.f32 0.0, %v2494
        %v2496 = vpop.f32.mrb[0].mxu0
        %v2497 = vpop.f32.mrb[0].mxu0
        %v2498 = vadd.f32 0.0, %v2497
        %v2499 = vpop.f32.mrb[0].mxu0
        %2500 = vmatprep.mubr.bf16.mxu0 %v2185
        %2501 = vmatmul.mubr.bf16.gmra.mrb[0].mxu0 %v2153
        %v2502 = vpop.f32.mrb[0].mxu0
        %v2503 = vadd.f32 0.0, %v2502
        %v2504 = vpop.f32.mrb[0].mxu0
        %v2505 = vpop.f32.mrb[0].mxu0
        %v2506 = vadd.f32 0.0, %v2505
        %v2507 = vpop.f32.mrb[0].mxu0
        %2508 = vmatprep.mubr.bf16.mxu0 %v2186
        %2509 = vmatmul.mubr.bf16.gmra.mrb[0].mxu0 %v2154
        %v2510 = vpop.f32.mrb[0].mxu0
        %v2511 = vadd.f32 0.0, %v2510
        %v2512 = vpop.f32.mrb[0].mxu0
        %v2513 = vpop.f32.mrb[0].mxu0
        %v2514 = vadd.f32 0.0, %v2513
        %v2515 = vpop.f32.mrb[0].mxu0
        %2516 = vdwg.mxu0
        %2517 = vmatprep.subr.bf16.mxu0 0
        %2518 = vmatpush1.bf16.msra.mxu0 %v2388
        %2519 = vmatprep.subr.bf16.mxu0 0
        %2520 = vmatpush1.bf16.msra.mxu0 %v2389
        %2521 = vmatprep.subr.bf16.mxu0 0
        %2522 = vmatpush1.bf16.msra.mxu0 %v2390
        %2523 = vmatprep.subr.bf16.mxu0 0
        %2524 = vmatpush1.bf16.msra.mxu0 %v2391
        %2525 = vmatprep.subr.bf16.mxu0 0
        %2526 = vmatpush1.bf16.msra.mxu0 %v2392
        %2527 = vmatprep.subr.bf16.mxu0 0
        %2528 = vmatpush1.bf16.msra.mxu0 %v2393
        %2529 = vmatprep.subr.bf16.mxu0 0
        %2530 = vmatpush1.bf16.msra.mxu0 %v2394
        %2531 = vmatprep.subr.bf16.mxu0 0
        %2532 = vmatpush1.bf16.msra.mxu0 %v2395
        %2533 = vmatprep.subr.bf16.mxu0 0
        %2534 = vmatpush1.bf16.msra.mxu0 0
        %2535 = vmatprep.subr.bf16.mxu0 0
        %2536 = vmatpush1.bf16.msra.mxu0 0
        %2537 = vmatprep.subr.bf16.mxu0 0
        %2538 = vmatpush1.bf16.msra.mxu0 0
        %2539 = vmatprep.subr.bf16.mxu0 0
        %2540 = vmatpush1.bf16.msra.mxu0 0
        %2541 = vmatprep.subr.bf16.mxu0 0
        %2542 = vmatpush1.bf16.msra.mxu0 0
        %2543 = vmatprep.subr.bf16.mxu0 0
        %2544 = vmatpush1.bf16.msra.mxu0 0
        %2545 = vmatprep.subr.bf16.mxu0 0
        %2546 = vmatpush1.bf16.msra.mxu0 0
        %2547 = vmatprep.subr.bf16.mxu0 0
        %2548 = vmatpush1.bf16.msra.mxu0 0
        %2549 = vmatprep.mubr.bf16.mxu0 0
        %2550 = vmatmul.mubr.bf16.gmra.mrb[0].mxu0 %v2211
        %v2551 = vpop.f32.mrb[0].mxu0
        %v2552 = vadd.f32 %v2455, %v2551
        %v2553 = vpop.f32.mrb[0].mxu0
        %v2554 = vpop.f32.mrb[0].mxu0
        %v2555 = vadd.f32 %v2458, %v2554
        %v2556 = vpop.f32.mrb[0].mxu0
        %2557 = vmatprep.mubr.bf16.mxu0 0
        %2558 = vmatmul.mubr.bf16.gmra.mrb[0].mxu0 %v2212
        %v2559 = vpop.f32.mrb[0].mxu0
        %v2560 = vadd.f32 %v2463, %v2559
        %v2561 = vpop.f32.mrb[0].mxu0
        %v2562 = vpop.f32.mrb[0].mxu0
        %v2563 = vadd.f32 %v2466, %v2562
        %v2564 = vpop.f32.mrb[0].mxu0
        %2565 = vmatprep.mubr.bf16.mxu0 0
        %2566 = vmatmul.mubr.bf16.gmra.mrb[0].mxu0 %v2213
        %v2567 = vpop.f32.mrb[0].mxu0
        %v2568 = vadd.f32 %v2471, %v2567
        %v2569 = vpop.f32.mrb[0].mxu0
        %v2570 = vpop.f32.mrb[0].mxu0
        %v2571 = vadd.f32 %v2474, %v2570
        %v2572 = vpop.f32.mrb[0].mxu0
        %2573 = vmatprep.mubr.bf16.mxu0 0
        %2574 = vmatmul.mubr.bf16.gmra.mrb[0].mxu0 %v2214
        %v2575 = vpop.f32.mrb[0].mxu0
        %v2576 = vadd.f32 %v2479, %v2575
        %v2577 = vpop.f32.mrb[0].mxu0
        %v2578 = vpop.f32.mrb[0].mxu0
        %v2579 = vadd.f32 %v2482, %v2578
        %v2580 = vpop.f32.mrb[0].mxu0
        %2581 = vmatprep.mubr.bf16.mxu0 0
        %2582 = vmatmul.mubr.bf16.gmra.mrb[0].mxu0 %v2215
        %v2583 = vpop.f32.mrb[0].mxu0
        %v2584 = vadd.f32 %v2487, %v2583
        %v2585 = vpop.f32.mrb[0].mxu0
        %v2586 = vpop.f32.mrb[0].mxu0
        %v2587 = vadd.f32 %v2490, %v2586
        %v2588 = vpop.f32.mrb[0].mxu0
        %2589 = vmatprep.mubr.bf16.mxu0 0
        %2590 = vmatmul.mubr.bf16.gmra.mrb[0].mxu0 %v2216
        %v2591 = vpop.f32.mrb[0].mxu0
        %v2592 = vadd.f32 %v2495, %v2591
        %v2593 = vpop.f32.mrb[0].mxu0
        %v2594 = vpop.f32.mrb[0].mxu0
        %v2595 = vadd.f32 %v2498, %v2594
        %v2596 = vpop.f32.mrb[0].mxu0
        %2597 = vmatprep.mubr.bf16.mxu0 0
        %2598 = vmatmul.mubr.bf16.gmra.mrb[0].mxu0 %v2217
        %v2599 = vpop.f32.mrb[0].mxu0
        %v2600 = vadd.f32 %v2503, %v2599
        %v2601 = vpop.f32.mrb[0].mxu0
        %v2602 = vpop.f32.mrb[0].mxu0
        %v2603 = vadd.f32 %v2506, %v2602
        %v2604 = vpop.f32.mrb[0].mxu0
        %2605 = vmatprep.mubr.bf16.mxu0 0
        %2606 = vmatmul.mubr.bf16.gmra.mrb[0].mxu0 %v2218
        %v2607 = vpop.f32.mrb[0].mxu0
        %v2608 = vadd.f32 %v2511, %v2607
        %v2609 = vpop.f32.mrb[0].mxu0
        %v2610 = vpop.f32.mrb[0].mxu0
        %v2611 = vadd.f32 %v2514, %v2610
        %v2612 = vpop.f32.mrb[0].mxu0
        %2613 = vdwg.mxu0
        %v2614 = vadd.f32 %v1826, %v2552
        %v2615 = vadd.f32 %v1829, %v2555
        %v2616 = vadd.f32 %v1834, %v2560
        %v2617 = vadd.f32 %v1837, %v2563
        %v2618 = vadd.f32 %v1842, %v2568
        %v2619 = vadd.f32 %v1845, %v2571
        %v2620 = vadd.f32 %v1850, %v2576
        %v2621 = vadd.f32 %v1853, %v2579
        %v2622 = vadd.f32 %v1858, %v2584
        %v2623 = vadd.f32 %v1861, %v2587
        %v2624 = vadd.f32 %v1866, %v2592
        %v2625 = vadd.f32 %v1869, %v2595
        %v2626 = vadd.f32 %v1874, %v2600
        %v2627 = vadd.f32 %v1877, %v2603
        %v2628 = vadd.f32 %v1882, %v2608
        %v2629 = vadd.f32 %v1885, %v2611
        %v2630 = vld [vmem:[%s2] sm:$0x1]
        %v2632 = vlaneseq
        %v2633 = vshrl.u32 %v2632, 7
        %v2634 = vsub.s32 0, %v2633
        %v2635 = vrot.slane %v2630, %v2634
        %v2637 = vmul.f32 %v2614, %v2635
        %v2638 = vmul.f32 %v2615, %v2635
        %v2639 = vmul.f32 %v2616, %v2635
        %v2640 = vmul.f32 %v2617, %v2635
        %v2641 = vmul.f32 %v2618, %v2635
        %v2642 = vmul.f32 %v2619, %v2635
        %v2643 = vmul.f32 %v2620, %v2635
        %v2644 = vmul.f32 %v2621, %v2635
        %v2645 = vmul.f32 %v2622, %v2635
        %v2646 = vmul.f32 %v2623, %v2635
        %v2647 = vmul.f32 %v2624, %v2635
        %v2648 = vmul.f32 %v2625, %v2635
        %v2649 = vmul.f32 %v2626, %v2635
        %v2650 = vmul.f32 %v2627, %v2635
        %v2651 = vmul.f32 %v2628, %v2635
        %v2652 = vmul.f32 %v2629, %v2635
        %v2653 = vld [vmem:[%s3] sm:$0x1]
        %v2655 = vlaneseq
        %v2656 = vshrl.u32 %v2655, 7
        %v2657 = vsub.s32 0, %v2656
        %v2658 = vrot.slane %v2653, %v2657
        %v2660 = vadd.f32 %v2637, %v2658
        %v2661 = vadd.f32 %v2638, %v2658
        %v2662 = vadd.f32 %v2639, %v2658
        %v2663 = vadd.f32 %v2640, %v2658
        %v2664 = vadd.f32 %v2641, %v2658
        %v2665 = vadd.f32 %v2642, %v2658
        %v2666 = vadd.f32 %v2643, %v2658
        %v2667 = vadd.f32 %v2644, %v2658
        %v2668 = vadd.f32 %v2645, %v2658
        %v2669 = vadd.f32 %v2646, %v2658
        %v2670 = vadd.f32 %v2647, %v2658
        %v2671 = vadd.f32 %v2648, %v2658
        %v2672 = vadd.f32 %v2649, %v2658
        %v2673 = vadd.f32 %v2650, %v2658
        %v2674 = vadd.f32 %v2651, %v2658
        %v2675 = vadd.f32 %v2652, %v2658
        %v2676 = vsub.f32 0.0, %v2660
        %v2677 = vsub.f32 0.0, %v2661
        %v2678 = vsub.f32 0.0, %v2662
        %v2679 = vsub.f32 0.0, %v2663
        %v2680 = vsub.f32 0.0, %v2664
        %v2681 = vsub.f32 0.0, %v2665
        %v2682 = vsub.f32 0.0, %v2666
        %v2683 = vsub.f32 0.0, %v2667
        %v2684 = vsub.f32 0.0, %v2668
        %v2685 = vsub.f32 0.0, %v2669
        %v2686 = vsub.f32 0.0, %v2670
        %v2687 = vsub.f32 0.0, %v2671
        %v2688 = vsub.f32 0.0, %v2672
        %v2689 = vsub.f32 0.0, %v2673
        %v2690 = vsub.f32 0.0, %v2674
        %v2691 = vsub.f32 0.0, %v2675
        %v2692 = vmul.f32 %v2676, 1.442695
        %v2693 = vpow.pop %v2692
        %v2694 = vmul.f32 %v2677, 1.442695
        %v2695 = vpow.pop %v2694
        %v2696 = vmul.f32 %v2678, 1.442695
        %v2697 = vpow.pop %v2696
        %v2698 = vmul.f32 %v2679, 1.442695
        %v2699 = vpow.pop %v2698
        %v2700 = vmul.f32 %v2680, 1.442695
        %v2701 = vpow.pop %v2700
        %v2702 = vmul.f32 %v2681, 1.442695
        %v2703 = vpow.pop %v2702
        %v2704 = vmul.f32 %v2682, 1.442695
        %v2705 = vpow.pop %v2704
        %v2706 = vmul.f32 %v2683, 1.442695
        %v2707 = vpow.pop %v2706
        %v2708 = vmul.f32 %v2684, 1.442695
        %v2709 = vpow.pop %v2708
        %v2710 = vmul.f32 %v2685, 1.442695
        %v2711 = vpow.pop %v2710
        %v2712 = vmul.f32 %v2686, 1.442695
        %v2713 = vpow.pop %v2712
        %v2714 = vmul.f32 %v2687, 1.442695
        %v2715 = vpow.pop %v2714
        %v2716 = vmul.f32 %v2688, 1.442695
        %v2717 = vpow.pop %v2716
        %v2718 = vmul.f32 %v2689, 1.442695
        %v2719 = vpow.pop %v2718
        %v2720 = vmul.f32 %v2690, 1.442695
        %v2721 = vpow.pop %v2720
        %v2722 = vmul.f32 %v2691, 1.442695
        %v2723 = vpow.pop %v2722
        %v2724 = vadd.f32 %v2693, 1.0
        %v2725 = vadd.f32 %v2695, 1.0
        %v2726 = vadd.f32 %v2697, 1.0
        %v2727 = vadd.f32 %v2699, 1.0
        %v2728 = vadd.f32 %v2701, 1.0
        %v2729 = vadd.f32 %v2703, 1.0
        %v2730 = vadd.f32 %v2705, 1.0
        %v2731 = vadd.f32 %v2707, 1.0
        %v2732 = vadd.f32 %v2709, 1.0
        %v2733 = vadd.f32 %v2711, 1.0
        %v2734 = vadd.f32 %v2713, 1.0
        %v2735 = vadd.f32 %v2715, 1.0
        %v2736 = vadd.f32 %v2717, 1.0
        %v2737 = vadd.f32 %v2719, 1.0
        %v2738 = vadd.f32 %v2721, 1.0
        %v2739 = vadd.f32 %v2723, 1.0
        %v2740 = vrcp.pop %v2724
        %v2741 = vmul.f32 1.0, %v2740
        %v2742 = vrcp.pop %v2725
        %v2743 = vmul.f32 1.0, %v2742
        %v2744 = vrcp.pop %v2726
        %v2745 = vmul.f32 1.0, %v2744
        %v2746 = vrcp.pop %v2727
        %v2747 = vmul.f32 1.0, %v2746
        %v2748 = vrcp.pop %v2728
        %v2749 = vmul.f32 1.0, %v2748
        %v2750 = vrcp.pop %v2729
        %v2751 = vmul.f32 1.0, %v2750
        %v2752 = vrcp.pop %v2730
        %v2753 = vmul.f32 1.0, %v2752
        %v2754 = vrcp.pop %v2731
        %v2755 = vmul.f32 1.0, %v2754
        %v2756 = vrcp.pop %v2732
        %v2757 = vmul.f32 1.0, %v2756
        %v2758 = vrcp.pop %v2733
        %v2759 = vmul.f32 1.0, %v2758
        %v2760 = vrcp.pop %v2734
        %v2761 = vmul.f32 1.0, %v2760
        %v2762 = vrcp.pop %v2735
        %v2763 = vmul.f32 1.0, %v2762
        %v2764 = vrcp.pop %v2736
        %v2765 = vmul.f32 1.0, %v2764
        %v2766 = vrcp.pop %v2737
        %v2767 = vmul.f32 1.0, %v2766
        %v2768 = vrcp.pop %v2738
        %v2769 = vmul.f32 1.0, %v2768
        %v2770 = vrcp.pop %v2739
        %v2771 = vmul.f32 1.0, %v2770
        %v2772 = vmul.f32 %v2660, %v2741
        %v2773 = vmul.f32 %v2661, %v2743
        %v2774 = vmul.f32 %v2662, %v2745
        %v2775 = vmul.f32 %v2663, %v2747
        %v2776 = vmul.f32 %v2664, %v2749
        %v2777 = vmul.f32 %v2665, %v2751
        %v2778 = vmul.f32 %v2666, %v2753
        %v2779 = vmul.f32 %v2667, %v2755
        %v2780 = vmul.f32 %v2668, %v2757
        %v2781 = vmul.f32 %v2669, %v2759
        %v2782 = vmul.f32 %v2670, %v2761
        %v2783 = vmul.f32 %v2671, %v2763
        %v2784 = vmul.f32 %v2672, %v2765
        %v2785 = vmul.f32 %v2673, %v2767
        %v2786 = vmul.f32 %v2674, %v2769
        %v2787 = vmul.f32 %v2675, %v2771
        %v2788 = vpack.c.bf16 %v2773, %v2772
        %v2789 = vpack.c.bf16 %v2775, %v2774
        %v2790 = vpack.c.bf16 %v2777, %v2776
        %v2791 = vpack.c.bf16 %v2779, %v2778
        %v2792 = vpack.c.bf16 %v2781, %v2780
        %v2793 = vpack.c.bf16 %v2783, %v2782
        %v2794 = vpack.c.bf16 %v2785, %v2784
        %v2795 = vpack.c.bf16 %v2787, %v2786
        %v2804 = vunpack.c.l.b16 %v2788
        %v2805 = vunpack.c.h.b16 %v2788
        %v2806 = vunpack.c.l.b16 %v2789
        %v2807 = vunpack.c.h.b16 %v2789
        %v2808 = vunpack.c.l.b16 %v2790
        %v2809 = vunpack.c.h.b16 %v2790
        %v2810 = vunpack.c.l.b16 %v2791
        %v2811 = vunpack.c.h.b16 %v2791
        %v2812 = vunpack.c.l.b16 %v2792
        %v2813 = vunpack.c.h.b16 %v2792
        %v2814 = vunpack.c.l.b16 %v2793
        %v2815 = vunpack.c.h.b16 %v2793
        %v2816 = vunpack.c.l.b16 %v2794
        %v2817 = vunpack.c.h.b16 %v2794
        %v2818 = vunpack.c.l.b16 %v2795
        %v2819 = vunpack.c.h.b16 %v2795
        %v2820 = vpack.c.b16 %v2804, %v2804
        %v2821 = vpack.c.b16 %v2805, %v2805
        %v2822 = vpack.c.b16 %v2806, %v2806
        %v2823 = vpack.c.b16 %v2807, %v2807
        %v2824 = vpack.c.b16 %v2808, %v2808
        %v2825 = vpack.c.b16 %v2809, %v2809
        %v2826 = vpack.c.b16 %v2810, %v2810
        %v2827 = vpack.c.b16 %v2811, %v2811
        %v2828 = vpack.c.b16 %v2812, %v2812
        %v2829 = vpack.c.b16 %v2813, %v2813
        %v2830 = vpack.c.b16 %v2814, %v2814
        %v2831 = vpack.c.b16 %v2815, %v2815
        %v2832 = vpack.c.b16 %v2816, %v2816
        %v2833 = vpack.c.b16 %v2817, %v2817
        %v2834 = vpack.c.b16 %v2818, %v2818
        %v2835 = vpack.c.b16 %v2819, %v2819
        %2852 = vst [vmem:[%s204] sm:$0xf] %v2820
        %2853 = vst [vmem:[%s204 + $0x4] sm:$0xf] %v2821
        %2854 = vst [vmem:[%s204 + $0x8] sm:$0xf] %v2822
        %2855 = vst [vmem:[%s204 + $0xc] sm:$0xf] %v2823
        %2856 = vst [vmem:[%s204 + $0x10] sm:$0xf] %v2824
        %2857 = vst [vmem:[%s204 + $0x14] sm:$0xf] %v2825
        %2858 = vst [vmem:[%s204 + $0x18] sm:$0xf] %v2826
        %2859 = vst [vmem:[%s204 + $0x1c] sm:$0xf] %v2827
        %2860 = vst [vmem:[%s204 + $0x20] sm:$0xf] %v2828
        %2861 = vst [vmem:[%s204 + $0x24] sm:$0xf] %v2829
        %2862 = vst [vmem:[%s204 + $0x28] sm:$0xf] %v2830
        %2863 = vst [vmem:[%s204 + $0x2c] sm:$0xf] %v2831
        %2864 = vst [vmem:[%s204 + $0x30] sm:$0xf] %v2832
        %2865 = vst [vmem:[%s204 + $0x34] sm:$0xf] %v2833
        %2866 = vst [vmem:[%s204 + $0x38] sm:$0xf] %v2834
        %2867 = vst [vmem:[%s204 + $0x3c] sm:$0xf] %v2835
        %s2868 = sand.u32 %s129, 1
        %s2869 = scalar_lea.sflag [#allocation3], %s2868
        %s2870 = sand.u32 %s129, 1
        %s2871 = smul.addr %s2870, 64
        %s2872 = scalar_lea.vmem [#allocation2], %s2871
        // Predicated region
        $region37: #{tpu_custom_call.1} parent=35 // pred_check
          %p2873 = pneg %p139
        $region38: #{tpu_custom_call.1} parent=35 // pred_check_branch
          %2875 = sbr.rel (%p2873) target = $region40
        $region39: #{tpu_custom_call.1} parent=35 // pred_region
          %s2876 = smul.u32 8, %s23
          %s2878 = ssub.s32 1024, 1024
          %2879 = vsyncadd %s2869, %s2878
          %s2880 = smul.addr %s2876, 2
          %s2881 = smul.addr %s22, 32
          %s2882 = sadd.s32 %s2880, %s2881
          %s2883 = smul.addr %s2882, 64
          %s2884 = scalar_lea.hbm %s4, %s2883
          %s2885 = sshll.u32 %s2872, 4
          %s2886 = int_to_ptr.vmem [resolvable:$true] %s2885
          %2891 = dma.vmem_to_hbm [thread:$0]  %s2886, 1024, %s2884, %s2869, 64, 64, 4
        $region40: #{tpu_custom_call.1} parent=35 // pred_fallthru
          _
      $region36: #{tpu_custom_call.1} parent=5 // pred_fallthru
        _
      %p2892 = scmp.le.s32.totalorder 2, %s13
      // Predicated region
      $region41: #{tpu_custom_call.1} parent=5 // pred_check
        %p2893 = pneg %p2892
      $region42: #{tpu_custom_call.1} parent=5 // pred_check_branch
        %2895 = sbr.rel (%p2893) target = $region44
      $region43: #{tpu_custom_call.1} parent=5 // pred_region
        %s2896 = ssub.s32 %s13, 2
        // Predicated region
        $region45: #{tpu_custom_call.1} parent=43 // pred_check
          %p2897 = pneg %p145
        $region46: #{tpu_custom_call.1} parent=43 // pred_check_branch
          %2899 = sbr.rel (%p2897) target = $region48
        $region47: #{tpu_custom_call.1} parent=43 // pred_region
          %s2900 = sand.u32 %s130, 1
          %s2901 = scalar_lea.sflag [#allocation3], %s2900
          %s2902 = sand.u32 %s130, 1
          %s2903 = smul.addr %s2902, 64
          %s2904 = scalar_lea.vmem [#allocation2], %s2903
          %2905 = dma.done %s2901, 1024
        $region48: #{tpu_custom_call.1} parent=43 // pred_fallthru
          _
      $region44: #{tpu_custom_call.1} parent=5 // pred_fallthru
        _
    $region6: #{tpu_custom_call.1} parent=1 // loop_footer
      %s17 = sadd.s32 1, %s13
    $region7: #{tpu_custom_call.1} parent=1 // loop_footer_branch
      %12 = sbr.rel target = $region3
    $region8: #{tpu_custom_call.1} parent=1 // loop_exit
      _
    %2906 = vsyncpa [#allocation3], 1
    %s2907 = scalar_lea.sflag [#allocation3], 1
    %2908 = vsyncpa %s2907, 1

</llo_original>
